<compile_context>
chip_gen: v7x
topology: tpu7x:2x2x1
jax: 0.10.0
libtpu: 0.0.40
codegen_flags: <defaults>
</compile_context>

<pallas_src>
import functools
import math

import jax
import jax.numpy as jnp
from jax.experimental import pallas as pl
from jax.experimental.pallas import tpu as pltpu


def _layernorm(x, gamma, beta, eps=1e-5):
    mu = jnp.mean(x, axis=-1, keepdims=True)
    var = jnp.mean((x - mu) ** 2, axis=-1, keepdims=True)
    return (x - mu) * jax.lax.rsqrt(var + eps) * gamma + beta


def cross_transformer_kernel(
    q_ref,                      # (Lq, TN, E)  query block (reference-view feats)
    k_ref,                      # (Lk, TN, E)  key block   (source-view feats)
    v_ref,                      # (Lk, TN, E)  value block
    mbd_ref,                    # (E, E)       block-diagonal head projector (0/1)
    g1_ref, b1_ref,             # (L, 1, E)    layernorm1 (applied to query only)
    wq_ref, wk_ref, wv_ref,     # (L, E, E)    pre-transposed (used as x @ W); wq carries scale
    bq_ref, bk_ref, bv_ref,     # (L, 1, E)    bq carries scale
    wo_ref, bo_ref,             # (L, E, E) pre-transposed, (L, 1, E)
    g2_ref, b2_ref,             # (L, 1, E)    layernorm2
    w1_ref, fb1_ref,            # (L, E, M) pre-transposed, (L, 1, M)
    w2_ref, fb2_ref,            # (L, M, E) pre-transposed, (L, 1, E)
    o_ref,                      # (Lq, TN, E)
):
    xq = q_ref[...]                       # f32
    xk = k_ref[...]
    xv = v_ref[...]
    Lq, TN, E = xq.shape
    Lk = xk.shape[0]
    num_layers = wq_ref.shape[0]
    mbd = mbd_ref[...]                    # (E, E)

    xk_flat = xk.reshape(Lk * TN, E)      # leading-dim reshapes only (layout free)
    xv_flat = xv.reshape(Lk * TN, E)

    # TODO(synk): attn_mask path of CrossTransformer.forward is not implemented
    # (the model is exercised with mask=None; a mask would be an additive bias on s).
    x = xq
    for l in range(num_layers):           # static unroll over the fused layer stack
        # ---- norm1 on the query only (key/value are used un-normalized) ----
        qn = _layernorm(x, g1_ref[l], b1_ref[l])

        # ---- q/k/v projections on the MXU (weights already transposed; scale folded) ----
        q = jnp.dot(qn.reshape(Lq * TN, E), wq_ref[l],
                    preferred_element_type=jnp.float32) + bq_ref[l]
        k = jnp.dot(xk_flat, wk_ref[l],
                    preferred_element_type=jnp.float32) + bk_ref[l]
        v = jnp.dot(xv_flat, wv_ref[l],
                    preferred_element_type=jnp.float32) + bv_ref[l]

        q3 = q.reshape(Lq, TN, E)
        k3 = k.reshape(Lk, TN, E)
        v3 = v.reshape(Lk, TN, E)

        # ---- multi-head cross-attention over the Lk source views ----
        # Per-head q.k scores are produced replicated across each head's channels by one
        # (E,E) block-diagonal matmul, so softmax / reciprocal run lane-dense on E channels
        # and no narrow (H-wide) intermediates or per-head slicing are needed.
        ctx_rows = []
        for i in range(Lq):               # Lq == 1 for this model; static unroll
            pr = k3 * q3[i]                                       # (Lk, TN, E)
            s = jnp.dot(pr.reshape(Lk * TN, E), mbd,
                        preferred_element_type=jnp.float32).reshape(Lk, TN, E)
            m = jnp.max(s, axis=0, keepdims=True)
            p = jnp.exp(s - m)
            denom = jnp.sum(p, axis=0, keepdims=True)
            p = p * pl.reciprocal(denom, approx=True)             # EUP slot, off the VALU
            ctx_rows.append(jnp.sum(p * v3, axis=0))              # (TN, E)
        ctx_flat = ctx_rows[0] if Lq == 1 else jnp.concatenate(ctx_rows, axis=0)

        attn = jnp.dot(ctx_flat, wo_ref[l],
                       preferred_element_type=jnp.float32) + bo_ref[l]

        # ---- residual 1 ----
        x1 = x + attn.reshape(Lq, TN, E)

        # ---- norm2 + MLP (ReLU) ----
        x2n = _layernorm(x1, g2_ref[l], b2_ref[l])
        h1 = jnp.dot(x2n.reshape(Lq * TN, E), w1_ref[l],
                     preferred_element_type=jnp.float32) + fb1_ref[l]
        h1 = jnp.maximum(h1, 0.0)
        h2 = jnp.dot(h1, w2_ref[l],
                     preferred_element_type=jnp.float32) + fb2_ref[l]

        # ---- residual 2 ----
        x = x1 + h2.reshape(Lq, TN, E)

    o_ref[...] = x.astype(o_ref.dtype)


def _stack_params(layers, E, M, num_heads):
    """Stack per-layer params -> (num_layers, ...) arrays, pre-transposed for x @ W,
    with the 1/sqrt(head_dim) attention scale folded into Wq^T and bq."""
    hd = E // num_heads
    scale = 1.0 / math.sqrt(hd)

    def stk(fn):
        return jnp.stack([fn(p) for p in layers], axis=0)

    return dict(
        g1=stk(lambda p: p["ln1_g"].reshape(1, E)),
        b1=stk(lambda p: p["ln1_b"].reshape(1, E)),
        wq=stk(lambda p: p["wq"].T * scale),
        wk=stk(lambda p: p["wk"].T),
        wv=stk(lambda p: p["wv"].T),
        bq=stk(lambda p: p["bq"].reshape(1, E) * scale),
        bk=stk(lambda p: p["bk"].reshape(1, E)),
        bv=stk(lambda p: p["bv"].reshape(1, E)),
        wo=stk(lambda p: p["wo"].T),
        bo=stk(lambda p: p["bo"].reshape(1, E)),
        g2=stk(lambda p: p["ln2_g"].reshape(1, E)),
        b2=stk(lambda p: p["ln2_b"].reshape(1, E)),
        w1=stk(lambda p: p["w1"].T),                # (E, M)
        fb1=stk(lambda p: p["b1"].reshape(1, M)),
        w2=stk(lambda p: p["w2"].T),                # (M, E)
        fb2=stk(lambda p: p["b2"].reshape(1, E)),
    )


def cross_transformer(query, key, value, layers, num_heads, block_n=None):
    """CrossTransformer.forward with mask=None (dropout rates are 0.0).

    query (Lq,N,E), key/value (Lk,N,E) -> (Lq,N,E). All layers fused into one kernel.
    """
    Lq, N, E = query.shape
    Lk = key.shape[0]
    M = layers[0]["w1"].shape[0]
    num_layers = len(layers)

    assert E % num_heads == 0, "emb_dim must be divisible by num_heads"
    if block_n is None:
        block_n = N                       # single grid step: this workload is overhead-bound
    assert N % block_n == 0, "n_voxels must be divisible by block_n"
    assert block_n == N or block_n % 8 == 0, "(8,128) tiling: block_n must be a multiple of 8"

    sp = _stack_params(layers, E, M, num_heads)

    # (E, E) block-diagonal head projector, built once on the host side.
    hd = E // num_heads
    head_of = jnp.arange(E, dtype=jnp.int32) // hd
    mbd = (head_of[:, None] == head_of[None, :]).astype(jnp.float32)

    def const_spec(shape):
        nd = len(shape)
        return pl.BlockSpec(shape, lambda b, _nd=nd: (0,) * _nd)

    grid = (N // block_n,)
    q_spec = pl.BlockSpec((Lq, block_n, E), lambda b: (0, b, 0))
    kv_spec = pl.BlockSpec((Lk, block_n, E), lambda b: (0, b, 0))

    L = num_layers
    in_specs = [
        q_spec, kv_spec, kv_spec,
        const_spec((E, E)),                                                   # projector
        const_spec((L, 1, E)), const_spec((L, 1, E)),                         # ln1
        const_spec((L, E, E)), const_spec((L, E, E)), const_spec((L, E, E)),  # Wq^T Wk^T Wv^T
        const_spec((L, 1, E)), const_spec((L, 1, E)), const_spec((L, 1, E)),  # bq bk bv
        const_spec((L, E, E)), const_spec((L, 1, E)),                         # Wo^T bo
        const_spec((L, 1, E)), const_spec((L, 1, E)),                         # ln2
        const_spec((L, E, M)), const_spec((L, 1, M)),                         # fc1^T b1
        const_spec((L, M, E)), const_spec((L, 1, E)),                         # fc2^T b2
    ]
    operands = (
        query, key, value, mbd,
        sp["g1"], sp["b1"],
        sp["wq"], sp["wk"], sp["wv"], sp["bq"], sp["bk"], sp["bv"],
        sp["wo"], sp["bo"],
        sp["g2"], sp["b2"],
        sp["w1"], sp["fb1"], sp["w2"], sp["fb2"],
    )

    # Advisory cost estimate for the XLA scheduler (matmul-dominated).
    flops_per_layer = (
        2 * N * E * E * (Lq + 2 * Lk)     # q/k/v projections
        + 2 * Lk * N * E * E              # block-diagonal score matmul
        + 2 * Lq * N * E * E              # output projection
        + 2 * 2 * Lq * N * E * M          # MLP fc1 + fc2
    )
    transcendentals = num_layers * (Lk * N * E + 2 * Lq * N)     # exp + rsqrt/recip
    bytes_accessed = sum(a.size * a.dtype.itemsize for a in operands) + Lq * N * E * 4
    cost = pl.CostEstimate(flops=num_layers * flops_per_layer,
                           transcendentals=transcendentals,
                           bytes_accessed=bytes_accessed)

    return pl.pallas_call(
        cross_transformer_kernel,
        out_shape=jax.ShapeDtypeStruct((Lq, N, E), query.dtype),
        grid=grid,
        in_specs=in_specs,
        out_specs=pl.BlockSpec((Lq, block_n, E), lambda b: (0, b, 0)),
        compiler_params=pltpu.CompilerParams(
            dimension_semantics=("parallel",)),
        cost_estimate=cost,
    )(*operands)


# ------------------------- pure-JAX reference (PyTorch semantics) -------------------------

def reference_cross_block(q, k, v, p, num_heads):
    Lq, N, E = q.shape
    Lk = k.shape[0]
    hd = E // num_heads

    def ln(x, g, b):
        mu = jnp.mean(x, axis=-1, keepdims=True)
        var = jnp.mean((x - mu) ** 2, axis=-1, keepdims=True)
        return (x - mu) / jnp.sqrt(var + 1e-5) * g + b

    res = q
    qn = ln(q, p["ln1_g"], p["ln1_b"])
    qq = qn @ p["wq"].T + p["bq"]
    kk = k @ p["wk"].T + p["bk"]
    vv = v @ p["wv"].T + p["bv"]

    def split(t, L):                      # (L,N,E) -> (N,H,L,hd)
        return jnp.transpose(t.reshape(L, N, num_heads, hd), (1, 2, 0, 3))

    qh = split(qq, Lq) * (1.0 / math.sqrt(hd))
    kh = split(kk, Lk)
    vh = split(vv, Lk)
    s = jnp.einsum("nhqd,nhkd->nhqk", qh, kh)
    pw = jax.nn.softmax(s, axis=-1)
    o = jnp.einsum("nhqk,nhkd->nhqd", pw, vh)
    o = jnp.transpose(o, (2, 0, 1, 3)).reshape(Lq, N, E)
    attn = o @ p["wo"].T + p["bo"]
    x1 = attn + res
    x2 = ln(x1, p["ln2_g"], p["ln2_b"])
    h = jnp.maximum(x2 @ p["w1"].T + p["b1"], 0.0)
    y = h @ p["w2"].T + p["b2"]
    return x1 + y


def init_layer_params(key, E, M):
    ks = jax.random.split(key, 16)
    lim_in = math.sqrt(6.0 / (4 * E))      # xavier_uniform on (3E, E) in_proj
    lim_o = math.sqrt(1.0 / E)

    def u(kk, shape, lim):
        return jax.random.uniform(kk, shape, jnp.float32, -lim, lim)

    def small(kk, shape):
        return 0.1 * jax.random.normal(kk, shape, jnp.float32)

    return {
        "ln1_g": 1.0 + small(ks[0], (E,)), "ln1_b": small(ks[1], (E,)),
        "wq": u(ks[2], (E, E), lim_in), "bq": small(ks[3], (E,)),
        "wk": u(ks[4], (E, E), lim_in), "bk": small(ks[5], (E,)),
        "wv": u(ks[6], (E, E), lim_in), "bv": small(ks[7], (E,)),
        "wo": u(ks[8], (E, E), lim_o),  "bo": small(ks[9], (E,)),
        "ln2_g": 1.0 + small(ks[10], (E,)), "ln2_b": small(ks[11], (E,)),
        "w1": jax.random.normal(ks[12], (M, E), jnp.float32) * math.sqrt(2.0 / E),
        "b1": small(ks[13], (M,)),
        "w2": jax.random.normal(ks[14], (E, M), jnp.float32) * math.sqrt(2.0 / M),
        "b2": small(ks[15], (E,)),
    }


if __name__ == "__main__":
    # query: [1, n_voxels, C], key/value: [n_imgs-1, n_voxels, C]
    Lq, Lk, N, E, H, M = 1, 7, 64, 32, 4, 64
    num_layers = 2

    root = jax.random.PRNGKey(0)
    kq, kk, kv, kp = jax.random.split(root, 4)
    query = jax.random.normal(kq, (Lq, N, E), jnp.float32)
    key_feats = jax.random.normal(kk, (Lk, N, E), jnp.float32)
    value_feats = jax.random.normal(kv, (Lk, N, E), jnp.float32)
    layers = [init_layer_params(k, E, M) for k in jax.random.split(kp, num_layers)]

    out = cross_transformer(query, key_feats, value_feats, layers, H)  # block_n=N, grid=(1,)
    out = jax.block_until_ready(out)

    ref = query
    for p in layers:
        ref = reference_cross_block(ref, key_feats, value_feats, p, H)

    assert out.shape == (Lq, N, E)
    max_err = float(jnp.max(jnp.abs(out - ref)))
    # Default (bf16-pass) MXU precision is used on both sides per perf guidance, so allow a
    # slightly looser tolerance than pure-f32 would need.
    assert jnp.allclose(out, ref, atol=1e-2, rtol=1e-2), \
        f"mismatch vs reference, max|err|={max_err}"
    print("KERNEL_OK")
</pallas_src>

<mosaic_0001>
module attributes {stable_mosaic.version = 11 : i64} {
  func.func @cross_transformer_kernel(%arg0: i32, %arg1: memref<1x64x32xf32, #tpu.memory_space<vmem>>, %arg2: memref<7x64x32xf32, #tpu.memory_space<vmem>>, %arg3: memref<7x64x32xf32, #tpu.memory_space<vmem>>, %arg4: memref<32x32xf32, #tpu.memory_space<vmem>>, %arg5: memref<2x1x32xf32, #tpu.memory_space<vmem>>, %arg6: memref<2x1x32xf32, #tpu.memory_space<vmem>>, %arg7: memref<2x32x32xf32, #tpu.memory_space<vmem>>, %arg8: memref<2x32x32xf32, #tpu.memory_space<vmem>>, %arg9: memref<2x32x32xf32, #tpu.memory_space<vmem>>, %arg10: memref<2x1x32xf32, #tpu.memory_space<vmem>>, %arg11: memref<2x1x32xf32, #tpu.memory_space<vmem>>, %arg12: memref<2x1x32xf32, #tpu.memory_space<vmem>>, %arg13: memref<2x32x32xf32, #tpu.memory_space<vmem>>, %arg14: memref<2x1x32xf32, #tpu.memory_space<vmem>>, %arg15: memref<2x1x32xf32, #tpu.memory_space<vmem>>, %arg16: memref<2x1x32xf32, #tpu.memory_space<vmem>>, %arg17: memref<2x32x64xf32, #tpu.memory_space<vmem>>, %arg18: memref<2x1x64xf32, #tpu.memory_space<vmem>>, %arg19: memref<2x64x32xf32, #tpu.memory_space<vmem>>, %arg20: memref<2x1x32xf32, #tpu.memory_space<vmem>>, %arg21: memref<1x64x32xf32, #tpu.memory_space<vmem>>) attributes {dimension_semantics = [#tpu.dimension_semantics<parallel>], iteration_bounds = array<i64: 1>, scalar_prefetch = 0 : i64, scratch_operands = 0 : i64, tpu.core_type = #tpu.core_type<tc>, window_params = [{transform_indices = @transform_0, window_bounds = array<i64: 1, 64, 32>}, {transform_indices = @transform_1, window_bounds = array<i64: 7, 64, 32>}, {transform_indices = @transform_2, window_bounds = array<i64: 7, 64, 32>}, {pipeline_mode = #tpu.pipeline_mode<synchronous>, transform_indices = @transform_3, window_bounds = array<i64: 32, 32>}, {pipeline_mode = #tpu.pipeline_mode<synchronous>, transform_indices = @transform_4, window_bounds = array<i64: 2, 1, 32>}, {pipeline_mode = #tpu.pipeline_mode<synchronous>, transform_indices = @transform_5, window_bounds = array<i64: 2, 1, 32>}, {pipeline_mode = #tpu.pipeline_mode<synchronous>, transform_indices = @transform_6, window_bounds = array<i64: 2, 32, 32>}, {pipeline_mode = #tpu.pipeline_mode<synchronous>, transform_indices = @transform_7, window_bounds = array<i64: 2, 32, 32>}, {pipeline_mode = #tpu.pipeline_mode<synchronous>, transform_indices = @transform_8, window_bounds = array<i64: 2, 32, 32>}, {pipeline_mode = #tpu.pipeline_mode<synchronous>, transform_indices = @transform_9, window_bounds = array<i64: 2, 1, 32>}, {pipeline_mode = #tpu.pipeline_mode<synchronous>, transform_indices = @transform_10, window_bounds = array<i64: 2, 1, 32>}, {pipeline_mode = #tpu.pipeline_mode<synchronous>, transform_indices = @transform_11, window_bounds = array<i64: 2, 1, 32>}, {pipeline_mode = #tpu.pipeline_mode<synchronous>, transform_indices = @transform_12, window_bounds = array<i64: 2, 32, 32>}, {pipeline_mode = #tpu.pipeline_mode<synchronous>, transform_indices = @transform_13, window_bounds = array<i64: 2, 1, 32>}, {pipeline_mode = #tpu.pipeline_mode<synchronous>, transform_indices = @transform_14, window_bounds = array<i64: 2, 1, 32>}, {pipeline_mode = #tpu.pipeline_mode<synchronous>, transform_indices = @transform_15, window_bounds = array<i64: 2, 1, 32>}, {pipeline_mode = #tpu.pipeline_mode<synchronous>, transform_indices = @transform_16, window_bounds = array<i64: 2, 32, 64>}, {pipeline_mode = #tpu.pipeline_mode<synchronous>, transform_indices = @transform_17, window_bounds = array<i64: 2, 1, 64>}, {pipeline_mode = #tpu.pipeline_mode<synchronous>, transform_indices = @transform_18, window_bounds = array<i64: 2, 64, 32>}, {pipeline_mode = #tpu.pipeline_mode<synchronous>, transform_indices = @transform_19, window_bounds = array<i64: 2, 1, 32>}, {transform_indices = @transform_20, window_bounds = array<i64: 1, 64, 32>}]} {
    %c0 = arith.constant 0 : index
    %c0_0 = arith.constant 0 : index
    %c0_1 = arith.constant 0 : index
    %0 = vector.load %arg1[%c0, %c0_0, %c0_1] : memref<1x64x32xf32, #tpu.memory_space<vmem>>, vector<1x64x32xf32>
    %c0_2 = arith.constant 0 : index
    %c0_3 = arith.constant 0 : index
    %c0_4 = arith.constant 0 : index
    %1 = vector.load %arg2[%c0_2, %c0_3, %c0_4] : memref<7x64x32xf32, #tpu.memory_space<vmem>>, vector<7x64x32xf32>
    %c0_5 = arith.constant 0 : index
    %c0_6 = arith.constant 0 : index
    %c0_7 = arith.constant 0 : index
    %2 = vector.load %arg3[%c0_5, %c0_6, %c0_7] : memref<7x64x32xf32, #tpu.memory_space<vmem>>, vector<7x64x32xf32>
    %c0_8 = arith.constant 0 : index
    %c0_9 = arith.constant 0 : index
    %3 = vector.load %arg4[%c0_8, %c0_9] : memref<32x32xf32, #tpu.memory_space<vmem>>, vector<32x32xf32>
    %4 = vector.shape_cast %1 : vector<7x64x32xf32> to vector<448x32xf32>
    %5 = vector.shape_cast %2 : vector<7x64x32xf32> to vector<448x32xf32>
    %c0_10 = arith.constant 0 : index
    %c0_11 = arith.constant 0 : index
    %c0_12 = arith.constant 0 : index
    %6 = vector.load %arg5[%c0_10, %c0_11, %c0_12] : memref<2x1x32xf32, #tpu.memory_space<vmem>>, vector<1x1x32xf32>
    %7 = vector.shape_cast %6 : vector<1x1x32xf32> to vector<1x32xf32>
    %c0_13 = arith.constant 0 : index
    %c0_14 = arith.constant 0 : index
    %c0_15 = arith.constant 0 : index
    %8 = vector.load %arg6[%c0_13, %c0_14, %c0_15] : memref<2x1x32xf32, #tpu.memory_space<vmem>>, vector<1x1x32xf32>
    %9 = vector.shape_cast %8 : vector<1x1x32xf32> to vector<1x32xf32>
    %cst = arith.constant dense<0.000000e+00> : vector<1x64xf32>
    %10 = vector.multi_reduction <add>, %0, %cst [2] : vector<1x64x32xf32> to vector<1x64xf32>
    %11 = vector.shape_cast %10 : vector<1x64xf32> to vector<1x64x1xf32>
    %cst_16 = arith.constant 3.200000e+01 : f32
    %12 = vector.broadcast %cst_16 : f32 to vector<1x64x1xf32>
    %13 = arith.divf %11, %12 : vector<1x64x1xf32>
    %14 = vector.broadcast %13 : vector<1x64x1xf32> to vector<1x64x32xf32>
    %15 = arith.subf %0, %14 : vector<1x64x32xf32>
    %16 = arith.mulf %15, %15 : vector<1x64x32xf32>
    %cst_17 = arith.constant dense<0.000000e+00> : vector<1x64xf32>
    %17 = vector.multi_reduction <add>, %16, %cst_17 [2] : vector<1x64x32xf32> to vector<1x64xf32>
    %18 = vector.shape_cast %17 : vector<1x64xf32> to vector<1x64x1xf32>
    %cst_18 = arith.constant 3.200000e+01 : f32
    %19 = vector.broadcast %cst_18 : f32 to vector<1x64x1xf32>
    %20 = arith.divf %18, %19 : vector<1x64x1xf32>
    %21 = vector.broadcast %13 : vector<1x64x1xf32> to vector<1x64x32xf32>
    %22 = arith.subf %0, %21 : vector<1x64x32xf32>
    %cst_19 = arith.constant 9.99999974E-6 : f32
    %23 = vector.broadcast %cst_19 : f32 to vector<1x64x1xf32>
    %24 = arith.addf %20, %23 : vector<1x64x1xf32>
    %25 = math.rsqrt %24 : vector<1x64x1xf32>
    %26 = vector.broadcast %25 : vector<1x64x1xf32> to vector<1x64x32xf32>
    %27 = arith.mulf %22, %26 : vector<1x64x32xf32>
    %28 = vector.shape_cast %7 : vector<1x32xf32> to vector<1x1x32xf32>
    %29 = vector.broadcast %28 : vector<1x1x32xf32> to vector<1x64x32xf32>
    %30 = arith.mulf %27, %29 : vector<1x64x32xf32>
    %31 = vector.shape_cast %9 : vector<1x32xf32> to vector<1x1x32xf32>
    %32 = vector.broadcast %31 : vector<1x1x32xf32> to vector<1x64x32xf32>
    %33 = arith.addf %30, %32 : vector<1x64x32xf32>
    %34 = vector.shape_cast %33 : vector<1x64x32xf32> to vector<64x32xf32>
    %c0_20 = arith.constant 0 : index
    %c0_21 = arith.constant 0 : index
    %c0_22 = arith.constant 0 : index
    %35 = vector.load %arg7[%c0_20, %c0_21, %c0_22] : memref<2x32x32xf32, #tpu.memory_space<vmem>>, vector<1x32x32xf32>
    %36 = vector.shape_cast %35 : vector<1x32x32xf32> to vector<32x32xf32>
    %cst_23 = arith.constant dense<0.000000e+00> : vector<64x32xf32>
    %37 = tpu.matmul %34, %36, %cst_23 {dimension_numbers = #tpu.dot_dimension_numbers<[1], [0], [0], [1], [0, 0, 1, 1], [], []>} : vector<64x32xf32>, vector<32x32xf32>, vector<64x32xf32> -> vector<64x32xf32>
    %c0_24 = arith.constant 0 : index
    %c0_25 = arith.constant 0 : index
    %c0_26 = arith.constant 0 : index
    %38 = vector.load %arg10[%c0_24, %c0_25, %c0_26] : memref<2x1x32xf32, #tpu.memory_space<vmem>>, vector<1x1x32xf32>
    %39 = vector.shape_cast %38 : vector<1x1x32xf32> to vector<1x32xf32>
    %40 = vector.broadcast %39 : vector<1x32xf32> to vector<64x32xf32>
    %41 = arith.addf %37, %40 : vector<64x32xf32>
    %c0_27 = arith.constant 0 : index
    %c0_28 = arith.constant 0 : index
    %c0_29 = arith.constant 0 : index
    %42 = vector.load %arg8[%c0_27, %c0_28, %c0_29] : memref<2x32x32xf32, #tpu.memory_space<vmem>>, vector<1x32x32xf32>
    %43 = vector.shape_cast %42 : vector<1x32x32xf32> to vector<32x32xf32>
    %cst_30 = arith.constant dense<0.000000e+00> : vector<448x32xf32>
    %44 = tpu.matmul %4, %43, %cst_30 {dimension_numbers = #tpu.dot_dimension_numbers<[1], [0], [0], [1], [0, 0, 1, 1], [], []>} : vector<448x32xf32>, vector<32x32xf32>, vector<448x32xf32> -> vector<448x32xf32>
    %c0_31 = arith.constant 0 : index
    %c0_32 = arith.constant 0 : index
    %c0_33 = arith.constant 0 : index
    %45 = vector.load %arg11[%c0_31, %c0_32, %c0_33] : memref<2x1x32xf32, #tpu.memory_space<vmem>>, vector<1x1x32xf32>
    %46 = vector.shape_cast %45 : vector<1x1x32xf32> to vector<1x32xf32>
    %47 = vector.broadcast %46 : vector<1x32xf32> to vector<448x32xf32>
    %48 = arith.addf %44, %47 : vector<448x32xf32>
    %c0_34 = arith.constant 0 : index
    %c0_35 = arith.constant 0 : index
    %c0_36 = arith.constant 0 : index
    %49 = vector.load %arg9[%c0_34, %c0_35, %c0_36] : memref<2x32x32xf32, #tpu.memory_space<vmem>>, vector<1x32x32xf32>
    %50 = vector.shape_cast %49 : vector<1x32x32xf32> to vector<32x32xf32>
    %cst_37 = arith.constant dense<0.000000e+00> : vector<448x32xf32>
    %51 = tpu.matmul %5, %50, %cst_37 {dimension_numbers = #tpu.dot_dimension_numbers<[1], [0], [0], [1], [0, 0, 1, 1], [], []>} : vector<448x32xf32>, vector<32x32xf32>, vector<448x32xf32> -> vector<448x32xf32>
    %c0_38 = arith.constant 0 : index
    %c0_39 = arith.constant 0 : index
    %c0_40 = arith.constant 0 : index
    %52 = vector.load %arg12[%c0_38, %c0_39, %c0_40] : memref<2x1x32xf32, #tpu.memory_space<vmem>>, vector<1x1x32xf32>
    %53 = vector.shape_cast %52 : vector<1x1x32xf32> to vector<1x32xf32>
    %54 = vector.broadcast %53 : vector<1x32xf32> to vector<448x32xf32>
    %55 = arith.addf %51, %54 : vector<448x32xf32>
    %56 = vector.shape_cast %41 : vector<64x32xf32> to vector<1x64x32xf32>
    %57 = vector.shape_cast %48 : vector<448x32xf32> to vector<7x64x32xf32>
    %58 = vector.shape_cast %55 : vector<448x32xf32> to vector<7x64x32xf32>
    %59 = vector.shape_cast %56 : vector<1x64x32xf32> to vector<64x32xf32>
    %60 = vector.shape_cast %59 : vector<64x32xf32> to vector<1x64x32xf32>
    %61 = vector.broadcast %60 : vector<1x64x32xf32> to vector<7x64x32xf32>
    %62 = arith.mulf %57, %61 : vector<7x64x32xf32>
    %63 = vector.shape_cast %62 : vector<7x64x32xf32> to vector<448x32xf32>
    %cst_41 = arith.constant dense<0.000000e+00> : vector<448x32xf32>
    %64 = tpu.matmul %63, %3, %cst_41 {dimension_numbers = #tpu.dot_dimension_numbers<[1], [0], [0], [1], [0, 0, 1, 1], [], []>} : vector<448x32xf32>, vector<32x32xf32>, vector<448x32xf32> -> vector<448x32xf32>
    %65 = vector.shape_cast %64 : vector<448x32xf32> to vector<7x64x32xf32>
    %cst_42 = arith.constant dense<0xFF800000> : vector<64x32xf32>
    %66 = vector.multi_reduction <maximumf>, %65, %cst_42 [0] : vector<7x64x32xf32> to vector<64x32xf32>
    %67 = vector.shape_cast %66 : vector<64x32xf32> to vector<1x64x32xf32>
    %68 = vector.broadcast %67 : vector<1x64x32xf32> to vector<7x64x32xf32>
    %69 = arith.subf %65, %68 : vector<7x64x32xf32>
    %70 = math.exp %69 : vector<7x64x32xf32>
    %cst_43 = arith.constant dense<0.000000e+00> : vector<64x32xf32>
    %71 = vector.multi_reduction <add>, %70, %cst_43 [0] : vector<7x64x32xf32> to vector<64x32xf32>
    %72 = vector.shape_cast %71 : vector<64x32xf32> to vector<1x64x32xf32>
    %73 = tpu.reciprocal %72 {approx = true} : vector<1x64x32xf32> -> vector<1x64x32xf32>
    %74 = vector.broadcast %73 : vector<1x64x32xf32> to vector<7x64x32xf32>
    %75 = arith.mulf %70, %74 : vector<7x64x32xf32>
    %76 = arith.mulf %75, %58 : vector<7x64x32xf32>
    %cst_44 = arith.constant dense<0.000000e+00> : vector<64x32xf32>
    %77 = vector.multi_reduction <add>, %76, %cst_44 [0] : vector<7x64x32xf32> to vector<64x32xf32>
    %c0_45 = arith.constant 0 : index
    %c0_46 = arith.constant 0 : index
    %c0_47 = arith.constant 0 : index
    %78 = vector.load %arg13[%c0_45, %c0_46, %c0_47] : memref<2x32x32xf32, #tpu.memory_space<vmem>>, vector<1x32x32xf32>
    %79 = vector.shape_cast %78 : vector<1x32x32xf32> to vector<32x32xf32>
    %cst_48 = arith.constant dense<0.000000e+00> : vector<64x32xf32>
    %80 = tpu.matmul %77, %79, %cst_48 {dimension_numbers = #tpu.dot_dimension_numbers<[1], [0], [0], [1], [0, 0, 1, 1], [], []>} : vector<64x32xf32>, vector<32x32xf32>, vector<64x32xf32> -> vector<64x32xf32>
    %c0_49 = arith.constant 0 : index
    %c0_50 = arith.constant 0 : index
    %c0_51 = arith.constant 0 : index
    %81 = vector.load %arg14[%c0_49, %c0_50, %c0_51] : memref<2x1x32xf32, #tpu.memory_space<vmem>>, vector<1x1x32xf32>
    %82 = vector.shape_cast %81 : vector<1x1x32xf32> to vector<1x32xf32>
    %83 = vector.broadcast %82 : vector<1x32xf32> to vector<64x32xf32>
    %84 = arith.addf %80, %83 : vector<64x32xf32>
    %85 = vector.shape_cast %84 : vector<64x32xf32> to vector<1x64x32xf32>
    %86 = arith.addf %0, %85 : vector<1x64x32xf32>
    %c0_52 = arith.constant 0 : index
    %c0_53 = arith.constant 0 : index
    %c0_54 = arith.constant 0 : index
    %87 = vector.load %arg15[%c0_52, %c0_53, %c0_54] : memref<2x1x32xf32, #tpu.memory_space<vmem>>, vector<1x1x32xf32>
    %88 = vector.shape_cast %87 : vector<1x1x32xf32> to vector<1x32xf32>
    %c0_55 = arith.constant 0 : index
    %c0_56 = arith.constant 0 : index
    %c0_57 = arith.constant 0 : index
    %89 = vector.load %arg16[%c0_55, %c0_56, %c0_57] : memref<2x1x32xf32, #tpu.memory_space<vmem>>, vector<1x1x32xf32>
    %90 = vector.shape_cast %89 : vector<1x1x32xf32> to vector<1x32xf32>
    %cst_58 = arith.constant dense<0.000000e+00> : vector<1x64xf32>
    %91 = vector.multi_reduction <add>, %86, %cst_58 [2] : vector<1x64x32xf32> to vector<1x64xf32>
    %92 = vector.shape_cast %91 : vector<1x64xf32> to vector<1x64x1xf32>
    %cst_59 = arith.constant 3.200000e+01 : f32
    %93 = vector.broadcast %cst_59 : f32 to vector<1x64x1xf32>
    %94 = arith.divf %92, %93 : vector<1x64x1xf32>
    %95 = vector.broadcast %94 : vector<1x64x1xf32> to vector<1x64x32xf32>
    %96 = arith.subf %86, %95 : vector<1x64x32xf32>
    %97 = arith.mulf %96, %96 : vector<1x64x32xf32>
    %cst_60 = arith.constant dense<0.000000e+00> : vector<1x64xf32>
    %98 = vector.multi_reduction <add>, %97, %cst_60 [2] : vector<1x64x32xf32> to vector<1x64xf32>
    %99 = vector.shape_cast %98 : vector<1x64xf32> to vector<1x64x1xf32>
    %cst_61 = arith.constant 3.200000e+01 : f32
    %100 = vector.broadcast %cst_61 : f32 to vector<1x64x1xf32>
    %101 = arith.divf %99, %100 : vector<1x64x1xf32>
    %102 = vector.broadcast %94 : vector<1x64x1xf32> to vector<1x64x32xf32>
    %103 = arith.subf %86, %102 : vector<1x64x32xf32>
    %cst_62 = arith.constant 9.99999974E-6 : f32
    %104 = vector.broadcast %cst_62 : f32 to vector<1x64x1xf32>
    %105 = arith.addf %101, %104 : vector<1x64x1xf32>
    %106 = math.rsqrt %105 : vector<1x64x1xf32>
    %107 = vector.broadcast %106 : vector<1x64x1xf32> to vector<1x64x32xf32>
    %108 = arith.mulf %103, %107 : vector<1x64x32xf32>
    %109 = vector.shape_cast %88 : vector<1x32xf32> to vector<1x1x32xf32>
    %110 = vector.broadcast %109 : vector<1x1x32xf32> to vector<1x64x32xf32>
    %111 = arith.mulf %108, %110 : vector<1x64x32xf32>
    %112 = vector.shape_cast %90 : vector<1x32xf32> to vector<1x1x32xf32>
    %113 = vector.broadcast %112 : vector<1x1x32xf32> to vector<1x64x32xf32>
    %114 = arith.addf %111, %113 : vector<1x64x32xf32>
    %115 = vector.shape_cast %114 : vector<1x64x32xf32> to vector<64x32xf32>
    %c0_63 = arith.constant 0 : index
    %c0_64 = arith.constant 0 : index
    %c0_65 = arith.constant 0 : index
    %116 = vector.load %arg17[%c0_63, %c0_64, %c0_65] : memref<2x32x64xf32, #tpu.memory_space<vmem>>, vector<1x32x64xf32>
    %117 = vector.shape_cast %116 : vector<1x32x64xf32> to vector<32x64xf32>
    %cst_66 = arith.constant dense<0.000000e+00> : vector<64x64xf32>
    %118 = tpu.matmul %115, %117, %cst_66 {dimension_numbers = #tpu.dot_dimension_numbers<[1], [0], [0], [1], [0, 0, 1, 1], [], []>} : vector<64x32xf32>, vector<32x64xf32>, vector<64x64xf32> -> vector<64x64xf32>
    %c0_67 = arith.constant 0 : index
    %c0_68 = arith.constant 0 : index
    %c0_69 = arith.constant 0 : index
    %119 = vector.load %arg18[%c0_67, %c0_68, %c0_69] : memref<2x1x64xf32, #tpu.memory_space<vmem>>, vector<1x1x64xf32>
    %120 = vector.shape_cast %119 : vector<1x1x64xf32> to vector<1x64xf32>
    %121 = vector.broadcast %120 : vector<1x64xf32> to vector<64x64xf32>
    %122 = arith.addf %118, %121 : vector<64x64xf32>
    %cst_70 = arith.constant 0.000000e+00 : f32
    %123 = vector.broadcast %cst_70 : f32 to vector<64x64xf32>
    %124 = arith.maximumf %122, %123 : vector<64x64xf32>
    %c0_71 = arith.constant 0 : index
    %c0_72 = arith.constant 0 : index
    %c0_73 = arith.constant 0 : index
    %125 = vector.load %arg19[%c0_71, %c0_72, %c0_73] : memref<2x64x32xf32, #tpu.memory_space<vmem>>, vector<1x64x32xf32>
    %126 = vector.shape_cast %125 : vector<1x64x32xf32> to vector<64x32xf32>
    %cst_74 = arith.constant dense<0.000000e+00> : vector<64x32xf32>
    %127 = tpu.matmul %124, %126, %cst_74 {dimension_numbers = #tpu.dot_dimension_numbers<[1], [0], [0], [1], [0, 0, 1, 1], [], []>} : vector<64x64xf32>, vector<64x32xf32>, vector<64x32xf32> -> vector<64x32xf32>
    %c0_75 = arith.constant 0 : index
    %c0_76 = arith.constant 0 : index
    %c0_77 = arith.constant 0 : index
    %128 = vector.load %arg20[%c0_75, %c0_76, %c0_77] : memref<2x1x32xf32, #tpu.memory_space<vmem>>, vector<1x1x32xf32>
    %129 = vector.shape_cast %128 : vector<1x1x32xf32> to vector<1x32xf32>
    %130 = vector.broadcast %129 : vector<1x32xf32> to vector<64x32xf32>
    %131 = arith.addf %127, %130 : vector<64x32xf32>
    %132 = vector.shape_cast %131 : vector<64x32xf32> to vector<1x64x32xf32>
    %133 = arith.addf %86, %132 : vector<1x64x32xf32>
    %c1 = arith.constant 1 : index
    %c0_78 = arith.constant 0 : index
    %c0_79 = arith.constant 0 : index
    %134 = vector.load %arg5[%c1, %c0_78, %c0_79] : memref<2x1x32xf32, #tpu.memory_space<vmem>>, vector<1x1x32xf32>
    %135 = vector.shape_cast %134 : vector<1x1x32xf32> to vector<1x32xf32>
    %c1_80 = arith.constant 1 : index
    %c0_81 = arith.constant 0 : index
    %c0_82 = arith.constant 0 : index
    %136 = vector.load %arg6[%c1_80, %c0_81, %c0_82] : memref<2x1x32xf32, #tpu.memory_space<vmem>>, vector<1x1x32xf32>
    %137 = vector.shape_cast %136 : vector<1x1x32xf32> to vector<1x32xf32>
    %cst_83 = arith.constant dense<0.000000e+00> : vector<1x64xf32>
    %138 = vector.multi_reduction <add>, %133, %cst_83 [2] : vector<1x64x32xf32> to vector<1x64xf32>
    %139 = vector.shape_cast %138 : vector<1x64xf32> to vector<1x64x1xf32>
    %cst_84 = arith.constant 3.200000e+01 : f32
    %140 = vector.broadcast %cst_84 : f32 to vector<1x64x1xf32>
    %141 = arith.divf %139, %140 : vector<1x64x1xf32>
    %142 = vector.broadcast %141 : vector<1x64x1xf32> to vector<1x64x32xf32>
    %143 = arith.subf %133, %142 : vector<1x64x32xf32>
    %144 = arith.mulf %143, %143 : vector<1x64x32xf32>
    %cst_85 = arith.constant dense<0.000000e+00> : vector<1x64xf32>
    %145 = vector.multi_reduction <add>, %144, %cst_85 [2] : vector<1x64x32xf32> to vector<1x64xf32>
    %146 = vector.shape_cast %145 : vector<1x64xf32> to vector<1x64x1xf32>
    %cst_86 = arith.constant 3.200000e+01 : f32
    %147 = vector.broadcast %cst_86 : f32 to vector<1x64x1xf32>
    %148 = arith.divf %146, %147 : vector<1x64x1xf32>
    %149 = vector.broadcast %141 : vector<1x64x1xf32> to vector<1x64x32xf32>
    %150 = arith.subf %133, %149 : vector<1x64x32xf32>
    %cst_87 = arith.constant 9.99999974E-6 : f32
    %151 = vector.broadcast %cst_87 : f32 to vector<1x64x1xf32>
    %152 = arith.addf %148, %151 : vector<1x64x1xf32>
    %153 = math.rsqrt %152 : vector<1x64x1xf32>
    %154 = vector.broadcast %153 : vector<1x64x1xf32> to vector<1x64x32xf32>
    %155 = arith.mulf %150, %154 : vector<1x64x32xf32>
    %156 = vector.shape_cast %135 : vector<1x32xf32> to vector<1x1x32xf32>
    %157 = vector.broadcast %156 : vector<1x1x32xf32> to vector<1x64x32xf32>
    %158 = arith.mulf %155, %157 : vector<1x64x32xf32>
    %159 = vector.shape_cast %137 : vector<1x32xf32> to vector<1x1x32xf32>
    %160 = vector.broadcast %159 : vector<1x1x32xf32> to vector<1x64x32xf32>
    %161 = arith.addf %158, %160 : vector<1x64x32xf32>
    %162 = vector.shape_cast %161 : vector<1x64x32xf32> to vector<64x32xf32>
    %c1_88 = arith.constant 1 : index
    %c0_89 = arith.constant 0 : index
    %c0_90 = arith.constant 0 : index
    %163 = vector.load %arg7[%c1_88, %c0_89, %c0_90] : memref<2x32x32xf32, #tpu.memory_space<vmem>>, vector<1x32x32xf32>
    %164 = vector.shape_cast %163 : vector<1x32x32xf32> to vector<32x32xf32>
    %cst_91 = arith.constant dense<0.000000e+00> : vector<64x32xf32>
    %165 = tpu.matmul %162, %164, %cst_91 {dimension_numbers = #tpu.dot_dimension_numbers<[1], [0], [0], [1], [0, 0, 1, 1], [], []>} : vector<64x32xf32>, vector<32x32xf32>, vector<64x32xf32> -> vector<64x32xf32>
    %c1_92 = arith.constant 1 : index
    %c0_93 = arith.constant 0 : index
    %c0_94 = arith.constant 0 : index
    %166 = vector.load %arg10[%c1_92, %c0_93, %c0_94] : memref<2x1x32xf32, #tpu.memory_space<vmem>>, vector<1x1x32xf32>
    %167 = vector.shape_cast %166 : vector<1x1x32xf32> to vector<1x32xf32>
    %168 = vector.broadcast %167 : vector<1x32xf32> to vector<64x32xf32>
    %169 = arith.addf %165, %168 : vector<64x32xf32>
    %c1_95 = arith.constant 1 : index
    %c0_96 = arith.constant 0 : index
    %c0_97 = arith.constant 0 : index
    %170 = vector.load %arg8[%c1_95, %c0_96, %c0_97] : memref<2x32x32xf32, #tpu.memory_space<vmem>>, vector<1x32x32xf32>
    %171 = vector.shape_cast %170 : vector<1x32x32xf32> to vector<32x32xf32>
    %cst_98 = arith.constant dense<0.000000e+00> : vector<448x32xf32>
    %172 = tpu.matmul %4, %171, %cst_98 {dimension_numbers = #tpu.dot_dimension_numbers<[1], [0], [0], [1], [0, 0, 1, 1], [], []>} : vector<448x32xf32>, vector<32x32xf32>, vector<448x32xf32> -> vector<448x32xf32>
    %c1_99 = arith.constant 1 : index
    %c0_100 = arith.constant 0 : index
    %c0_101 = arith.constant 0 : index
    %173 = vector.load %arg11[%c1_99, %c0_100, %c0_101] : memref<2x1x32xf32, #tpu.memory_space<vmem>>, vector<1x1x32xf32>
    %174 = vector.shape_cast %173 : vector<1x1x32xf32> to vector<1x32xf32>
    %175 = vector.broadcast %174 : vector<1x32xf32> to vector<448x32xf32>
    %176 = arith.addf %172, %175 : vector<448x32xf32>
    %c1_102 = arith.constant 1 : index
    %c0_103 = arith.constant 0 : index
    %c0_104 = arith.constant 0 : index
    %177 = vector.load %arg9[%c1_102, %c0_103, %c0_104] : memref<2x32x32xf32, #tpu.memory_space<vmem>>, vector<1x32x32xf32>
    %178 = vector.shape_cast %177 : vector<1x32x32xf32> to vector<32x32xf32>
    %cst_105 = arith.constant dense<0.000000e+00> : vector<448x32xf32>
    %179 = tpu.matmul %5, %178, %cst_105 {dimension_numbers = #tpu.dot_dimension_numbers<[1], [0], [0], [1], [0, 0, 1, 1], [], []>} : vector<448x32xf32>, vector<32x32xf32>, vector<448x32xf32> -> vector<448x32xf32>
    %c1_106 = arith.constant 1 : index
    %c0_107 = arith.constant 0 : index
    %c0_108 = arith.constant 0 : index
    %180 = vector.load %arg12[%c1_106, %c0_107, %c0_108] : memref<2x1x32xf32, #tpu.memory_space<vmem>>, vector<1x1x32xf32>
    %181 = vector.shape_cast %180 : vector<1x1x32xf32> to vector<1x32xf32>
    %182 = vector.broadcast %181 : vector<1x32xf32> to vector<448x32xf32>
    %183 = arith.addf %179, %182 : vector<448x32xf32>
    %184 = vector.shape_cast %169 : vector<64x32xf32> to vector<1x64x32xf32>
    %185 = vector.shape_cast %176 : vector<448x32xf32> to vector<7x64x32xf32>
    %186 = vector.shape_cast %183 : vector<448x32xf32> to vector<7x64x32xf32>
    %187 = vector.shape_cast %184 : vector<1x64x32xf32> to vector<64x32xf32>
    %188 = vector.shape_cast %187 : vector<64x32xf32> to vector<1x64x32xf32>
    %189 = vector.broadcast %188 : vector<1x64x32xf32> to vector<7x64x32xf32>
    %190 = arith.mulf %185, %189 : vector<7x64x32xf32>
    %191 = vector.shape_cast %190 : vector<7x64x32xf32> to vector<448x32xf32>
    %cst_109 = arith.constant dense<0.000000e+00> : vector<448x32xf32>
    %192 = tpu.matmul %191, %3, %cst_109 {dimension_numbers = #tpu.dot_dimension_numbers<[1], [0], [0], [1], [0, 0, 1, 1], [], []>} : vector<448x32xf32>, vector<32x32xf32>, vector<448x32xf32> -> vector<448x32xf32>
    %193 = vector.shape_cast %192 : vector<448x32xf32> to vector<7x64x32xf32>
    %cst_110 = arith.constant dense<0xFF800000> : vector<64x32xf32>
    %194 = vector.multi_reduction <maximumf>, %193, %cst_110 [0] : vector<7x64x32xf32> to vector<64x32xf32>
    %195 = vector.shape_cast %194 : vector<64x32xf32> to vector<1x64x32xf32>
    %196 = vector.broadcast %195 : vector<1x64x32xf32> to vector<7x64x32xf32>
    %197 = arith.subf %193, %196 : vector<7x64x32xf32>
    %198 = math.exp %197 : vector<7x64x32xf32>
    %cst_111 = arith.constant dense<0.000000e+00> : vector<64x32xf32>
    %199 = vector.multi_reduction <add>, %198, %cst_111 [0] : vector<7x64x32xf32> to vector<64x32xf32>
    %200 = vector.shape_cast %199 : vector<64x32xf32> to vector<1x64x32xf32>
    %201 = tpu.reciprocal %200 {approx = true} : vector<1x64x32xf32> -> vector<1x64x32xf32>
    %202 = vector.broadcast %201 : vector<1x64x32xf32> to vector<7x64x32xf32>
    %203 = arith.mulf %198, %202 : vector<7x64x32xf32>
    %204 = arith.mulf %203, %186 : vector<7x64x32xf32>
    %cst_112 = arith.constant dense<0.000000e+00> : vector<64x32xf32>
    %205 = vector.multi_reduction <add>, %204, %cst_112 [0] : vector<7x64x32xf32> to vector<64x32xf32>
    %c1_113 = arith.constant 1 : index
    %c0_114 = arith.constant 0 : index
    %c0_115 = arith.constant 0 : index
    %206 = vector.load %arg13[%c1_113, %c0_114, %c0_115] : memref<2x32x32xf32, #tpu.memory_space<vmem>>, vector<1x32x32xf32>
    %207 = vector.shape_cast %206 : vector<1x32x32xf32> to vector<32x32xf32>
    %cst_116 = arith.constant dense<0.000000e+00> : vector<64x32xf32>
    %208 = tpu.matmul %205, %207, %cst_116 {dimension_numbers = #tpu.dot_dimension_numbers<[1], [0], [0], [1], [0, 0, 1, 1], [], []>} : vector<64x32xf32>, vector<32x32xf32>, vector<64x32xf32> -> vector<64x32xf32>
    %c1_117 = arith.constant 1 : index
    %c0_118 = arith.constant 0 : index
    %c0_119 = arith.constant 0 : index
    %209 = vector.load %arg14[%c1_117, %c0_118, %c0_119] : memref<2x1x32xf32, #tpu.memory_space<vmem>>, vector<1x1x32xf32>
    %210 = vector.shape_cast %209 : vector<1x1x32xf32> to vector<1x32xf32>
    %211 = vector.broadcast %210 : vector<1x32xf32> to vector<64x32xf32>
    %212 = arith.addf %208, %211 : vector<64x32xf32>
    %213 = vector.shape_cast %212 : vector<64x32xf32> to vector<1x64x32xf32>
    %214 = arith.addf %133, %213 : vector<1x64x32xf32>
    %c1_120 = arith.constant 1 : index
    %c0_121 = arith.constant 0 : index
    %c0_122 = arith.constant 0 : index
    %215 = vector.load %arg15[%c1_120, %c0_121, %c0_122] : memref<2x1x32xf32, #tpu.memory_space<vmem>>, vector<1x1x32xf32>
    %216 = vector.shape_cast %215 : vector<1x1x32xf32> to vector<1x32xf32>
    %c1_123 = arith.constant 1 : index
    %c0_124 = arith.constant 0 : index
    %c0_125 = arith.constant 0 : index
    %217 = vector.load %arg16[%c1_123, %c0_124, %c0_125] : memref<2x1x32xf32, #tpu.memory_space<vmem>>, vector<1x1x32xf32>
    %218 = vector.shape_cast %217 : vector<1x1x32xf32> to vector<1x32xf32>
    %cst_126 = arith.constant dense<0.000000e+00> : vector<1x64xf32>
    %219 = vector.multi_reduction <add>, %214, %cst_126 [2] : vector<1x64x32xf32> to vector<1x64xf32>
    %220 = vector.shape_cast %219 : vector<1x64xf32> to vector<1x64x1xf32>
    %cst_127 = arith.constant 3.200000e+01 : f32
    %221 = vector.broadcast %cst_127 : f32 to vector<1x64x1xf32>
    %222 = arith.divf %220, %221 : vector<1x64x1xf32>
    %223 = vector.broadcast %222 : vector<1x64x1xf32> to vector<1x64x32xf32>
    %224 = arith.subf %214, %223 : vector<1x64x32xf32>
    %225 = arith.mulf %224, %224 : vector<1x64x32xf32>
    %cst_128 = arith.constant dense<0.000000e+00> : vector<1x64xf32>
    %226 = vector.multi_reduction <add>, %225, %cst_128 [2] : vector<1x64x32xf32> to vector<1x64xf32>
    %227 = vector.shape_cast %226 : vector<1x64xf32> to vector<1x64x1xf32>
    %cst_129 = arith.constant 3.200000e+01 : f32
    %228 = vector.broadcast %cst_129 : f32 to vector<1x64x1xf32>
    %229 = arith.divf %227, %228 : vector<1x64x1xf32>
    %230 = vector.broadcast %222 : vector<1x64x1xf32> to vector<1x64x32xf32>
    %231 = arith.subf %214, %230 : vector<1x64x32xf32>
    %cst_130 = arith.constant 9.99999974E-6 : f32
    %232 = vector.broadcast %cst_130 : f32 to vector<1x64x1xf32>
    %233 = arith.addf %229, %232 : vector<1x64x1xf32>
    %234 = math.rsqrt %233 : vector<1x64x1xf32>
    %235 = vector.broadcast %234 : vector<1x64x1xf32> to vector<1x64x32xf32>
    %236 = arith.mulf %231, %235 : vector<1x64x32xf32>
    %237 = vector.shape_cast %216 : vector<1x32xf32> to vector<1x1x32xf32>
    %238 = vector.broadcast %237 : vector<1x1x32xf32> to vector<1x64x32xf32>
    %239 = arith.mulf %236, %238 : vector<1x64x32xf32>
    %240 = vector.shape_cast %218 : vector<1x32xf32> to vector<1x1x32xf32>
    %241 = vector.broadcast %240 : vector<1x1x32xf32> to vector<1x64x32xf32>
    %242 = arith.addf %239, %241 : vector<1x64x32xf32>
    %243 = vector.shape_cast %242 : vector<1x64x32xf32> to vector<64x32xf32>
    %c1_131 = arith.constant 1 : index
    %c0_132 = arith.constant 0 : index
    %c0_133 = arith.constant 0 : index
    %244 = vector.load %arg17[%c1_131, %c0_132, %c0_133] : memref<2x32x64xf32, #tpu.memory_space<vmem>>, vector<1x32x64xf32>
    %245 = vector.shape_cast %244 : vector<1x32x64xf32> to vector<32x64xf32>
    %cst_134 = arith.constant dense<0.000000e+00> : vector<64x64xf32>
    %246 = tpu.matmul %243, %245, %cst_134 {dimension_numbers = #tpu.dot_dimension_numbers<[1], [0], [0], [1], [0, 0, 1, 1], [], []>} : vector<64x32xf32>, vector<32x64xf32>, vector<64x64xf32> -> vector<64x64xf32>
    %c1_135 = arith.constant 1 : index
    %c0_136 = arith.constant 0 : index
    %c0_137 = arith.constant 0 : index
    %247 = vector.load %arg18[%c1_135, %c0_136, %c0_137] : memref<2x1x64xf32, #tpu.memory_space<vmem>>, vector<1x1x64xf32>
    %248 = vector.shape_cast %247 : vector<1x1x64xf32> to vector<1x64xf32>
    %249 = vector.broadcast %248 : vector<1x64xf32> to vector<64x64xf32>
    %250 = arith.addf %246, %249 : vector<64x64xf32>
    %cst_138 = arith.constant 0.000000e+00 : f32
    %251 = vector.broadcast %cst_138 : f32 to vector<64x64xf32>
    %252 = arith.maximumf %250, %251 : vector<64x64xf32>
    %c1_139 = arith.constant 1 : index
    %c0_140 = arith.constant 0 : index
    %c0_141 = arith.constant 0 : index
    %253 = vector.load %arg19[%c1_139, %c0_140, %c0_141] : memref<2x64x32xf32, #tpu.memory_space<vmem>>, vector<1x64x32xf32>
    %254 = vector.shape_cast %253 : vector<1x64x32xf32> to vector<64x32xf32>
    %cst_142 = arith.constant dense<0.000000e+00> : vector<64x32xf32>
    %255 = tpu.matmul %252, %254, %cst_142 {dimension_numbers = #tpu.dot_dimension_numbers<[1], [0], [0], [1], [0, 0, 1, 1], [], []>} : vector<64x64xf32>, vector<64x32xf32>, vector<64x32xf32> -> vector<64x32xf32>
    %c1_143 = arith.constant 1 : index
    %c0_144 = arith.constant 0 : index
    %c0_145 = arith.constant 0 : index
    %256 = vector.load %arg20[%c1_143, %c0_144, %c0_145] : memref<2x1x32xf32, #tpu.memory_space<vmem>>, vector<1x1x32xf32>
    %257 = vector.shape_cast %256 : vector<1x1x32xf32> to vector<1x32xf32>
    %258 = vector.broadcast %257 : vector<1x32xf32> to vector<64x32xf32>
    %259 = arith.addf %255, %258 : vector<64x32xf32>
    %260 = vector.shape_cast %259 : vector<64x32xf32> to vector<1x64x32xf32>
    %261 = arith.addf %214, %260 : vector<1x64x32xf32>
    %c0_146 = arith.constant 0 : index
    %c0_147 = arith.constant 0 : index
    %c0_148 = arith.constant 0 : index
    %262 = vector.load %arg21[%c0_146, %c0_147, %c0_148] : memref<1x64x32xf32, #tpu.memory_space<vmem>>, vector<1x64x32xf32>
    tpu.vector_store %arg21[%c0_146, %c0_147, %c0_148], %261 {strides = array<i32>} : memref<1x64x32xf32, #tpu.memory_space<vmem>>, vector<1x64x32xf32>,
    return
  }
  func.func @transform_0(%arg0: i32) -> (i32, i32, i32) {
    %c0_i32 = arith.constant 0 : i32
    %c0_i32_0 = arith.constant 0 : i32
    %c0_i32_1 = arith.constant 0 : i32
    return %c0_i32, %arg0, %c0_i32_0 : i32, i32, i32
  }
  func.func @transform_1(%arg0: i32) -> (i32, i32, i32) {
    %c0_i32 = arith.constant 0 : i32
    %c0_i32_0 = arith.constant 0 : i32
    %c0_i32_1 = arith.constant 0 : i32
    return %c0_i32, %arg0, %c0_i32_0 : i32, i32, i32
  }
  func.func @transform_2(%arg0: i32) -> (i32, i32, i32) {
    %c0_i32 = arith.constant 0 : i32
    %c0_i32_0 = arith.constant 0 : i32
    %c0_i32_1 = arith.constant 0 : i32
    return %c0_i32, %arg0, %c0_i32_0 : i32, i32, i32
  }
  func.func @transform_3(%arg0: i32) -> (i32, i32) {
    %c0_i32 = arith.constant 0 : i32
    %c0_i32_0 = arith.constant 0 : i32
    %c0_i32_1 = arith.constant 0 : i32
    return %c0_i32, %c0_i32_0 : i32, i32
  }
  func.func @transform_4(%arg0: i32) -> (i32, i32, i32) {
    %c0_i32 = arith.constant 0 : i32
    %c0_i32_0 = arith.constant 0 : i32
    %c0_i32_1 = arith.constant 0 : i32
    %c0_i32_2 = arith.constant 0 : i32
    return %c0_i32, %c0_i32_0, %c0_i32_1 : i32, i32, i32
  }
  func.func @transform_5(%arg0: i32) -> (i32, i32, i32) {
    %c0_i32 = arith.constant 0 : i32
    %c0_i32_0 = arith.constant 0 : i32
    %c0_i32_1 = arith.constant 0 : i32
    %c0_i32_2 = arith.constant 0 : i32
    return %c0_i32, %c0_i32_0, %c0_i32_1 : i32, i32, i32
  }
  func.func @transform_6(%arg0: i32) -> (i32, i32, i32) {
    %c0_i32 = arith.constant 0 : i32
    %c0_i32_0 = arith.constant 0 : i32
    %c0_i32_1 = arith.constant 0 : i32
    %c0_i32_2 = arith.constant 0 : i32
    return %c0_i32, %c0_i32_0, %c0_i32_1 : i32, i32, i32
  }
  func.func @transform_7(%arg0: i32) -> (i32, i32, i32) {
    %c0_i32 = arith.constant 0 : i32
    %c0_i32_0 = arith.constant 0 : i32
    %c0_i32_1 = arith.constant 0 : i32
    %c0_i32_2 = arith.constant 0 : i32
    return %c0_i32, %c0_i32_0, %c0_i32_1 : i32, i32, i32
  }
  func.func @transform_8(%arg0: i32) -> (i32, i32, i32) {
    %c0_i32 = arith.constant 0 : i32
    %c0_i32_0 = arith.constant 0 : i32
    %c0_i32_1 = arith.constant 0 : i32
    %c0_i32_2 = arith.constant 0 : i32
    return %c0_i32, %c0_i32_0, %c0_i32_1 : i32, i32, i32
  }
  func.func @transform_9(%arg0: i32) -> (i32, i32, i32) {
    %c0_i32 = arith.constant 0 : i32
    %c0_i32_0 = arith.constant 0 : i32
    %c0_i32_1 = arith.constant 0 : i32
    %c0_i32_2 = arith.constant 0 : i32
    return %c0_i32, %c0_i32_0, %c0_i32_1 : i32, i32, i32
  }
  func.func @transform_10(%arg0: i32) -> (i32, i32, i32) {
    %c0_i32 = arith.constant 0 : i32
    %c0_i32_0 = arith.constant 0 : i32
    %c0_i32_1 = arith.constant 0 : i32
    %c0_i32_2 = arith.constant 0 : i32
    return %c0_i32, %c0_i32_0, %c0_i32_1 : i32, i32, i32
  }
  func.func @transform_11(%arg0: i32) -> (i32, i32, i32) {
    %c0_i32 = arith.constant 0 : i32
    %c0_i32_0 = arith.constant 0 : i32
    %c0_i32_1 = arith.constant 0 : i32
    %c0_i32_2 = arith.constant 0 : i32
    return %c0_i32, %c0_i32_0, %c0_i32_1 : i32, i32, i32
  }
  func.func @transform_12(%arg0: i32) -> (i32, i32, i32) {
    %c0_i32 = arith.constant 0 : i32
    %c0_i32_0 = arith.constant 0 : i32
    %c0_i32_1 = arith.constant 0 : i32
    %c0_i32_2 = arith.constant 0 : i32
    return %c0_i32, %c0_i32_0, %c0_i32_1 : i32, i32, i32
  }
  func.func @transform_13(%arg0: i32) -> (i32, i32, i32) {
    %c0_i32 = arith.constant 0 : i32
    %c0_i32_0 = arith.constant 0 : i32
    %c0_i32_1 = arith.constant 0 : i32
    %c0_i32_2 = arith.constant 0 : i32
    return %c0_i32, %c0_i32_0, %c0_i32_1 : i32, i32, i32
  }
  func.func @transform_14(%arg0: i32) -> (i32, i32, i32) {
    %c0_i32 = arith.constant 0 : i32
    %c0_i32_0 = arith.constant 0 : i32
    %c0_i32_1 = arith.constant 0 : i32
    %c0_i32_2 = arith.constant 0 : i32
    return %c0_i32, %c0_i32_0, %c0_i32_1 : i32, i32, i32
  }
  func.func @transform_15(%arg0: i32) -> (i32, i32, i32) {
    %c0_i32 = arith.constant 0 : i32
    %c0_i32_0 = arith.constant 0 : i32
    %c0_i32_1 = arith.constant 0 : i32
    %c0_i32_2 = arith.constant 0 : i32
    return %c0_i32, %c0_i32_0, %c0_i32_1 : i32, i32, i32
  }
  func.func @transform_16(%arg0: i32) -> (i32, i32, i32) {
    %c0_i32 = arith.constant 0 : i32
    %c0_i32_0 = arith.constant 0 : i32
    %c0_i32_1 = arith.constant 0 : i32
    %c0_i32_2 = arith.constant 0 : i32
    return %c0_i32, %c0_i32_0, %c0_i32_1 : i32, i32, i32
  }
  func.func @transform_17(%arg0: i32) -> (i32, i32, i32) {
    %c0_i32 = arith.constant 0 : i32
    %c0_i32_0 = arith.constant 0 : i32
    %c0_i32_1 = arith.constant 0 : i32
    %c0_i32_2 = arith.constant 0 : i32
    return %c0_i32, %c0_i32_0, %c0_i32_1 : i32, i32, i32
  }
  func.func @transform_18(%arg0: i32) -> (i32, i32, i32) {
    %c0_i32 = arith.constant 0 : i32
    %c0_i32_0 = arith.constant 0 : i32
    %c0_i32_1 = arith.constant 0 : i32
    %c0_i32_2 = arith.constant 0 : i32
    return %c0_i32, %c0_i32_0, %c0_i32_1 : i32, i32, i32
  }
  func.func @transform_19(%arg0: i32) -> (i32, i32, i32) {
    %c0_i32 = arith.constant 0 : i32
    %c0_i32_0 = arith.constant 0 : i32
    %c0_i32_1 = arith.constant 0 : i32
    %c0_i32_2 = arith.constant 0 : i32
    return %c0_i32, %c0_i32_0, %c0_i32_1 : i32, i32, i32
  }
  func.func @transform_20(%arg0: i32) -> (i32, i32, i32) {
    %c0_i32 = arith.constant 0 : i32
    %c0_i32_0 = arith.constant 0 : i32
    %c0_i32_1 = arith.constant 0 : i32
    return %c0_i32, %arg0, %c0_i32_0 : i32, i32, i32
  }
}

</mosaic_0001>

<llo_original>
// kernel: tpu_custom_call.1
$region0: #{tpu_custom_call.1}
  #allocation0 [shape = 'u32[]', space=smem, size = 0x4, offset = 0x4, fixed_abs, tag = 'smem constant byte address 0x4 - core index']
  #allocation1 [shape = 'u32[144,128]{1,0:T(1,128)}', space=vmem, size = 0x12000, scoped, tag = 'internal scratch']
  %s0 = inlined_call_operand.vmem [shape: f32[1,64,32], index: 0, kind: input, shape index: {}]
  %s1 = inlined_call_operand.vmem [shape: f32[7,64,32], index: 1, kind: input, shape index: {}]
  %s2 = inlined_call_operand.vmem [shape: f32[7,64,32], index: 2, kind: input, shape index: {}]
  %s3 = inlined_call_operand.vmem [shape: f32[32,32], index: 3, kind: input, shape index: {}]
  %s4 = inlined_call_operand.vmem [shape: f32[2,1,32], index: 4, kind: input, shape index: {}]
  %s5 = inlined_call_operand.vmem [shape: f32[2,1,32], index: 5, kind: input, shape index: {}]
  %s6 = inlined_call_operand.vmem [shape: f32[2,32,32], index: 6, kind: input, shape index: {}]
  %s7 = inlined_call_operand.vmem [shape: f32[2,32,32], index: 7, kind: input, shape index: {}]
  %s8 = inlined_call_operand.vmem [shape: f32[2,32,32], index: 8, kind: input, shape index: {}]
  %s9 = inlined_call_operand.vmem [shape: f32[2,1,32], index: 9, kind: input, shape index: {}]
  %s10 = inlined_call_operand.vmem [shape: f32[2,1,32], index: 10, kind: input, shape index: {}]
  %s11 = inlined_call_operand.vmem [shape: f32[2,1,32], index: 11, kind: input, shape index: {}]
  %s12 = inlined_call_operand.vmem [shape: f32[2,32,32], index: 12, kind: input, shape index: {}]
  %s13 = inlined_call_operand.vmem [shape: f32[2,1,32], index: 13, kind: input, shape index: {}]
  %s14 = inlined_call_operand.vmem [shape: f32[2,1,32], index: 14, kind: input, shape index: {}]
  %s15 = inlined_call_operand.vmem [shape: f32[2,1,32], index: 15, kind: input, shape index: {}]
  %s16 = inlined_call_operand.vmem [shape: f32[2,32,64], index: 16, kind: input, shape index: {}]
  %s17 = inlined_call_operand.vmem [shape: f32[2,1,64], index: 17, kind: input, shape index: {}]
  %s18 = inlined_call_operand.vmem [shape: f32[2,64,32], index: 18, kind: input, shape index: {}]
  %s19 = inlined_call_operand.vmem [shape: f32[2,1,32], index: 19, kind: input, shape index: {}]
  %s20 = inlined_call_operand.vmem [shape: f32[1,64,32], index: 20, kind: output, shape index: {}]
  %s21 = sld [smem:[#allocation0]]
  $region90: #{tpu_custom_call.1} parent=0
    _
  %s23 = ssub.s32 1, %s21
  %s24 = scalar_select 0, %s23, %s21
  // Predicated region
  $region2: #{tpu_custom_call.1} parent=0 // pred_check
    _
  $region3: #{tpu_custom_call.1} parent=0 // pred_check_branch
    %26 = sbr.rel (0) target = $region5
  $region4: #{tpu_custom_call.1} parent=0 // pred_region
    _
  $region5: #{tpu_custom_call.1} parent=0 // pred_fallthru
    _
  // Predicated region
  $region6: #{tpu_custom_call.1} parent=0 // pred_check
    _
  $region7: #{tpu_custom_call.1} parent=0 // pred_check_branch
    %28 = sbr.rel (0) target = $region9
  $region8: #{tpu_custom_call.1} parent=0 // pred_region
    _
  $region9: #{tpu_custom_call.1} parent=0 // pred_fallthru
    _
  // Predicated region
  $region10: #{tpu_custom_call.1} parent=0 // pred_check
    _
  $region11: #{tpu_custom_call.1} parent=0 // pred_check_branch
    %30 = sbr.rel (0) target = $region13
  $region12: #{tpu_custom_call.1} parent=0 // pred_region
    _
  $region13: #{tpu_custom_call.1} parent=0 // pred_fallthru
    _
  // Predicated region
  $region14: #{tpu_custom_call.1} parent=0 // pred_check
    _
  $region15: #{tpu_custom_call.1} parent=0 // pred_check_branch
    %32 = sbr.rel (0) target = $region17
  $region16: #{tpu_custom_call.1} parent=0 // pred_region
    _
  $region17: #{tpu_custom_call.1} parent=0 // pred_fallthru
    _
  // Predicated region
  $region18: #{tpu_custom_call.1} parent=0 // pred_check
    _
  $region19: #{tpu_custom_call.1} parent=0 // pred_check_branch
    %34 = sbr.rel (0) target = $region21
  $region20: #{tpu_custom_call.1} parent=0 // pred_region
    _
  $region21: #{tpu_custom_call.1} parent=0 // pred_fallthru
    _
  // Predicated region
  $region22: #{tpu_custom_call.1} parent=0 // pred_check
    _
  $region23: #{tpu_custom_call.1} parent=0 // pred_check_branch
    %36 = sbr.rel (0) target = $region25
  $region24: #{tpu_custom_call.1} parent=0 // pred_region
    _
  $region25: #{tpu_custom_call.1} parent=0 // pred_fallthru
    _
  // Predicated region
  $region26: #{tpu_custom_call.1} parent=0 // pred_check
    _
  $region27: #{tpu_custom_call.1} parent=0 // pred_check_branch
    %38 = sbr.rel (0) target = $region29
  $region28: #{tpu_custom_call.1} parent=0 // pred_region
    _
  $region29: #{tpu_custom_call.1} parent=0 // pred_fallthru
    _
  // Predicated region
  $region30: #{tpu_custom_call.1} parent=0 // pred_check
    _
  $region31: #{tpu_custom_call.1} parent=0 // pred_check_branch
    %40 = sbr.rel (0) target = $region33
  $region32: #{tpu_custom_call.1} parent=0 // pred_region
    _
  $region33: #{tpu_custom_call.1} parent=0 // pred_fallthru
    _
  // Predicated region
  $region34: #{tpu_custom_call.1} parent=0 // pred_check
    _
  $region35: #{tpu_custom_call.1} parent=0 // pred_check_branch
    %42 = sbr.rel (0) target = $region37
  $region36: #{tpu_custom_call.1} parent=0 // pred_region
    _
  $region37: #{tpu_custom_call.1} parent=0 // pred_fallthru
    _
  // Predicated region
  $region38: #{tpu_custom_call.1} parent=0 // pred_check
    _
  $region39: #{tpu_custom_call.1} parent=0 // pred_check_branch
    %44 = sbr.rel (0) target = $region41
  $region40: #{tpu_custom_call.1} parent=0 // pred_region
    _
  $region41: #{tpu_custom_call.1} parent=0 // pred_fallthru
    _
  // Predicated region
  $region42: #{tpu_custom_call.1} parent=0 // pred_check
    _
  $region43: #{tpu_custom_call.1} parent=0 // pred_check_branch
    %46 = sbr.rel (0) target = $region45
  $region44: #{tpu_custom_call.1} parent=0 // pred_region
    _
  $region45: #{tpu_custom_call.1} parent=0 // pred_fallthru
    _
  // Predicated region
  $region46: #{tpu_custom_call.1} parent=0 // pred_check
    _
  $region47: #{tpu_custom_call.1} parent=0 // pred_check_branch
    %48 = sbr.rel (0) target = $region49
  $region48: #{tpu_custom_call.1} parent=0 // pred_region
    _
  $region49: #{tpu_custom_call.1} parent=0 // pred_fallthru
    _
  // Predicated region
  $region50: #{tpu_custom_call.1} parent=0 // pred_check
    _
  $region51: #{tpu_custom_call.1} parent=0 // pred_check_branch
    %50 = sbr.rel (0) target = $region53
  $region52: #{tpu_custom_call.1} parent=0 // pred_region
    _
  $region53: #{tpu_custom_call.1} parent=0 // pred_fallthru
    _
  // Predicated region
  $region54: #{tpu_custom_call.1} parent=0 // pred_check
    _
  $region55: #{tpu_custom_call.1} parent=0 // pred_check_branch
    %52 = sbr.rel (0) target = $region57
  $region56: #{tpu_custom_call.1} parent=0 // pred_region
    _
  $region57: #{tpu_custom_call.1} parent=0 // pred_fallthru
    _
  // Predicated region
  $region58: #{tpu_custom_call.1} parent=0 // pred_check
    _
  $region59: #{tpu_custom_call.1} parent=0 // pred_check_branch
    %54 = sbr.rel (0) target = $region61
  $region60: #{tpu_custom_call.1} parent=0 // pred_region
    _
  $region61: #{tpu_custom_call.1} parent=0 // pred_fallthru
    _
  // Predicated region
  $region62: #{tpu_custom_call.1} parent=0 // pred_check
    _
  $region63: #{tpu_custom_call.1} parent=0 // pred_check_branch
    %56 = sbr.rel (0) target = $region65
  $region64: #{tpu_custom_call.1} parent=0 // pred_region
    _
  $region65: #{tpu_custom_call.1} parent=0 // pred_fallthru
    _
  // Predicated region
  $region66: #{tpu_custom_call.1} parent=0 // pred_check
    _
  $region67: #{tpu_custom_call.1} parent=0 // pred_check_branch
    %58 = sbr.rel (0) target = $region69
  $region68: #{tpu_custom_call.1} parent=0 // pred_region
    _
  $region69: #{tpu_custom_call.1} parent=0 // pred_fallthru
    _
  // Predicated region
  $region70: #{tpu_custom_call.1} parent=0 // pred_check
    _
  $region71: #{tpu_custom_call.1} parent=0 // pred_check_branch
    %60 = sbr.rel (0) target = $region73
  $region72: #{tpu_custom_call.1} parent=0 // pred_region
    _
  $region73: #{tpu_custom_call.1} parent=0 // pred_fallthru
    _
  // Predicated region
  $region74: #{tpu_custom_call.1} parent=0 // pred_check
    _
  $region75: #{tpu_custom_call.1} parent=0 // pred_check_branch
    %62 = sbr.rel (0) target = $region77
  $region76: #{tpu_custom_call.1} parent=0 // pred_region
    _
  $region77: #{tpu_custom_call.1} parent=0 // pred_fallthru
    _
  // Predicated region
  $region78: #{tpu_custom_call.1} parent=0 // pred_check
    _
  $region79: #{tpu_custom_call.1} parent=0 // pred_check_branch
    %64 = sbr.rel (0) target = $region81
  $region80: #{tpu_custom_call.1} parent=0 // pred_region
    _
  $region81: #{tpu_custom_call.1} parent=0 // pred_fallthru
    _
  %v65 = vld [vmem:[%s0] sm:$0xff]
  %v66 = vld [vmem:[%s0 + $0x8] sm:$0xff]
  %v67 = vld [vmem:[%s0 + $0x10] sm:$0xff]
  %v68 = vld [vmem:[%s0 + $0x18] sm:$0xff]
  %v69 = vld [vmem:[%s0 + $0x20] sm:$0xff]
  %v70 = vld [vmem:[%s0 + $0x28] sm:$0xff]
  %v71 = vld [vmem:[%s0 + $0x30] sm:$0xff]
  %v72 = vld [vmem:[%s0 + $0x38] sm:$0xff]
  %v73 = vld [vmem:[%s1] sm:$0xff]
  %v74 = vld [vmem:[%s1 + $0x8] sm:$0xff]
  %v75 = vld [vmem:[%s1 + $0x10] sm:$0xff]
  %v76 = vld [vmem:[%s1 + $0x18] sm:$0xff]
  %v77 = vld [vmem:[%s1 + $0x20] sm:$0xff]
  %v78 = vld [vmem:[%s1 + $0x28] sm:$0xff]
  %v79 = vld [vmem:[%s1 + $0x30] sm:$0xff]
  %v80 = vld [vmem:[%s1 + $0x38] sm:$0xff]
  %v81 = vld [vmem:[%s1 + $0x40] sm:$0xff]
  %v82 = vld [vmem:[%s1 + $0x48] sm:$0xff]
  %v83 = vld [vmem:[%s1 + $0x50] sm:$0xff]
  %v84 = vld [vmem:[%s1 + $0x58] sm:$0xff]
  %v85 = vld [vmem:[%s1 + $0x60] sm:$0xff]
  %v86 = vld [vmem:[%s1 + $0x68] sm:$0xff]
  %v87 = vld [vmem:[%s1 + $0x70] sm:$0xff]
  %v88 = vld [vmem:[%s1 + $0x78] sm:$0xff]
  %v89 = vld [vmem:[%s1 + $0x80] sm:$0xff]
  %v90 = vld [vmem:[%s1 + $0x88] sm:$0xff]
  %v91 = vld [vmem:[%s1 + $0x90] sm:$0xff]
  %v92 = vld [vmem:[%s1 + $0x98] sm:$0xff]
  %v93 = vld [vmem:[%s1 + $0xa0] sm:$0xff]
  %v94 = vld [vmem:[%s1 + $0xa8] sm:$0xff]
  %v95 = vld [vmem:[%s1 + $0xb0] sm:$0xff]
  %v96 = vld [vmem:[%s1 + $0xb8] sm:$0xff]
  %v97 = vld [vmem:[%s1 + $0xc0] sm:$0xff]
  %v98 = vld [vmem:[%s1 + $0xc8] sm:$0xff]
  %v99 = vld [vmem:[%s1 + $0xd0] sm:$0xff]
  %v100 = vld [vmem:[%s1 + $0xd8] sm:$0xff]
  %v101 = vld [vmem:[%s1 + $0xe0] sm:$0xff]
  %v102 = vld [vmem:[%s1 + $0xe8] sm:$0xff]
  %v103 = vld [vmem:[%s1 + $0xf0] sm:$0xff]
  %v104 = vld [vmem:[%s1 + $0xf8] sm:$0xff]
  %v105 = vld [vmem:[%s1 + $0x100] sm:$0xff]
  %v106 = vld [vmem:[%s1 + $0x108] sm:$0xff]
  %v107 = vld [vmem:[%s1 + $0x110] sm:$0xff]
  %v108 = vld [vmem:[%s1 + $0x118] sm:$0xff]
  %v109 = vld [vmem:[%s1 + $0x120] sm:$0xff]
  %v110 = vld [vmem:[%s1 + $0x128] sm:$0xff]
  %v111 = vld [vmem:[%s1 + $0x130] sm:$0xff]
  %v112 = vld [vmem:[%s1 + $0x138] sm:$0xff]
  %v113 = vld [vmem:[%s1 + $0x140] sm:$0xff]
  %v114 = vld [vmem:[%s1 + $0x148] sm:$0xff]
  %v115 = vld [vmem:[%s1 + $0x150] sm:$0xff]
  %v116 = vld [vmem:[%s1 + $0x158] sm:$0xff]
  %v117 = vld [vmem:[%s1 + $0x160] sm:$0xff]
  %v118 = vld [vmem:[%s1 + $0x168] sm:$0xff]
  %v119 = vld [vmem:[%s1 + $0x170] sm:$0xff]
  %v120 = vld [vmem:[%s1 + $0x178] sm:$0xff]
  %v121 = vld [vmem:[%s1 + $0x180] sm:$0xff]
  %v122 = vld [vmem:[%s1 + $0x188] sm:$0xff]
  %v123 = vld [vmem:[%s1 + $0x190] sm:$0xff]
  %v124 = vld [vmem:[%s1 + $0x198] sm:$0xff]
  %v125 = vld [vmem:[%s1 + $0x1a0] sm:$0xff]
  %v126 = vld [vmem:[%s1 + $0x1a8] sm:$0xff]
  %v127 = vld [vmem:[%s1 + $0x1b0] sm:$0xff]
  %v128 = vld [vmem:[%s1 + $0x1b8] sm:$0xff]
  %v129 = vld [vmem:[%s2] sm:$0xff]
  %v130 = vld [vmem:[%s2 + $0x8] sm:$0xff]
  %v131 = vld [vmem:[%s2 + $0x10] sm:$0xff]
  %v132 = vld [vmem:[%s2 + $0x18] sm:$0xff]
  %v133 = vld [vmem:[%s2 + $0x20] sm:$0xff]
  %v134 = vld [vmem:[%s2 + $0x28] sm:$0xff]
  %v135 = vld [vmem:[%s2 + $0x30] sm:$0xff]
  %v136 = vld [vmem:[%s2 + $0x38] sm:$0xff]
  %v137 = vld [vmem:[%s2 + $0x40] sm:$0xff]
  %v138 = vld [vmem:[%s2 + $0x48] sm:$0xff]
  %v139 = vld [vmem:[%s2 + $0x50] sm:$0xff]
  %v140 = vld [vmem:[%s2 + $0x58] sm:$0xff]
  %v141 = vld [vmem:[%s2 + $0x60] sm:$0xff]
  %v142 = vld [vmem:[%s2 + $0x68] sm:$0xff]
  %v143 = vld [vmem:[%s2 + $0x70] sm:$0xff]
  %v144 = vld [vmem:[%s2 + $0x78] sm:$0xff]
  %v145 = vld [vmem:[%s2 + $0x80] sm:$0xff]
  %v146 = vld [vmem:[%s2 + $0x88] sm:$0xff]
  %v147 = vld [vmem:[%s2 + $0x90] sm:$0xff]
  %v148 = vld [vmem:[%s2 + $0x98] sm:$0xff]
  %v149 = vld [vmem:[%s2 + $0xa0] sm:$0xff]
  %v150 = vld [vmem:[%s2 + $0xa8] sm:$0xff]
  %v151 = vld [vmem:[%s2 + $0xb0] sm:$0xff]
  %v152 = vld [vmem:[%s2 + $0xb8] sm:$0xff]
  %v153 = vld [vmem:[%s2 + $0xc0] sm:$0xff]
  %v154 = vld [vmem:[%s2 + $0xc8] sm:$0xff]
  %v155 = vld [vmem:[%s2 + $0xd0] sm:$0xff]
  %v156 = vld [vmem:[%s2 + $0xd8] sm:$0xff]
  %v157 = vld [vmem:[%s2 + $0xe0] sm:$0xff]
  %v158 = vld [vmem:[%s2 + $0xe8] sm:$0xff]
  %v159 = vld [vmem:[%s2 + $0xf0] sm:$0xff]
  %v160 = vld [vmem:[%s2 + $0xf8] sm:$0xff]
  %v161 = vld [vmem:[%s2 + $0x100] sm:$0xff]
  %v162 = vld [vmem:[%s2 + $0x108] sm:$0xff]
  %v163 = vld [vmem:[%s2 + $0x110] sm:$0xff]
  %v164 = vld [vmem:[%s2 + $0x118] sm:$0xff]
  %v165 = vld [vmem:[%s2 + $0x120] sm:$0xff]
  %v166 = vld [vmem:[%s2 + $0x128] sm:$0xff]
  %v167 = vld [vmem:[%s2 + $0x130] sm:$0xff]
  %v168 = vld [vmem:[%s2 + $0x138] sm:$0xff]
  %v169 = vld [vmem:[%s2 + $0x140] sm:$0xff]
  %v170 = vld [vmem:[%s2 + $0x148] sm:$0xff]
  %v171 = vld [vmem:[%s2 + $0x150] sm:$0xff]
  %v172 = vld [vmem:[%s2 + $0x158] sm:$0xff]
  %v173 = vld [vmem:[%s2 + $0x160] sm:$0xff]
  %v174 = vld [vmem:[%s2 + $0x168] sm:$0xff]
  %v175 = vld [vmem:[%s2 + $0x170] sm:$0xff]
  %v176 = vld [vmem:[%s2 + $0x178] sm:$0xff]
  %v177 = vld [vmem:[%s2 + $0x180] sm:$0xff]
  %v178 = vld [vmem:[%s2 + $0x188] sm:$0xff]
  %v179 = vld [vmem:[%s2 + $0x190] sm:$0xff]
  %v180 = vld [vmem:[%s2 + $0x198] sm:$0xff]
  %v181 = vld [vmem:[%s2 + $0x1a0] sm:$0xff]
  %v182 = vld [vmem:[%s2 + $0x1a8] sm:$0xff]
  %v183 = vld [vmem:[%s2 + $0x1b0] sm:$0xff]
  %v184 = vld [vmem:[%s2 + $0x1b8] sm:$0xff]
  %v185 = vld [vmem:[%s3] sm:$0xff]
  %v186 = vld [vmem:[%s3 + $0x8] sm:$0xff]
  %v187 = vld [vmem:[%s3 + $0x10] sm:$0xff]
  %v188 = vld [vmem:[%s3 + $0x18] sm:$0xff]
  %v189 = vld [vmem:[%s4] sm:$0x1]
  %v190 = vld [vmem:[%s5] sm:$0x1]
  %vm191 = vcmask 261120
  %v192 = vsel %vm191, %v65, 0.0
  %193 = vadd.xlane.f32.xlu0 %v192
  %v194 = vpop.xlane.xlu0 %193
  %v195 = vsel %vm191, %v66, 0.0
  %196 = vadd.xlane.f32.xlu0 %v195
  %v197 = vpop.xlane.xlu0 %196
  %v198 = vsel %vm191, %v67, 0.0
  %199 = vadd.xlane.f32.xlu0 %v198
  %v200 = vpop.xlane.xlu0 %199
  %v201 = vsel %vm191, %v68, 0.0
  %202 = vadd.xlane.f32.xlu0 %v201
  %v203 = vpop.xlane.xlu0 %202
  %v204 = vsel %vm191, %v69, 0.0
  %205 = vadd.xlane.f32.xlu0 %v204
  %v206 = vpop.xlane.xlu0 %205
  %v207 = vsel %vm191, %v70, 0.0
  %208 = vadd.xlane.f32.xlu0 %v207
  %v209 = vpop.xlane.xlu0 %208
  %v210 = vsel %vm191, %v71, 0.0
  %211 = vadd.xlane.f32.xlu0 %v210
  %v212 = vpop.xlane.xlu0 %211
  %v213 = vsel %vm191, %v72, 0.0
  %214 = vadd.xlane.f32.xlu0 %v213
  %v215 = vpop.xlane.xlu0 %214
  %v216 = vrcp.pop 32.0
  %v217 = vmul.f32 %v194, %v216
  %v218 = vmul.f32 %v197, %v216
  %v219 = vmul.f32 %v200, %v216
  %v220 = vmul.f32 %v203, %v216
  %v221 = vmul.f32 %v206, %v216
  %v222 = vmul.f32 %v209, %v216
  %v223 = vmul.f32 %v212, %v216
  %v224 = vmul.f32 %v215, %v216
  %v225 = vsub.f32 %v65, %v217
  %v226 = vsub.f32 %v66, %v218
  %v227 = vsub.f32 %v67, %v219
  %v228 = vsub.f32 %v68, %v220
  %v229 = vsub.f32 %v69, %v221
  %v230 = vsub.f32 %v70, %v222
  %v231 = vsub.f32 %v71, %v223
  %v232 = vsub.f32 %v72, %v224
  %v233 = vmul.f32 %v225, %v225
  %v234 = vmul.f32 %v226, %v226
  %v235 = vmul.f32 %v227, %v227
  %v236 = vmul.f32 %v228, %v228
  %v237 = vmul.f32 %v229, %v229
  %v238 = vmul.f32 %v230, %v230
  %v239 = vmul.f32 %v231, %v231
  %v240 = vmul.f32 %v232, %v232
  %v241 = vsel %vm191, %v233, 0.0
  %242 = vadd.xlane.f32.xlu0 %v241
  %v243 = vpop.xlane.xlu0 %242
  %v244 = vsel %vm191, %v234, 0.0
  %245 = vadd.xlane.f32.xlu0 %v244
  %v246 = vpop.xlane.xlu0 %245
  %v247 = vsel %vm191, %v235, 0.0
  %248 = vadd.xlane.f32.xlu0 %v247
  %v249 = vpop.xlane.xlu0 %248
  %v250 = vsel %vm191, %v236, 0.0
  %251 = vadd.xlane.f32.xlu0 %v250
  %v252 = vpop.xlane.xlu0 %251
  %v253 = vsel %vm191, %v237, 0.0
  %254 = vadd.xlane.f32.xlu0 %v253
  %v255 = vpop.xlane.xlu0 %254
  %v256 = vsel %vm191, %v238, 0.0
  %257 = vadd.xlane.f32.xlu0 %v256
  %v258 = vpop.xlane.xlu0 %257
  %v259 = vsel %vm191, %v239, 0.0
  %260 = vadd.xlane.f32.xlu0 %v259
  %v261 = vpop.xlane.xlu0 %260
  %v262 = vsel %vm191, %v240, 0.0
  %263 = vadd.xlane.f32.xlu0 %v262
  %v264 = vpop.xlane.xlu0 %263
  %v265 = vmul.f32 %v243, %v216
  %v266 = vmul.f32 %v246, %v216
  %v267 = vmul.f32 %v249, %v216
  %v268 = vmul.f32 %v252, %v216
  %v269 = vmul.f32 %v255, %v216
  %v270 = vmul.f32 %v258, %v216
  %v271 = vmul.f32 %v261, %v216
  %v272 = vmul.f32 %v264, %v216
  %v273 = vadd.f32 %v265, 1e-05
  %v274 = vadd.f32 %v266, 1e-05
  %v275 = vadd.f32 %v267, 1e-05
  %v276 = vadd.f32 %v268, 1e-05
  %v277 = vadd.f32 %v269, 1e-05
  %v278 = vadd.f32 %v270, 1e-05
  %v279 = vadd.f32 %v271, 1e-05
  %v280 = vadd.f32 %v272, 1e-05
  %v281 = vrsqrt.pop %v273
  %v282 = vrsqrt.pop %v274
  %v283 = vrsqrt.pop %v275
  %v284 = vrsqrt.pop %v276
  %v285 = vrsqrt.pop %v277
  %v286 = vrsqrt.pop %v278
  %v287 = vrsqrt.pop %v279
  %v288 = vrsqrt.pop %v280
  %v289 = vmul.f32 %v225, %v281
  %v290 = vmul.f32 %v226, %v282
  %v291 = vmul.f32 %v227, %v283
  %v292 = vmul.f32 %v228, %v284
  %v293 = vmul.f32 %v229, %v285
  %v294 = vmul.f32 %v230, %v286
  %v295 = vmul.f32 %v231, %v287
  %v296 = vmul.f32 %v232, %v288
  %v298 = vlaneseq
  %v299 = vshrl.u32 %v298, 7
  %v300 = vsub.s32 0, %v299
  %v301 = vrot.slane %v189, %v300
  %v303 = vmul.f32 %v289, %v301
  %v304 = vmul.f32 %v290, %v301
  %v305 = vmul.f32 %v291, %v301
  %v306 = vmul.f32 %v292, %v301
  %v307 = vmul.f32 %v293, %v301
  %v308 = vmul.f32 %v294, %v301
  %v309 = vmul.f32 %v295, %v301
  %v310 = vmul.f32 %v296, %v301
  %v312 = vlaneseq
  %v313 = vshrl.u32 %v312, 7
  %v314 = vsub.s32 0, %v313
  %v315 = vrot.slane %v190, %v314
  %v317 = vadd.f32 %v303, %v315
  %v318 = vadd.f32 %v304, %v315
  %v319 = vadd.f32 %v305, %v315
  %v320 = vadd.f32 %v306, %v315
  %v321 = vadd.f32 %v307, %v315
  %v322 = vadd.f32 %v308, %v315
  %v323 = vadd.f32 %v309, %v315
  %v324 = vadd.f32 %v310, %v315
  %v325 = vld [vmem:[%s6] sm:$0xff]
  %v326 = vld [vmem:[%s6 + $0x8] sm:$0xff]
  %v327 = vld [vmem:[%s6 + $0x10] sm:$0xff]
  %v328 = vld [vmem:[%s6 + $0x18] sm:$0xff]
  %v329 = vld [vmem:[%s9] sm:$0x1]
  %v331 = vlaneseq
  %v332 = vshrl.u32 %v331, 7
  %v333 = vsub.s32 0, %v332
  %v334 = vrot.slane %v329, %v333
  %v337 = vsel %vm191, %v317, 0
  %v340 = vsel %vm191, %v318, 0
  %v343 = vsel %vm191, %v319, 0
  %v346 = vsel %vm191, %v320, 0
  %v349 = vsel %vm191, %v321, 0
  %v352 = vsel %vm191, %v322, 0
  %v355 = vsel %vm191, %v323, 0
  %v358 = vsel %vm191, %v324, 0
  %360 = vmatprep.subr.mxu0 0.0
  %361 = vmatpush1.msra.mxu0 %v325
  %362 = vmatprep.subr.mxu0 0.0
  %363 = vmatpush1.msra.mxu0 %v326
  %364 = vmatprep.subr.mxu0 0.0
  %365 = vmatpush1.msra.mxu0 %v327
  %366 = vmatprep.subr.mxu0 0.0
  %367 = vmatpush1.msra.mxu0 %v328
  %368 = vmatprep.subr.mxu0 0.0
  %369 = vmatpush1.msra.mxu0 0.0
  %370 = vmatprep.subr.mxu0 0.0
  %371 = vmatpush1.msra.mxu0 0.0
  %372 = vmatprep.subr.mxu0 0.0
  %373 = vmatpush1.msra.mxu0 0.0
  %374 = vmatprep.subr.mxu0 0.0
  %375 = vmatpush1.msra.mxu0 0.0
  %376 = vmatprep.subr.mxu0 0.0
  %377 = vmatpush1.msra.mxu0 0.0
  %378 = vmatprep.subr.mxu0 0.0
  %379 = vmatpush1.msra.mxu0 0.0
  %380 = vmatprep.subr.mxu0 0.0
  %381 = vmatpush1.msra.mxu0 0.0
  %382 = vmatprep.subr.mxu0 0.0
  %383 = vmatpush1.msra.mxu0 0.0
  %384 = vmatprep.subr.mxu0 0.0
  %385 = vmatpush1.msra.mxu0 0.0
  %386 = vmatprep.subr.mxu0 0.0
  %387 = vmatpush1.msra.mxu0 0.0
  %388 = vmatprep.subr.mxu0 0.0
  %389 = vmatpush1.msra.mxu0 0.0
  %390 = vmatprep.subr.mxu0 0.0
  %391 = vmatpush1.msra.mxu0 0.0
  %392 = vmatprep.subr.mxu0 0.0
  %393 = vmatpush1.msra.mxu0 0.0
  %394 = vmatprep.subr.mxu0 0.0
  %395 = vmatpush1.msra.mxu0 0.0
  %396 = vmatprep.subr.mxu0 0.0
  %397 = vmatpush1.msra.mxu0 0.0
  %398 = vmatprep.subr.mxu0 0.0
  %399 = vmatpush1.msra.mxu0 0.0
  %400 = vmatprep.subr.mxu0 0.0
  %401 = vmatpush1.msra.mxu0 0.0
  %402 = vmatprep.subr.mxu0 0.0
  %403 = vmatpush1.msra.mxu0 0.0
  %404 = vmatprep.subr.mxu0 0.0
  %405 = vmatpush1.msra.mxu0 0.0
  %406 = vmatprep.subr.mxu0 0.0
  %407 = vmatpush1.msra.mxu0 0.0
  %408 = vmatprep.subr.mxu0 0.0
  %409 = vmatpush1.msra.mxu0 0.0
  %410 = vmatprep.subr.mxu0 0.0
  %411 = vmatpush1.msra.mxu0 0.0
  %412 = vmatprep.subr.mxu0 0.0
  %413 = vmatpush1.msra.mxu0 0.0
  %414 = vmatprep.subr.mxu0 0.0
  %415 = vmatpush1.msra.mxu0 0.0
  %416 = vmatprep.subr.mxu0 0.0
  %417 = vmatpush1.msra.mxu0 0.0
  %418 = vmatprep.subr.mxu0 0.0
  %419 = vmatpush1.msra.mxu0 0.0
  %420 = vmatprep.subr.mxu0 0.0
  %421 = vmatpush1.msra.mxu0 0.0
  %422 = vmatprep.subr.mxu0 0.0
  %423 = vmatpush1.msra.mxu0 0.0
  %424 = vmatprep.mubr.f32.mxu0 0.0
  %425 = vmatmul.mubr.f32.gmra.mrb[0].mxu0 %v337
  %v426 = vpop.f32.mrb[0].mxu0
  %v427 = vadd.f32 %v334, %v426
  %v428 = vpop.f32.mrb[0].mxu0
  %429 = vmatprep.mubr.f32.mxu0 0.0
  %430 = vmatmul.mubr.f32.gmra.mrb[0].mxu0 %v340
  %v431 = vpop.f32.mrb[0].mxu0
  %v432 = vadd.f32 %v334, %v431
  %v433 = vpop.f32.mrb[0].mxu0
  %434 = vmatprep.mubr.f32.mxu0 0.0
  %435 = vmatmul.mubr.f32.gmra.mrb[0].mxu0 %v343
  %v436 = vpop.f32.mrb[0].mxu0
  %v437 = vadd.f32 %v334, %v436
  %v438 = vpop.f32.mrb[0].mxu0
  %439 = vmatprep.mubr.f32.mxu0 0.0
  %440 = vmatmul.mubr.f32.gmra.mrb[0].mxu0 %v346
  %v441 = vpop.f32.mrb[0].mxu0
  %v442 = vadd.f32 %v334, %v441
  %v443 = vpop.f32.mrb[0].mxu0
  %444 = vmatprep.mubr.f32.mxu0 0.0
  %445 = vmatmul.mubr.f32.gmra.mrb[0].mxu0 %v349
  %v446 = vpop.f32.mrb[0].mxu0
  %v447 = vadd.f32 %v334, %v446
  %v448 = vpop.f32.mrb[0].mxu0
  %449 = vmatprep.mubr.f32.mxu0 0.0
  %450 = vmatmul.mubr.f32.gmra.mrb[0].mxu0 %v352
  %v451 = vpop.f32.mrb[0].mxu0
  %v452 = vadd.f32 %v334, %v451
  %v453 = vpop.f32.mrb[0].mxu0
  %454 = vmatprep.mubr.f32.mxu0 0.0
  %455 = vmatmul.mubr.f32.gmra.mrb[0].mxu0 %v355
  %v456 = vpop.f32.mrb[0].mxu0
  %v457 = vadd.f32 %v334, %v456
  %v458 = vpop.f32.mrb[0].mxu0
  %459 = vmatprep.mubr.f32.mxu0 0.0
  %460 = vmatmul.mubr.f32.gmra.mrb[0].mxu0 %v358
  %v461 = vpop.f32.mrb[0].mxu0
  %v462 = vadd.f32 %v334, %v461
  %v463 = vpop.f32.mrb[0].mxu0
  %464 = vdwg.mxu0
  %v465 = vld [vmem:[%s7] sm:$0xff]
  %v466 = vld [vmem:[%s7 + $0x8] sm:$0xff]
  %v467 = vld [vmem:[%s7 + $0x10] sm:$0xff]
  %v468 = vld [vmem:[%s7 + $0x18] sm:$0xff]
  %v469 = vld [vmem:[%s10] sm:$0x1]
  %v471 = vlaneseq
  %v472 = vshrl.u32 %v471, 7
  %v473 = vsub.s32 0, %v472
  %v474 = vrot.slane %v469, %v473
  %v477 = vsel %vm191, %v73, 0
  %v480 = vsel %vm191, %v74, 0
  %v483 = vsel %vm191, %v75, 0
  %v486 = vsel %vm191, %v76, 0
  %v489 = vsel %vm191, %v77, 0
  %v492 = vsel %vm191, %v78, 0
  %v495 = vsel %vm191, %v79, 0
  %v498 = vsel %vm191, %v80, 0
  %v501 = vsel %vm191, %v81, 0
  %v504 = vsel %vm191, %v82, 0
  %v507 = vsel %vm191, %v83, 0
  %v510 = vsel %vm191, %v84, 0
  %v513 = vsel %vm191, %v85, 0
  %v516 = vsel %vm191, %v86, 0
  %v519 = vsel %vm191, %v87, 0
  %v522 = vsel %vm191, %v88, 0
  %v525 = vsel %vm191, %v89, 0
  %v528 = vsel %vm191, %v90, 0
  %v531 = vsel %vm191, %v91, 0
  %v534 = vsel %vm191, %v92, 0
  %v537 = vsel %vm191, %v93, 0
  %v540 = vsel %vm191, %v94, 0
  %v543 = vsel %vm191, %v95, 0
  %v546 = vsel %vm191, %v96, 0
  %v549 = vsel %vm191, %v97, 0
  %v552 = vsel %vm191, %v98, 0
  %v555 = vsel %vm191, %v99, 0
  %v558 = vsel %vm191, %v100, 0
  %v561 = vsel %vm191, %v101, 0
  %v564 = vsel %vm191, %v102, 0
  %v567 = vsel %vm191, %v103, 0
  %v570 = vsel %vm191, %v104, 0
  %v573 = vsel %vm191, %v105, 0
  %v576 = vsel %vm191, %v106, 0
  %v579 = vsel %vm191, %v107, 0
  %v582 = vsel %vm191, %v108, 0
  %v585 = vsel %vm191, %v109, 0
  %v588 = vsel %vm191, %v110, 0
  %v591 = vsel %vm191, %v111, 0
  %v594 = vsel %vm191, %v112, 0
  %v597 = vsel %vm191, %v113, 0
  %v600 = vsel %vm191, %v114, 0
  %v603 = vsel %vm191, %v115, 0
  %v606 = vsel %vm191, %v116, 0
  %v609 = vsel %vm191, %v117, 0
  %v612 = vsel %vm191, %v118, 0
  %v615 = vsel %vm191, %v119, 0
  %v618 = vsel %vm191, %v120, 0
  %v621 = vsel %vm191, %v121, 0
  %v624 = vsel %vm191, %v122, 0
  %v627 = vsel %vm191, %v123, 0
  %v630 = vsel %vm191, %v124, 0
  %v633 = vsel %vm191, %v125, 0
  %v636 = vsel %vm191, %v126, 0
  %v639 = vsel %vm191, %v127, 0
  %v642 = vsel %vm191, %v128, 0
  %644 = vmatprep.subr.mxu0 0.0
  %645 = vmatpush1.msra.mxu0 %v465
  %646 = vmatprep.subr.mxu0 0.0
  %647 = vmatpush1.msra.mxu0 %v466
  %648 = vmatprep.subr.mxu0 0.0
  %649 = vmatpush1.msra.mxu0 %v467
  %650 = vmatprep.subr.mxu0 0.0
  %651 = vmatpush1.msra.mxu0 %v468
  %652 = vmatprep.subr.mxu0 0.0
  %653 = vmatpush1.msra.mxu0 0.0
  %654 = vmatprep.subr.mxu0 0.0
  %655 = vmatpush1.msra.mxu0 0.0
  %656 = vmatprep.subr.mxu0 0.0
  %657 = vmatpush1.msra.mxu0 0.0
  %658 = vmatprep.subr.mxu0 0.0
  %659 = vmatpush1.msra.mxu0 0.0
  %660 = vmatprep.subr.mxu0 0.0
  %661 = vmatpush1.msra.mxu0 0.0
  %662 = vmatprep.subr.mxu0 0.0
  %663 = vmatpush1.msra.mxu0 0.0
  %664 = vmatprep.subr.mxu0 0.0
  %665 = vmatpush1.msra.mxu0 0.0
  %666 = vmatprep.subr.mxu0 0.0
  %667 = vmatpush1.msra.mxu0 0.0
  %668 = vmatprep.subr.mxu0 0.0
  %669 = vmatpush1.msra.mxu0 0.0
  %670 = vmatprep.subr.mxu0 0.0
  %671 = vmatpush1.msra.mxu0 0.0
  %672 = vmatprep.subr.mxu0 0.0
  %673 = vmatpush1.msra.mxu0 0.0
  %674 = vmatprep.subr.mxu0 0.0
  %675 = vmatpush1.msra.mxu0 0.0
  %676 = vmatprep.subr.mxu0 0.0
  %677 = vmatpush1.msra.mxu0 0.0
  %678 = vmatprep.subr.mxu0 0.0
  %679 = vmatpush1.msra.mxu0 0.0
  %680 = vmatprep.subr.mxu0 0.0
  %681 = vmatpush1.msra.mxu0 0.0
  %682 = vmatprep.subr.mxu0 0.0
  %683 = vmatpush1.msra.mxu0 0.0
  %684 = vmatprep.subr.mxu0 0.0
  %685 = vmatpush1.msra.mxu0 0.0
  %686 = vmatprep.subr.mxu0 0.0
  %687 = vmatpush1.msra.mxu0 0.0
  %688 = vmatprep.subr.mxu0 0.0
  %689 = vmatpush1.msra.mxu0 0.0
  %690 = vmatprep.subr.mxu0 0.0
  %691 = vmatpush1.msra.mxu0 0.0
  %692 = vmatprep.subr.mxu0 0.0
  %693 = vmatpush1.msra.mxu0 0.0
  %694 = vmatprep.subr.mxu0 0.0
  %695 = vmatpush1.msra.mxu0 0.0
  %696 = vmatprep.subr.mxu0 0.0
  %697 = vmatpush1.msra.mxu0 0.0
  %698 = vmatprep.subr.mxu0 0.0
  %699 = vmatpush1.msra.mxu0 0.0
  %700 = vmatprep.subr.mxu0 0.0
  %701 = vmatpush1.msra.mxu0 0.0
  %702 = vmatprep.subr.mxu0 0.0
  %703 = vmatpush1.msra.mxu0 0.0
  %704 = vmatprep.subr.mxu0 0.0
  %705 = vmatpush1.msra.mxu0 0.0
  %706 = vmatprep.subr.mxu0 0.0
  %707 = vmatpush1.msra.mxu0 0.0
  %708 = vmatprep.mubr.f32.mxu0 0.0
  %709 = vmatmul.mubr.f32.gmra.mrb[0].mxu0 %v477
  %v710 = vpop.f32.mrb[0].mxu0
  %v711 = vadd.f32 %v474, %v710
  %v712 = vpop.f32.mrb[0].mxu0
  %713 = vmatprep.mubr.f32.mxu0 0.0
  %714 = vmatmul.mubr.f32.gmra.mrb[0].mxu0 %v480
  %v715 = vpop.f32.mrb[0].mxu0
  %v716 = vadd.f32 %v474, %v715
  %v717 = vpop.f32.mrb[0].mxu0
  %718 = vmatprep.mubr.f32.mxu0 0.0
  %719 = vmatmul.mubr.f32.gmra.mrb[0].mxu0 %v483
  %v720 = vpop.f32.mrb[0].mxu0
  %v721 = vadd.f32 %v474, %v720
  %v722 = vpop.f32.mrb[0].mxu0
  %723 = vmatprep.mubr.f32.mxu0 0.0
  %724 = vmatmul.mubr.f32.gmra.mrb[0].mxu0 %v486
  %v725 = vpop.f32.mrb[0].mxu0
  %v726 = vadd.f32 %v474, %v725
  %v727 = vpop.f32.mrb[0].mxu0
  %728 = vmatprep.mubr.f32.mxu0 0.0
  %729 = vmatmul.mubr.f32.gmra.mrb[0].mxu0 %v489
  %v730 = vpop.f32.mrb[0].mxu0
  %v731 = vadd.f32 %v474, %v730
  %v732 = vpop.f32.mrb[0].mxu0
  %733 = vmatprep.mubr.f32.mxu0 0.0
  %734 = vmatmul.mubr.f32.gmra.mrb[0].mxu0 %v492
  %v735 = vpop.f32.mrb[0].mxu0
  %v736 = vadd.f32 %v474, %v735
  %v737 = vpop.f32.mrb[0].mxu0
  %738 = vmatprep.mubr.f32.mxu0 0.0
  %739 = vmatmul.mubr.f32.gmra.mrb[0].mxu0 %v495
  %v740 = vpop.f32.mrb[0].mxu0
  %v741 = vadd.f32 %v474, %v740
  %v742 = vpop.f32.mrb[0].mxu0
  %743 = vmatprep.mubr.f32.mxu0 0.0
  %744 = vmatmul.mubr.f32.gmra.mrb[0].mxu0 %v498
  %v745 = vpop.f32.mrb[0].mxu0
  %v746 = vadd.f32 %v474, %v745
  %v747 = vpop.f32.mrb[0].mxu0
  %748 = vmatprep.mubr.f32.mxu0 0.0
  %749 = vmatmul.mubr.f32.gmra.mrb[0].mxu0 %v501
  %v750 = vpop.f32.mrb[0].mxu0
  %v751 = vadd.f32 %v474, %v750
  %v752 = vpop.f32.mrb[0].mxu0
  %753 = vmatprep.mubr.f32.mxu0 0.0
  %754 = vmatmul.mubr.f32.gmra.mrb[0].mxu0 %v504
  %v755 = vpop.f32.mrb[0].mxu0
  %v756 = vadd.f32 %v474, %v755
  %v757 = vpop.f32.mrb[0].mxu0
  %758 = vmatprep.mubr.f32.mxu0 0.0
  %759 = vmatmul.mubr.f32.gmra.mrb[0].mxu0 %v507
  %v760 = vpop.f32.mrb[0].mxu0
  %v761 = vadd.f32 %v474, %v760
  %v762 = vpop.f32.mrb[0].mxu0
  %763 = vmatprep.mubr.f32.mxu0 0.0
  %764 = vmatmul.mubr.f32.gmra.mrb[0].mxu0 %v510
  %v765 = vpop.f32.mrb[0].mxu0
  %v766 = vadd.f32 %v474, %v765
  %v767 = vpop.f32.mrb[0].mxu0
  %768 = vmatprep.mubr.f32.mxu0 0.0
  %769 = vmatmul.mubr.f32.gmra.mrb[0].mxu0 %v513
  %v770 = vpop.f32.mrb[0].mxu0
  %v771 = vadd.f32 %v474, %v770
  %v772 = vpop.f32.mrb[0].mxu0
  %773 = vmatprep.mubr.f32.mxu0 0.0
  %774 = vmatmul.mubr.f32.gmra.mrb[0].mxu0 %v516
  %v775 = vpop.f32.mrb[0].mxu0
  %v776 = vadd.f32 %v474, %v775
  %v777 = vpop.f32.mrb[0].mxu0
  %778 = vmatprep.mubr.f32.mxu0 0.0
  %779 = vmatmul.mubr.f32.gmra.mrb[0].mxu0 %v519
  %v780 = vpop.f32.mrb[0].mxu0
  %v781 = vadd.f32 %v474, %v780
  %v782 = vpop.f32.mrb[0].mxu0
  %783 = vmatprep.mubr.f32.mxu0 0.0
  %784 = vmatmul.mubr.f32.gmra.mrb[0].mxu0 %v522
  %v785 = vpop.f32.mrb[0].mxu0
  %v786 = vadd.f32 %v474, %v785
  %v787 = vpop.f32.mrb[0].mxu0
  %788 = vmatprep.mubr.f32.mxu0 0.0
  %789 = vmatmul.mubr.f32.gmra.mrb[0].mxu0 %v525
  %v790 = vpop.f32.mrb[0].mxu0
  %v791 = vadd.f32 %v474, %v790
  %v792 = vpop.f32.mrb[0].mxu0
  %793 = vmatprep.mubr.f32.mxu0 0.0
  %794 = vmatmul.mubr.f32.gmra.mrb[0].mxu0 %v528
  %v795 = vpop.f32.mrb[0].mxu0
  %v796 = vadd.f32 %v474, %v795
  %v797 = vpop.f32.mrb[0].mxu0
  %798 = vmatprep.mubr.f32.mxu0 0.0
  %799 = vmatmul.mubr.f32.gmra.mrb[0].mxu0 %v531
  %v800 = vpop.f32.mrb[0].mxu0
  %v801 = vadd.f32 %v474, %v800
  %v802 = vpop.f32.mrb[0].mxu0
  %803 = vmatprep.mubr.f32.mxu0 0.0
  %804 = vmatmul.mubr.f32.gmra.mrb[0].mxu0 %v534
  %v805 = vpop.f32.mrb[0].mxu0
  %v806 = vadd.f32 %v474, %v805
  %v807 = vpop.f32.mrb[0].mxu0
  %808 = vmatprep.mubr.f32.mxu0 0.0
  %809 = vmatmul.mubr.f32.gmra.mrb[0].mxu0 %v537
  %v810 = vpop.f32.mrb[0].mxu0
  %v811 = vadd.f32 %v474, %v810
  %v812 = vpop.f32.mrb[0].mxu0
  %813 = vmatprep.mubr.f32.mxu0 0.0
  %814 = vmatmul.mubr.f32.gmra.mrb[0].mxu0 %v540
  %v815 = vpop.f32.mrb[0].mxu0
  %v816 = vadd.f32 %v474, %v815
  %v817 = vpop.f32.mrb[0].mxu0
  %818 = vmatprep.mubr.f32.mxu0 0.0
  %819 = vmatmul.mubr.f32.gmra.mrb[0].mxu0 %v543
  %v820 = vpop.f32.mrb[0].mxu0
  %v821 = vadd.f32 %v474, %v820
  %v822 = vpop.f32.mrb[0].mxu0
  %823 = vmatprep.mubr.f32.mxu0 0.0
  %824 = vmatmul.mubr.f32.gmra.mrb[0].mxu0 %v546
  %v825 = vpop.f32.mrb[0].mxu0
  %v826 = vadd.f32 %v474, %v825
  %v827 = vpop.f32.mrb[0].mxu0
  %828 = vmatprep.mubr.f32.mxu0 0.0
  %829 = vmatmul.mubr.f32.gmra.mrb[0].mxu0 %v549
  %v830 = vpop.f32.mrb[0].mxu0
  %v831 = vadd.f32 %v474, %v830
  %v832 = vpop.f32.mrb[0].mxu0
  %833 = vmatprep.mubr.f32.mxu0 0.0
  %834 = vmatmul.mubr.f32.gmra.mrb[0].mxu0 %v552
  %v835 = vpop.f32.mrb[0].mxu0
  %v836 = vadd.f32 %v474, %v835
  %v837 = vpop.f32.mrb[0].mxu0
  %838 = vmatprep.mubr.f32.mxu0 0.0
  %839 = vmatmul.mubr.f32.gmra.mrb[0].mxu0 %v555
  %v840 = vpop.f32.mrb[0].mxu0
  %v841 = vadd.f32 %v474, %v840
  %v842 = vpop.f32.mrb[0].mxu0
  %843 = vmatprep.mubr.f32.mxu0 0.0
  %844 = vmatmul.mubr.f32.gmra.mrb[0].mxu0 %v558
  %v845 = vpop.f32.mrb[0].mxu0
  %v846 = vadd.f32 %v474, %v845
  %v847 = vpop.f32.mrb[0].mxu0
  %848 = vmatprep.mubr.f32.mxu0 0.0
  %849 = vmatmul.mubr.f32.gmra.mrb[0].mxu0 %v561
  %v850 = vpop.f32.mrb[0].mxu0
  %v851 = vadd.f32 %v474, %v850
  %v852 = vpop.f32.mrb[0].mxu0
  %853 = vmatprep.mubr.f32.mxu0 0.0
  %854 = vmatmul.mubr.f32.gmra.mrb[0].mxu0 %v564
  %v855 = vpop.f32.mrb[0].mxu0
  %v856 = vadd.f32 %v474, %v855
  %v857 = vpop.f32.mrb[0].mxu0
  %858 = vmatprep.mubr.f32.mxu0 0.0
  %859 = vmatmul.mubr.f32.gmra.mrb[0].mxu0 %v567
  %v860 = vpop.f32.mrb[0].mxu0
  %v861 = vadd.f32 %v474, %v860
  %v862 = vpop.f32.mrb[0].mxu0
  %863 = vmatprep.mubr.f32.mxu0 0.0
  %864 = vmatmul.mubr.f32.gmra.mrb[0].mxu0 %v570
  %v865 = vpop.f32.mrb[0].mxu0
  %v866 = vadd.f32 %v474, %v865
  %v867 = vpop.f32.mrb[0].mxu0
  %868 = vmatprep.mubr.f32.mxu0 0.0
  %869 = vmatmul.mubr.f32.gmra.mrb[0].mxu0 %v573
  %v870 = vpop.f32.mrb[0].mxu0
  %v871 = vadd.f32 %v474, %v870
  %v872 = vpop.f32.mrb[0].mxu0
  %873 = vmatprep.mubr.f32.mxu0 0.0
  %874 = vmatmul.mubr.f32.gmra.mrb[0].mxu0 %v576
  %v875 = vpop.f32.mrb[0].mxu0
  %v876 = vadd.f32 %v474, %v875
  %v877 = vpop.f32.mrb[0].mxu0
  %878 = vmatprep.mubr.f32.mxu0 0.0
  %879 = vmatmul.mubr.f32.gmra.mrb[0].mxu0 %v579
  %v880 = vpop.f32.mrb[0].mxu0
  %v881 = vadd.f32 %v474, %v880
  %v882 = vpop.f32.mrb[0].mxu0
  %883 = vmatprep.mubr.f32.mxu0 0.0
  %884 = vmatmul.mubr.f32.gmra.mrb[0].mxu0 %v582
  %v885 = vpop.f32.mrb[0].mxu0
  %v886 = vadd.f32 %v474, %v885
  %v887 = vpop.f32.mrb[0].mxu0
  %888 = vmatprep.mubr.f32.mxu0 0.0
  %889 = vmatmul.mubr.f32.gmra.mrb[0].mxu0 %v585
  %v890 = vpop.f32.mrb[0].mxu0
  %v891 = vadd.f32 %v474, %v890
  %v892 = vpop.f32.mrb[0].mxu0
  %893 = vmatprep.mubr.f32.mxu0 0.0
  %894 = vmatmul.mubr.f32.gmra.mrb[0].mxu0 %v588
  %v895 = vpop.f32.mrb[0].mxu0
  %v896 = vadd.f32 %v474, %v895
  %v897 = vpop.f32.mrb[0].mxu0
  %898 = vmatprep.mubr.f32.mxu0 0.0
  %899 = vmatmul.mubr.f32.gmra.mrb[0].mxu0 %v591
  %v900 = vpop.f32.mrb[0].mxu0
  %v901 = vadd.f32 %v474, %v900
  %v902 = vpop.f32.mrb[0].mxu0
  %903 = vmatprep.mubr.f32.mxu0 0.0
  %904 = vmatmul.mubr.f32.gmra.mrb[0].mxu0 %v594
  %v905 = vpop.f32.mrb[0].mxu0
  %v906 = vadd.f32 %v474, %v905
  %v907 = vpop.f32.mrb[0].mxu0
  %908 = vmatprep.mubr.f32.mxu0 0.0
  %909 = vmatmul.mubr.f32.gmra.mrb[0].mxu0 %v597
  %v910 = vpop.f32.mrb[0].mxu0
  %v911 = vadd.f32 %v474, %v910
  %v912 = vpop.f32.mrb[0].mxu0
  %913 = vmatprep.mubr.f32.mxu0 0.0
  %914 = vmatmul.mubr.f32.gmra.mrb[0].mxu0 %v600
  %v915 = vpop.f32.mrb[0].mxu0
  %v916 = vadd.f32 %v474, %v915
  %v917 = vpop.f32.mrb[0].mxu0
  %918 = vmatprep.mubr.f32.mxu0 0.0
  %919 = vmatmul.mubr.f32.gmra.mrb[0].mxu0 %v603
  %v920 = vpop.f32.mrb[0].mxu0
  %v921 = vadd.f32 %v474, %v920
  %v922 = vpop.f32.mrb[0].mxu0
  %923 = vmatprep.mubr.f32.mxu0 0.0
  %924 = vmatmul.mubr.f32.gmra.mrb[0].mxu0 %v606
  %v925 = vpop.f32.mrb[0].mxu0
  %v926 = vadd.f32 %v474, %v925
  %v927 = vpop.f32.mrb[0].mxu0
  %928 = vmatprep.mubr.f32.mxu0 0.0
  %929 = vmatmul.mubr.f32.gmra.mrb[0].mxu0 %v609
  %v930 = vpop.f32.mrb[0].mxu0
  %v931 = vadd.f32 %v474, %v930
  %v932 = vpop.f32.mrb[0].mxu0
  %933 = vmatprep.mubr.f32.mxu0 0.0
  %934 = vmatmul.mubr.f32.gmra.mrb[0].mxu0 %v612
  %v935 = vpop.f32.mrb[0].mxu0
  %v936 = vadd.f32 %v474, %v935
  %v937 = vpop.f32.mrb[0].mxu0
  %938 = vmatprep.mubr.f32.mxu0 0.0
  %939 = vmatmul.mubr.f32.gmra.mrb[0].mxu0 %v615
  %v940 = vpop.f32.mrb[0].mxu0
  %v941 = vadd.f32 %v474, %v940
  %v942 = vpop.f32.mrb[0].mxu0
  %943 = vmatprep.mubr.f32.mxu0 0.0
  %944 = vmatmul.mubr.f32.gmra.mrb[0].mxu0 %v618
  %v945 = vpop.f32.mrb[0].mxu0
  %v946 = vadd.f32 %v474, %v945
  %v947 = vpop.f32.mrb[0].mxu0
  %948 = vmatprep.mubr.f32.mxu0 0.0
  %949 = vmatmul.mubr.f32.gmra.mrb[0].mxu0 %v621
  %v950 = vpop.f32.mrb[0].mxu0
  %v951 = vadd.f32 %v474, %v950
  %v952 = vpop.f32.mrb[0].mxu0
  %953 = vmatprep.mubr.f32.mxu0 0.0
  %954 = vmatmul.mubr.f32.gmra.mrb[0].mxu0 %v624
  %v955 = vpop.f32.mrb[0].mxu0
  %v956 = vadd.f32 %v474, %v955
  %v957 = vpop.f32.mrb[0].mxu0
  %958 = vmatprep.mubr.f32.mxu0 0.0
  %959 = vmatmul.mubr.f32.gmra.mrb[0].mxu0 %v627
  %v960 = vpop.f32.mrb[0].mxu0
  %v961 = vadd.f32 %v474, %v960
  %v962 = vpop.f32.mrb[0].mxu0
  %963 = vmatprep.mubr.f32.mxu0 0.0
  %964 = vmatmul.mubr.f32.gmra.mrb[0].mxu0 %v630
  %v965 = vpop.f32.mrb[0].mxu0
  %v966 = vadd.f32 %v474, %v965
  %v967 = vpop.f32.mrb[0].mxu0
  %968 = vmatprep.mubr.f32.mxu0 0.0
  %969 = vmatmul.mubr.f32.gmra.mrb[0].mxu0 %v633
  %v970 = vpop.f32.mrb[0].mxu0
  %v971 = vadd.f32 %v474, %v970
  %v972 = vpop.f32.mrb[0].mxu0
  %973 = vmatprep.mubr.f32.mxu0 0.0
  %974 = vmatmul.mubr.f32.gmra.mrb[0].mxu0 %v636
  %v975 = vpop.f32.mrb[0].mxu0
  %v976 = vadd.f32 %v474, %v975
  %v977 = vpop.f32.mrb[0].mxu0
  %978 = vmatprep.mubr.f32.mxu0 0.0
  %979 = vmatmul.mubr.f32.gmra.mrb[0].mxu0 %v639
  %v980 = vpop.f32.mrb[0].mxu0
  %v981 = vadd.f32 %v474, %v980
  %v982 = vpop.f32.mrb[0].mxu0
  %983 = vmatprep.mubr.f32.mxu0 0.0
  %984 = vmatmul.mubr.f32.gmra.mrb[0].mxu0 %v642
  %v985 = vpop.f32.mrb[0].mxu0
  %v986 = vadd.f32 %v474, %v985
  %v987 = vpop.f32.mrb[0].mxu0
  %988 = vdwg.mxu0
  %v989 = vld [vmem:[%s8] sm:$0xff]
  %v990 = vld [vmem:[%s8 + $0x8] sm:$0xff]
  %v991 = vld [vmem:[%s8 + $0x10] sm:$0xff]
  %v992 = vld [vmem:[%s8 + $0x18] sm:$0xff]
  %v993 = vld [vmem:[%s11] sm:$0x1]
  %v995 = vlaneseq
  %v996 = vshrl.u32 %v995, 7
  %v997 = vsub.s32 0, %v996
  %v998 = vrot.slane %v993, %v997
  %v1001 = vsel %vm191, %v129, 0
  %v1004 = vsel %vm191, %v130, 0
  %v1007 = vsel %vm191, %v131, 0
  %v1010 = vsel %vm191, %v132, 0
  %v1013 = vsel %vm191, %v133, 0
  %v1016 = vsel %vm191, %v134, 0
  %v1019 = vsel %vm191, %v135, 0
  %v1022 = vsel %vm191, %v136, 0
  %v1025 = vsel %vm191, %v137, 0
  %v1028 = vsel %vm191, %v138, 0
  %v1031 = vsel %vm191, %v139, 0
  %v1034 = vsel %vm191, %v140, 0
  %v1037 = vsel %vm191, %v141, 0
  %v1040 = vsel %vm191, %v142, 0
  %v1043 = vsel %vm191, %v143, 0
  %v1046 = vsel %vm191, %v144, 0
  %v1049 = vsel %vm191, %v145, 0
  %v1052 = vsel %vm191, %v146, 0
  %v1055 = vsel %vm191, %v147, 0
  %v1058 = vsel %vm191, %v148, 0
  %v1061 = vsel %vm191, %v149, 0
  %v1064 = vsel %vm191, %v150, 0
  %v1067 = vsel %vm191, %v151, 0
  %v1070 = vsel %vm191, %v152, 0
  %v1073 = vsel %vm191, %v153, 0
  %v1076 = vsel %vm191, %v154, 0
  %v1079 = vsel %vm191, %v155, 0
  %v1082 = vsel %vm191, %v156, 0
  %v1085 = vsel %vm191, %v157, 0
  %v1088 = vsel %vm191, %v158, 0
  %v1091 = vsel %vm191, %v159, 0
  %v1094 = vsel %vm191, %v160, 0
  %v1097 = vsel %vm191, %v161, 0
  %v1100 = vsel %vm191, %v162, 0
  %v1103 = vsel %vm191, %v163, 0
  %v1106 = vsel %vm191, %v164, 0
  %v1109 = vsel %vm191, %v165, 0
  %v1112 = vsel %vm191, %v166, 0
  %v1115 = vsel %vm191, %v167, 0
  %v1118 = vsel %vm191, %v168, 0
  %v1121 = vsel %vm191, %v169, 0
  %v1124 = vsel %vm191, %v170, 0
  %v1127 = vsel %vm191, %v171, 0
  %v1130 = vsel %vm191, %v172, 0
  %v1133 = vsel %vm191, %v173, 0
  %v1136 = vsel %vm191, %v174, 0
  %v1139 = vsel %vm191, %v175, 0
  %v1142 = vsel %vm191, %v176, 0
  %v1145 = vsel %vm191, %v177, 0
  %v1148 = vsel %vm191, %v178, 0
  %v1151 = vsel %vm191, %v179, 0
  %v1154 = vsel %vm191, %v180, 0
  %v1157 = vsel %vm191, %v181, 0
  %v1160 = vsel %vm191, %v182, 0
  %v1163 = vsel %vm191, %v183, 0
  %v1166 = vsel %vm191, %v184, 0
  %1168 = vmatprep.subr.mxu0 0.0
  %1169 = vmatpush1.msra.mxu0 %v989
  %1170 = vmatprep.subr.mxu0 0.0
  %1171 = vmatpush1.msra.mxu0 %v990
  %1172 = vmatprep.subr.mxu0 0.0
  %1173 = vmatpush1.msra.mxu0 %v991
  %1174 = vmatprep.subr.mxu0 0.0
  %1175 = vmatpush1.msra.mxu0 %v992
  %1176 = vmatprep.subr.mxu0 0.0
  %1177 = vmatpush1.msra.mxu0 0.0
  %1178 = vmatprep.subr.mxu0 0.0
  %1179 = vmatpush1.msra.mxu0 0.0
  %1180 = vmatprep.subr.mxu0 0.0
  %1181 = vmatpush1.msra.mxu0 0.0
  %1182 = vmatprep.subr.mxu0 0.0
  %1183 = vmatpush1.msra.mxu0 0.0
  %1184 = vmatprep.subr.mxu0 0.0
  %1185 = vmatpush1.msra.mxu0 0.0
  %1186 = vmatprep.subr.mxu0 0.0
  %1187 = vmatpush1.msra.mxu0 0.0
  %1188 = vmatprep.subr.mxu0 0.0
  %1189 = vmatpush1.msra.mxu0 0.0
  %1190 = vmatprep.subr.mxu0 0.0
  %1191 = vmatpush1.msra.mxu0 0.0
  %1192 = vmatprep.subr.mxu0 0.0
  %1193 = vmatpush1.msra.mxu0 0.0
  %1194 = vmatprep.subr.mxu0 0.0
  %1195 = vmatpush1.msra.mxu0 0.0
  %1196 = vmatprep.subr.mxu0 0.0
  %1197 = vmatpush1.msra.mxu0 0.0
  %1198 = vmatprep.subr.mxu0 0.0
  %1199 = vmatpush1.msra.mxu0 0.0
  %1200 = vmatprep.subr.mxu0 0.0
  %1201 = vmatpush1.msra.mxu0 0.0
  %1202 = vmatprep.subr.mxu0 0.0
  %1203 = vmatpush1.msra.mxu0 0.0
  %1204 = vmatprep.subr.mxu0 0.0
  %1205 = vmatpush1.msra.mxu0 0.0
  %1206 = vmatprep.subr.mxu0 0.0
  %1207 = vmatpush1.msra.mxu0 0.0
  %1208 = vmatprep.subr.mxu0 0.0
  %1209 = vmatpush1.msra.mxu0 0.0
  %1210 = vmatprep.subr.mxu0 0.0
  %1211 = vmatpush1.msra.mxu0 0.0
  %1212 = vmatprep.subr.mxu0 0.0
  %1213 = vmatpush1.msra.mxu0 0.0
  %1214 = vmatprep.subr.mxu0 0.0
  %1215 = vmatpush1.msra.mxu0 0.0
  %1216 = vmatprep.subr.mxu0 0.0
  %1217 = vmatpush1.msra.mxu0 0.0
  %1218 = vmatprep.subr.mxu0 0.0
  %1219 = vmatpush1.msra.mxu0 0.0
  %1220 = vmatprep.subr.mxu0 0.0
  %1221 = vmatpush1.msra.mxu0 0.0
  %1222 = vmatprep.subr.mxu0 0.0
  %1223 = vmatpush1.msra.mxu0 0.0
  %1224 = vmatprep.subr.mxu0 0.0
  %1225 = vmatpush1.msra.mxu0 0.0
  %1226 = vmatprep.subr.mxu0 0.0
  %1227 = vmatpush1.msra.mxu0 0.0
  %1228 = vmatprep.subr.mxu0 0.0
  %1229 = vmatpush1.msra.mxu0 0.0
  %1230 = vmatprep.subr.mxu0 0.0
  %1231 = vmatpush1.msra.mxu0 0.0
  %1232 = vmatprep.mubr.f32.mxu0 0.0
  %1233 = vmatmul.mubr.f32.gmra.mrb[0].mxu0 %v1001
  %v1234 = vpop.f32.mrb[0].mxu0
  %v1235 = vadd.f32 %v998, %v1234
  %v1236 = vpop.f32.mrb[0].mxu0
  %1237 = vmatprep.mubr.f32.mxu0 0.0
  %1238 = vmatmul.mubr.f32.gmra.mrb[0].mxu0 %v1004
  %v1239 = vpop.f32.mrb[0].mxu0
  %v1240 = vadd.f32 %v998, %v1239
  %v1241 = vpop.f32.mrb[0].mxu0
  %1242 = vmatprep.mubr.f32.mxu0 0.0
  %1243 = vmatmul.mubr.f32.gmra.mrb[0].mxu0 %v1007
  %v1244 = vpop.f32.mrb[0].mxu0
  %v1245 = vadd.f32 %v998, %v1244
  %v1246 = vpop.f32.mrb[0].mxu0
  %1247 = vmatprep.mubr.f32.mxu0 0.0
  %1248 = vmatmul.mubr.f32.gmra.mrb[0].mxu0 %v1010
  %v1249 = vpop.f32.mrb[0].mxu0
  %v1250 = vadd.f32 %v998, %v1249
  %v1251 = vpop.f32.mrb[0].mxu0
  %1252 = vmatprep.mubr.f32.mxu0 0.0
  %1253 = vmatmul.mubr.f32.gmra.mrb[0].mxu0 %v1013
  %v1254 = vpop.f32.mrb[0].mxu0
  %v1255 = vadd.f32 %v998, %v1254
  %v1256 = vpop.f32.mrb[0].mxu0
  %1257 = vmatprep.mubr.f32.mxu0 0.0
  %1258 = vmatmul.mubr.f32.gmra.mrb[0].mxu0 %v1016
  %v1259 = vpop.f32.mrb[0].mxu0
  %v1260 = vadd.f32 %v998, %v1259
  %v1261 = vpop.f32.mrb[0].mxu0
  %1262 = vmatprep.mubr.f32.mxu0 0.0
  %1263 = vmatmul.mubr.f32.gmra.mrb[0].mxu0 %v1019
  %v1264 = vpop.f32.mrb[0].mxu0
  %v1265 = vadd.f32 %v998, %v1264
  %v1266 = vpop.f32.mrb[0].mxu0
  %1267 = vmatprep.mubr.f32.mxu0 0.0
  %1268 = vmatmul.mubr.f32.gmra.mrb[0].mxu0 %v1022
  %v1269 = vpop.f32.mrb[0].mxu0
  %v1270 = vadd.f32 %v998, %v1269
  %v1271 = vpop.f32.mrb[0].mxu0
  %1272 = vmatprep.mubr.f32.mxu0 0.0
  %1273 = vmatmul.mubr.f32.gmra.mrb[0].mxu0 %v1025
  %v1274 = vpop.f32.mrb[0].mxu0
  %v1275 = vadd.f32 %v998, %v1274
  %v1276 = vpop.f32.mrb[0].mxu0
  %1277 = vmatprep.mubr.f32.mxu0 0.0
  %1278 = vmatmul.mubr.f32.gmra.mrb[0].mxu0 %v1028
  %v1279 = vpop.f32.mrb[0].mxu0
  %v1280 = vadd.f32 %v998, %v1279
  %v1281 = vpop.f32.mrb[0].mxu0
  %1282 = vmatprep.mubr.f32.mxu0 0.0
  %1283 = vmatmul.mubr.f32.gmra.mrb[0].mxu0 %v1031
  %v1284 = vpop.f32.mrb[0].mxu0
  %v1285 = vadd.f32 %v998, %v1284
  %v1286 = vpop.f32.mrb[0].mxu0
  %1287 = vmatprep.mubr.f32.mxu0 0.0
  %1288 = vmatmul.mubr.f32.gmra.mrb[0].mxu0 %v1034
  %v1289 = vpop.f32.mrb[0].mxu0
  %v1290 = vadd.f32 %v998, %v1289
  %v1291 = vpop.f32.mrb[0].mxu0
  %1292 = vmatprep.mubr.f32.mxu0 0.0
  %1293 = vmatmul.mubr.f32.gmra.mrb[0].mxu0 %v1037
  %v1294 = vpop.f32.mrb[0].mxu0
  %v1295 = vadd.f32 %v998, %v1294
  %v1296 = vpop.f32.mrb[0].mxu0
  %1297 = vmatprep.mubr.f32.mxu0 0.0
  %1298 = vmatmul.mubr.f32.gmra.mrb[0].mxu0 %v1040
  %v1299 = vpop.f32.mrb[0].mxu0
  %v1300 = vadd.f32 %v998, %v1299
  %v1301 = vpop.f32.mrb[0].mxu0
  %1302 = vmatprep.mubr.f32.mxu0 0.0
  %1303 = vmatmul.mubr.f32.gmra.mrb[0].mxu0 %v1043
  %v1304 = vpop.f32.mrb[0].mxu0
  %v1305 = vadd.f32 %v998, %v1304
  %v1306 = vpop.f32.mrb[0].mxu0
  %1307 = vmatprep.mubr.f32.mxu0 0.0
  %1308 = vmatmul.mubr.f32.gmra.mrb[0].mxu0 %v1046
  %v1309 = vpop.f32.mrb[0].mxu0
  %v1310 = vadd.f32 %v998, %v1309
  %v1311 = vpop.f32.mrb[0].mxu0
  %1312 = vmatprep.mubr.f32.mxu0 0.0
  %1313 = vmatmul.mubr.f32.gmra.mrb[0].mxu0 %v1049
  %v1314 = vpop.f32.mrb[0].mxu0
  %v1315 = vadd.f32 %v998, %v1314
  %v1316 = vpop.f32.mrb[0].mxu0
  %1317 = vmatprep.mubr.f32.mxu0 0.0
  %1318 = vmatmul.mubr.f32.gmra.mrb[0].mxu0 %v1052
  %v1319 = vpop.f32.mrb[0].mxu0
  %v1320 = vadd.f32 %v998, %v1319
  %v1321 = vpop.f32.mrb[0].mxu0
  %1322 = vmatprep.mubr.f32.mxu0 0.0
  %1323 = vmatmul.mubr.f32.gmra.mrb[0].mxu0 %v1055
  %v1324 = vpop.f32.mrb[0].mxu0
  %v1325 = vadd.f32 %v998, %v1324
  %v1326 = vpop.f32.mrb[0].mxu0
  %1327 = vmatprep.mubr.f32.mxu0 0.0
  %1328 = vmatmul.mubr.f32.gmra.mrb[0].mxu0 %v1058
  %v1329 = vpop.f32.mrb[0].mxu0
  %v1330 = vadd.f32 %v998, %v1329
  %v1331 = vpop.f32.mrb[0].mxu0
  %1332 = vmatprep.mubr.f32.mxu0 0.0
  %1333 = vmatmul.mubr.f32.gmra.mrb[0].mxu0 %v1061
  %v1334 = vpop.f32.mrb[0].mxu0
  %v1335 = vadd.f32 %v998, %v1334
  %v1336 = vpop.f32.mrb[0].mxu0
  %1337 = vmatprep.mubr.f32.mxu0 0.0
  %1338 = vmatmul.mubr.f32.gmra.mrb[0].mxu0 %v1064
  %v1339 = vpop.f32.mrb[0].mxu0
  %v1340 = vadd.f32 %v998, %v1339
  %v1341 = vpop.f32.mrb[0].mxu0
  %1342 = vmatprep.mubr.f32.mxu0 0.0
  %1343 = vmatmul.mubr.f32.gmra.mrb[0].mxu0 %v1067
  %v1344 = vpop.f32.mrb[0].mxu0
  %v1345 = vadd.f32 %v998, %v1344
  %v1346 = vpop.f32.mrb[0].mxu0
  %1347 = vmatprep.mubr.f32.mxu0 0.0
  %1348 = vmatmul.mubr.f32.gmra.mrb[0].mxu0 %v1070
  %v1349 = vpop.f32.mrb[0].mxu0
  %v1350 = vadd.f32 %v998, %v1349
  %v1351 = vpop.f32.mrb[0].mxu0
  %1352 = vmatprep.mubr.f32.mxu0 0.0
  %1353 = vmatmul.mubr.f32.gmra.mrb[0].mxu0 %v1073
  %v1354 = vpop.f32.mrb[0].mxu0
  %v1355 = vadd.f32 %v998, %v1354
  %v1356 = vpop.f32.mrb[0].mxu0
  %1357 = vmatprep.mubr.f32.mxu0 0.0
  %1358 = vmatmul.mubr.f32.gmra.mrb[0].mxu0 %v1076
  %v1359 = vpop.f32.mrb[0].mxu0
  %v1360 = vadd.f32 %v998, %v1359
  %v1361 = vpop.f32.mrb[0].mxu0
  %1362 = vmatprep.mubr.f32.mxu0 0.0
  %1363 = vmatmul.mubr.f32.gmra.mrb[0].mxu0 %v1079
  %v1364 = vpop.f32.mrb[0].mxu0
  %v1365 = vadd.f32 %v998, %v1364
  %v1366 = vpop.f32.mrb[0].mxu0
  %1367 = vmatprep.mubr.f32.mxu0 0.0
  %1368 = vmatmul.mubr.f32.gmra.mrb[0].mxu0 %v1082
  %v1369 = vpop.f32.mrb[0].mxu0
  %v1370 = vadd.f32 %v998, %v1369
  %v1371 = vpop.f32.mrb[0].mxu0
  %1372 = vmatprep.mubr.f32.mxu0 0.0
  %1373 = vmatmul.mubr.f32.gmra.mrb[0].mxu0 %v1085
  %v1374 = vpop.f32.mrb[0].mxu0
  %v1375 = vadd.f32 %v998, %v1374
  %v1376 = vpop.f32.mrb[0].mxu0
  %1377 = vmatprep.mubr.f32.mxu0 0.0
  %1378 = vmatmul.mubr.f32.gmra.mrb[0].mxu0 %v1088
  %v1379 = vpop.f32.mrb[0].mxu0
  %v1380 = vadd.f32 %v998, %v1379
  %v1381 = vpop.f32.mrb[0].mxu0
  %1382 = vmatprep.mubr.f32.mxu0 0.0
  %1383 = vmatmul.mubr.f32.gmra.mrb[0].mxu0 %v1091
  %v1384 = vpop.f32.mrb[0].mxu0
  %v1385 = vadd.f32 %v998, %v1384
  %v1386 = vpop.f32.mrb[0].mxu0
  %1387 = vmatprep.mubr.f32.mxu0 0.0
  %1388 = vmatmul.mubr.f32.gmra.mrb[0].mxu0 %v1094
  %v1389 = vpop.f32.mrb[0].mxu0
  %v1390 = vadd.f32 %v998, %v1389
  %v1391 = vpop.f32.mrb[0].mxu0
  %1392 = vmatprep.mubr.f32.mxu0 0.0
  %1393 = vmatmul.mubr.f32.gmra.mrb[0].mxu0 %v1097
  %v1394 = vpop.f32.mrb[0].mxu0
  %v1395 = vadd.f32 %v998, %v1394
  %v1396 = vpop.f32.mrb[0].mxu0
  %1397 = vmatprep.mubr.f32.mxu0 0.0
  %1398 = vmatmul.mubr.f32.gmra.mrb[0].mxu0 %v1100
  %v1399 = vpop.f32.mrb[0].mxu0
  %v1400 = vadd.f32 %v998, %v1399
  %v1401 = vpop.f32.mrb[0].mxu0
  %1402 = vmatprep.mubr.f32.mxu0 0.0
  %1403 = vmatmul.mubr.f32.gmra.mrb[0].mxu0 %v1103
  %v1404 = vpop.f32.mrb[0].mxu0
  %v1405 = vadd.f32 %v998, %v1404
  %v1406 = vpop.f32.mrb[0].mxu0
  %1407 = vmatprep.mubr.f32.mxu0 0.0
  %1408 = vmatmul.mubr.f32.gmra.mrb[0].mxu0 %v1106
  %v1409 = vpop.f32.mrb[0].mxu0
  %v1410 = vadd.f32 %v998, %v1409
  %v1411 = vpop.f32.mrb[0].mxu0
  %1412 = vmatprep.mubr.f32.mxu0 0.0
  %1413 = vmatmul.mubr.f32.gmra.mrb[0].mxu0 %v1109
  %v1414 = vpop.f32.mrb[0].mxu0
  %v1415 = vadd.f32 %v998, %v1414
  %v1416 = vpop.f32.mrb[0].mxu0
  %1417 = vmatprep.mubr.f32.mxu0 0.0
  %1418 = vmatmul.mubr.f32.gmra.mrb[0].mxu0 %v1112
  %v1419 = vpop.f32.mrb[0].mxu0
  %v1420 = vadd.f32 %v998, %v1419
  %v1421 = vpop.f32.mrb[0].mxu0
  %1422 = vmatprep.mubr.f32.mxu0 0.0
  %1423 = vmatmul.mubr.f32.gmra.mrb[0].mxu0 %v1115
  %v1424 = vpop.f32.mrb[0].mxu0
  %v1425 = vadd.f32 %v998, %v1424
  %v1426 = vpop.f32.mrb[0].mxu0
  %1427 = vmatprep.mubr.f32.mxu0 0.0
  %1428 = vmatmul.mubr.f32.gmra.mrb[0].mxu0 %v1118
  %v1429 = vpop.f32.mrb[0].mxu0
  %v1430 = vadd.f32 %v998, %v1429
  %v1431 = vpop.f32.mrb[0].mxu0
  %1432 = vmatprep.mubr.f32.mxu0 0.0
  %1433 = vmatmul.mubr.f32.gmra.mrb[0].mxu0 %v1121
  %v1434 = vpop.f32.mrb[0].mxu0
  %v1435 = vadd.f32 %v998, %v1434
  %v1436 = vpop.f32.mrb[0].mxu0
  %1437 = vmatprep.mubr.f32.mxu0 0.0
  %1438 = vmatmul.mubr.f32.gmra.mrb[0].mxu0 %v1124
  %v1439 = vpop.f32.mrb[0].mxu0
  %v1440 = vadd.f32 %v998, %v1439
  %v1441 = vpop.f32.mrb[0].mxu0
  %1442 = vmatprep.mubr.f32.mxu0 0.0
  %1443 = vmatmul.mubr.f32.gmra.mrb[0].mxu0 %v1127
  %v1444 = vpop.f32.mrb[0].mxu0
  %v1445 = vadd.f32 %v998, %v1444
  %v1446 = vpop.f32.mrb[0].mxu0
  %1447 = vmatprep.mubr.f32.mxu0 0.0
  %1448 = vmatmul.mubr.f32.gmra.mrb[0].mxu0 %v1130
  %v1449 = vpop.f32.mrb[0].mxu0
  %v1450 = vadd.f32 %v998, %v1449
  %v1451 = vpop.f32.mrb[0].mxu0
  %1452 = vmatprep.mubr.f32.mxu0 0.0
  %1453 = vmatmul.mubr.f32.gmra.mrb[0].mxu0 %v1133
  %v1454 = vpop.f32.mrb[0].mxu0
  %v1455 = vadd.f32 %v998, %v1454
  %v1456 = vpop.f32.mrb[0].mxu0
  %1457 = vmatprep.mubr.f32.mxu0 0.0
  %1458 = vmatmul.mubr.f32.gmra.mrb[0].mxu0 %v1136
  %v1459 = vpop.f32.mrb[0].mxu0
  %v1460 = vadd.f32 %v998, %v1459
  %v1461 = vpop.f32.mrb[0].mxu0
  %1462 = vmatprep.mubr.f32.mxu0 0.0
  %1463 = vmatmul.mubr.f32.gmra.mrb[0].mxu0 %v1139
  %v1464 = vpop.f32.mrb[0].mxu0
  %v1465 = vadd.f32 %v998, %v1464
  %v1466 = vpop.f32.mrb[0].mxu0
  %1467 = vmatprep.mubr.f32.mxu0 0.0
  %1468 = vmatmul.mubr.f32.gmra.mrb[0].mxu0 %v1142
  %v1469 = vpop.f32.mrb[0].mxu0
  %v1470 = vadd.f32 %v998, %v1469
  %v1471 = vpop.f32.mrb[0].mxu0
  %1472 = vmatprep.mubr.f32.mxu0 0.0
  %1473 = vmatmul.mubr.f32.gmra.mrb[0].mxu0 %v1145
  %v1474 = vpop.f32.mrb[0].mxu0
  %v1475 = vadd.f32 %v998, %v1474
  %v1476 = vpop.f32.mrb[0].mxu0
  %1477 = vmatprep.mubr.f32.mxu0 0.0
  %1478 = vmatmul.mubr.f32.gmra.mrb[0].mxu0 %v1148
  %v1479 = vpop.f32.mrb[0].mxu0
  %v1480 = vadd.f32 %v998, %v1479
  %v1481 = vpop.f32.mrb[0].mxu0
  %1482 = vmatprep.mubr.f32.mxu0 0.0
  %1483 = vmatmul.mubr.f32.gmra.mrb[0].mxu0 %v1151
  %v1484 = vpop.f32.mrb[0].mxu0
  %v1485 = vadd.f32 %v998, %v1484
  %v1486 = vpop.f32.mrb[0].mxu0
  %1487 = vmatprep.mubr.f32.mxu0 0.0
  %1488 = vmatmul.mubr.f32.gmra.mrb[0].mxu0 %v1154
  %v1489 = vpop.f32.mrb[0].mxu0
  %v1490 = vadd.f32 %v998, %v1489
  %v1491 = vpop.f32.mrb[0].mxu0
  %1492 = vmatprep.mubr.f32.mxu0 0.0
  %1493 = vmatmul.mubr.f32.gmra.mrb[0].mxu0 %v1157
  %v1494 = vpop.f32.mrb[0].mxu0
  %v1495 = vadd.f32 %v998, %v1494
  %v1496 = vpop.f32.mrb[0].mxu0
  %1497 = vmatprep.mubr.f32.mxu0 0.0
  %1498 = vmatmul.mubr.f32.gmra.mrb[0].mxu0 %v1160
  %v1499 = vpop.f32.mrb[0].mxu0
  %v1500 = vadd.f32 %v998, %v1499
  %v1501 = vpop.f32.mrb[0].mxu0
  %1502 = vmatprep.mubr.f32.mxu0 0.0
  %1503 = vmatmul.mubr.f32.gmra.mrb[0].mxu0 %v1163
  %v1504 = vpop.f32.mrb[0].mxu0
  %v1505 = vadd.f32 %v998, %v1504
  %v1506 = vpop.f32.mrb[0].mxu0
  %1507 = vmatprep.mubr.f32.mxu0 0.0
  %1508 = vmatmul.mubr.f32.gmra.mrb[0].mxu0 %v1166
  %v1509 = vpop.f32.mrb[0].mxu0
  %v1510 = vadd.f32 %v998, %v1509
  %v1511 = vpop.f32.mrb[0].mxu0
  %1512 = vdwg.mxu0
  %v1513 = vmul.f32 %v711, %v427
  %v1514 = vmul.f32 %v716, %v432
  %v1515 = vmul.f32 %v721, %v437
  %v1516 = vmul.f32 %v726, %v442
  %v1517 = vmul.f32 %v731, %v447
  %v1518 = vmul.f32 %v736, %v452
  %v1519 = vmul.f32 %v741, %v457
  %v1520 = vmul.f32 %v746, %v462
  %v1521 = vmul.f32 %v751, %v427
  %v1522 = vmul.f32 %v756, %v432
  %v1523 = vmul.f32 %v761, %v437
  %v1524 = vmul.f32 %v766, %v442
  %v1525 = vmul.f32 %v771, %v447
  %v1526 = vmul.f32 %v776, %v452
  %v1527 = vmul.f32 %v781, %v457
  %v1528 = vmul.f32 %v786, %v462
  %v1529 = vmul.f32 %v791, %v427
  %v1530 = vmul.f32 %v796, %v432
  %v1531 = vmul.f32 %v801, %v437
  %v1532 = vmul.f32 %v806, %v442
  %v1533 = vmul.f32 %v811, %v447
  %v1534 = vmul.f32 %v816, %v452
  %v1535 = vmul.f32 %v821, %v457
  %v1536 = vmul.f32 %v826, %v462
  %v1537 = vmul.f32 %v831, %v427
  %v1538 = vmul.f32 %v836, %v432
  %v1539 = vmul.f32 %v841, %v437
  %v1540 = vmul.f32 %v846, %v442
  %v1541 = vmul.f32 %v851, %v447
  %v1542 = vmul.f32 %v856, %v452
  %v1543 = vmul.f32 %v861, %v457
  %v1544 = vmul.f32 %v866, %v462
  %v1545 = vmul.f32 %v871, %v427
  %v1546 = vmul.f32 %v876, %v432
  %v1547 = vmul.f32 %v881, %v437
  %v1548 = vmul.f32 %v886, %v442
  %v1549 = vmul.f32 %v891, %v447
  %v1550 = vmul.f32 %v896, %v452
  %v1551 = vmul.f32 %v901, %v457
  %v1552 = vmul.f32 %v906, %v462
  %v1553 = vmul.f32 %v911, %v427
  %v1554 = vmul.f32 %v916, %v432
  %v1555 = vmul.f32 %v921, %v437
  %v1556 = vmul.f32 %v926, %v442
  %v1557 = vmul.f32 %v931, %v447
  %v1558 = vmul.f32 %v936, %v452
  %v1559 = vmul.f32 %v941, %v457
  %v1560 = vmul.f32 %v946, %v462
  %v1561 = vmul.f32 %v951, %v427
  %v1562 = vmul.f32 %v956, %v432
  %v1563 = vmul.f32 %v961, %v437
  %v1564 = vmul.f32 %v966, %v442
  %v1565 = vmul.f32 %v971, %v447
  %v1566 = vmul.f32 %v976, %v452
  %v1567 = vmul.f32 %v981, %v457
  %v1568 = vmul.f32 %v986, %v462
  %v1570 = vsel %vm191, %v1513, 0
  %v1573 = vsel %vm191, %v1514, 0
  %v1576 = vsel %vm191, %v1515, 0
  %v1579 = vsel %vm191, %v1516, 0
  %v1582 = vsel %vm191, %v1517, 0
  %v1585 = vsel %vm191, %v1518, 0
  %v1588 = vsel %vm191, %v1519, 0
  %v1591 = vsel %vm191, %v1520, 0
  %v1594 = vsel %vm191, %v1521, 0
  %v1597 = vsel %vm191, %v1522, 0
  %v1600 = vsel %vm191, %v1523, 0
  %v1603 = vsel %vm191, %v1524, 0
  %v1606 = vsel %vm191, %v1525, 0
  %v1609 = vsel %vm191, %v1526, 0
  %v1612 = vsel %vm191, %v1527, 0
  %v1615 = vsel %vm191, %v1528, 0
  %v1618 = vsel %vm191, %v1529, 0
  %v1621 = vsel %vm191, %v1530, 0
  %v1624 = vsel %vm191, %v1531, 0
  %v1627 = vsel %vm191, %v1532, 0
  %v1630 = vsel %vm191, %v1533, 0
  %v1633 = vsel %vm191, %v1534, 0
  %v1636 = vsel %vm191, %v1535, 0
  %v1639 = vsel %vm191, %v1536, 0
  %v1642 = vsel %vm191, %v1537, 0
  %v1645 = vsel %vm191, %v1538, 0
  %v1648 = vsel %vm191, %v1539, 0
  %v1651 = vsel %vm191, %v1540, 0
  %v1654 = vsel %vm191, %v1541, 0
  %v1657 = vsel %vm191, %v1542, 0
  %v1660 = vsel %vm191, %v1543, 0
  %v1663 = vsel %vm191, %v1544, 0
  %v1666 = vsel %vm191, %v1545, 0
  %v1669 = vsel %vm191, %v1546, 0
  %v1672 = vsel %vm191, %v1547, 0
  %v1675 = vsel %vm191, %v1548, 0
  %v1678 = vsel %vm191, %v1549, 0
  %v1681 = vsel %vm191, %v1550, 0
  %v1684 = vsel %vm191, %v1551, 0
  %v1687 = vsel %vm191, %v1552, 0
  %v1690 = vsel %vm191, %v1553, 0
  %v1693 = vsel %vm191, %v1554, 0
  %v1696 = vsel %vm191, %v1555, 0
  %v1699 = vsel %vm191, %v1556, 0
  %v1702 = vsel %vm191, %v1557, 0
  %v1705 = vsel %vm191, %v1558, 0
  %v1708 = vsel %vm191, %v1559, 0
  %v1711 = vsel %vm191, %v1560, 0
  %v1714 = vsel %vm191, %v1561, 0
  %v1717 = vsel %vm191, %v1562, 0
  %v1720 = vsel %vm191, %v1563, 0
  %v1723 = vsel %vm191, %v1564, 0
  %v1726 = vsel %vm191, %v1565, 0
  %v1729 = vsel %vm191, %v1566, 0
  %v1732 = vsel %vm191, %v1567, 0
  %v1735 = vsel %vm191, %v1568, 0
  %1737 = vmatprep.subr.mxu0 0.0
  %1738 = vmatpush1.msra.mxu0 %v185
  %1739 = vmatprep.subr.mxu0 0.0
  %1740 = vmatpush1.msra.mxu0 %v186
  %1741 = vmatprep.subr.mxu0 0.0
  %1742 = vmatpush1.msra.mxu0 %v187
  %1743 = vmatprep.subr.mxu0 0.0
  %1744 = vmatpush1.msra.mxu0 %v188
  %1745 = vmatprep.subr.mxu0 0.0
  %1746 = vmatpush1.msra.mxu0 0.0
  %1747 = vmatprep.subr.mxu0 0.0
  %1748 = vmatpush1.msra.mxu0 0.0
  %1749 = vmatprep.subr.mxu0 0.0
  %1750 = vmatpush1.msra.mxu0 0.0
  %1751 = vmatprep.subr.mxu0 0.0
  %1752 = vmatpush1.msra.mxu0 0.0
  %1753 = vmatprep.subr.mxu0 0.0
  %1754 = vmatpush1.msra.mxu0 0.0
  %1755 = vmatprep.subr.mxu0 0.0
  %1756 = vmatpush1.msra.mxu0 0.0
  %1757 = vmatprep.subr.mxu0 0.0
  %1758 = vmatpush1.msra.mxu0 0.0
  %1759 = vmatprep.subr.mxu0 0.0
  %1760 = vmatpush1.msra.mxu0 0.0
  %1761 = vmatprep.subr.mxu0 0.0
  %1762 = vmatpush1.msra.mxu0 0.0
  %1763 = vmatprep.subr.mxu0 0.0
  %1764 = vmatpush1.msra.mxu0 0.0
  %1765 = vmatprep.subr.mxu0 0.0
  %1766 = vmatpush1.msra.mxu0 0.0
  %1767 = vmatprep.subr.mxu0 0.0
  %1768 = vmatpush1.msra.mxu0 0.0
  %1769 = vmatprep.subr.mxu0 0.0
  %1770 = vmatpush1.msra.mxu0 0.0
  %1771 = vmatprep.subr.mxu0 0.0
  %1772 = vmatpush1.msra.mxu0 0.0
  %1773 = vmatprep.subr.mxu0 0.0
  %1774 = vmatpush1.msra.mxu0 0.0
  %1775 = vmatprep.subr.mxu0 0.0
  %1776 = vmatpush1.msra.mxu0 0.0
  %1777 = vmatprep.subr.mxu0 0.0
  %1778 = vmatpush1.msra.mxu0 0.0
  %1779 = vmatprep.subr.mxu0 0.0
  %1780 = vmatpush1.msra.mxu0 0.0
  %1781 = vmatprep.subr.mxu0 0.0
  %1782 = vmatpush1.msra.mxu0 0.0
  %1783 = vmatprep.subr.mxu0 0.0
  %1784 = vmatpush1.msra.mxu0 0.0
  %1785 = vmatprep.subr.mxu0 0.0
  %1786 = vmatpush1.msra.mxu0 0.0
  %1787 = vmatprep.subr.mxu0 0.0
  %1788 = vmatpush1.msra.mxu0 0.0
  %1789 = vmatprep.subr.mxu0 0.0
  %1790 = vmatpush1.msra.mxu0 0.0
  %1791 = vmatprep.subr.mxu0 0.0
  %1792 = vmatpush1.msra.mxu0 0.0
  %1793 = vmatprep.subr.mxu0 0.0
  %1794 = vmatpush1.msra.mxu0 0.0
  %1795 = vmatprep.subr.mxu0 0.0
  %1796 = vmatpush1.msra.mxu0 0.0
  %1797 = vmatprep.subr.mxu0 0.0
  %1798 = vmatpush1.msra.mxu0 0.0
  %1799 = vmatprep.subr.mxu0 0.0
  %1800 = vmatpush1.msra.mxu0 0.0
  %1801 = vmatprep.mubr.f32.mxu0 0.0
  %1802 = vmatmul.mubr.f32.gmra.mrb[0].mxu0 %v1570
  %v1803 = vpop.f32.mrb[0].mxu0
  %v1804 = vadd.f32 0.0, %v1803
  %v1805 = vpop.f32.mrb[0].mxu0
  %1806 = vmatprep.mubr.f32.mxu0 0.0
  %1807 = vmatmul.mubr.f32.gmra.mrb[0].mxu0 %v1573
  %v1808 = vpop.f32.mrb[0].mxu0
  %v1809 = vadd.f32 0.0, %v1808
  %v1810 = vpop.f32.mrb[0].mxu0
  %1811 = vmatprep.mubr.f32.mxu0 0.0
  %1812 = vmatmul.mubr.f32.gmra.mrb[0].mxu0 %v1576
  %v1813 = vpop.f32.mrb[0].mxu0
  %v1814 = vadd.f32 0.0, %v1813
  %v1815 = vpop.f32.mrb[0].mxu0
  %1816 = vmatprep.mubr.f32.mxu0 0.0
  %1817 = vmatmul.mubr.f32.gmra.mrb[0].mxu0 %v1579
  %v1818 = vpop.f32.mrb[0].mxu0
  %v1819 = vadd.f32 0.0, %v1818
  %v1820 = vpop.f32.mrb[0].mxu0
  %1821 = vmatprep.mubr.f32.mxu0 0.0
  %1822 = vmatmul.mubr.f32.gmra.mrb[0].mxu0 %v1582
  %v1823 = vpop.f32.mrb[0].mxu0
  %v1824 = vadd.f32 0.0, %v1823
  %v1825 = vpop.f32.mrb[0].mxu0
  %1826 = vmatprep.mubr.f32.mxu0 0.0
  %1827 = vmatmul.mubr.f32.gmra.mrb[0].mxu0 %v1585
  %v1828 = vpop.f32.mrb[0].mxu0
  %v1829 = vadd.f32 0.0, %v1828
  %v1830 = vpop.f32.mrb[0].mxu0
  %1831 = vmatprep.mubr.f32.mxu0 0.0
  %1832 = vmatmul.mubr.f32.gmra.mrb[0].mxu0 %v1588
  %v1833 = vpop.f32.mrb[0].mxu0
  %v1834 = vadd.f32 0.0, %v1833
  %v1835 = vpop.f32.mrb[0].mxu0
  %1836 = vmatprep.mubr.f32.mxu0 0.0
  %1837 = vmatmul.mubr.f32.gmra.mrb[0].mxu0 %v1591
  %v1838 = vpop.f32.mrb[0].mxu0
  %v1839 = vadd.f32 0.0, %v1838
  %v1840 = vpop.f32.mrb[0].mxu0
  %1841 = vmatprep.mubr.f32.mxu0 0.0
  %1842 = vmatmul.mubr.f32.gmra.mrb[0].mxu0 %v1594
  %v1843 = vpop.f32.mrb[0].mxu0
  %v1844 = vadd.f32 0.0, %v1843
  %v1845 = vpop.f32.mrb[0].mxu0
  %1846 = vmatprep.mubr.f32.mxu0 0.0
  %1847 = vmatmul.mubr.f32.gmra.mrb[0].mxu0 %v1597
  %v1848 = vpop.f32.mrb[0].mxu0
  %v1849 = vadd.f32 0.0, %v1848
  %v1850 = vpop.f32.mrb[0].mxu0
  %1851 = vmatprep.mubr.f32.mxu0 0.0
  %1852 = vmatmul.mubr.f32.gmra.mrb[0].mxu0 %v1600
  %v1853 = vpop.f32.mrb[0].mxu0
  %v1854 = vadd.f32 0.0, %v1853
  %v1855 = vpop.f32.mrb[0].mxu0
  %1856 = vmatprep.mubr.f32.mxu0 0.0
  %1857 = vmatmul.mubr.f32.gmra.mrb[0].mxu0 %v1603
  %v1858 = vpop.f32.mrb[0].mxu0
  %v1859 = vadd.f32 0.0, %v1858
  %v1860 = vpop.f32.mrb[0].mxu0
  %1861 = vmatprep.mubr.f32.mxu0 0.0
  %1862 = vmatmul.mubr.f32.gmra.mrb[0].mxu0 %v1606
  %v1863 = vpop.f32.mrb[0].mxu0
  %v1864 = vadd.f32 0.0, %v1863
  %v1865 = vpop.f32.mrb[0].mxu0
  %1866 = vmatprep.mubr.f32.mxu0 0.0
  %1867 = vmatmul.mubr.f32.gmra.mrb[0].mxu0 %v1609
  %v1868 = vpop.f32.mrb[0].mxu0
  %v1869 = vadd.f32 0.0, %v1868
  %v1870 = vpop.f32.mrb[0].mxu0
  %1871 = vmatprep.mubr.f32.mxu0 0.0
  %1872 = vmatmul.mubr.f32.gmra.mrb[0].mxu0 %v1612
  %v1873 = vpop.f32.mrb[0].mxu0
  %v1874 = vadd.f32 0.0, %v1873
  %v1875 = vpop.f32.mrb[0].mxu0
  %1876 = vmatprep.mubr.f32.mxu0 0.0
  %1877 = vmatmul.mubr.f32.gmra.mrb[0].mxu0 %v1615
  %v1878 = vpop.f32.mrb[0].mxu0
  %v1879 = vadd.f32 0.0, %v1878
  %v1880 = vpop.f32.mrb[0].mxu0
  %1881 = vmatprep.mubr.f32.mxu0 0.0
  %1882 = vmatmul.mubr.f32.gmra.mrb[0].mxu0 %v1618
  %v1883 = vpop.f32.mrb[0].mxu0
  %v1884 = vadd.f32 0.0, %v1883
  %v1885 = vpop.f32.mrb[0].mxu0
  %1886 = vmatprep.mubr.f32.mxu0 0.0
  %1887 = vmatmul.mubr.f32.gmra.mrb[0].mxu0 %v1621
  %v1888 = vpop.f32.mrb[0].mxu0
  %v1889 = vadd.f32 0.0, %v1888
  %v1890 = vpop.f32.mrb[0].mxu0
  %1891 = vmatprep.mubr.f32.mxu0 0.0
  %1892 = vmatmul.mubr.f32.gmra.mrb[0].mxu0 %v1624
  %v1893 = vpop.f32.mrb[0].mxu0
  %v1894 = vadd.f32 0.0, %v1893
  %v1895 = vpop.f32.mrb[0].mxu0
  %1896 = vmatprep.mubr.f32.mxu0 0.0
  %1897 = vmatmul.mubr.f32.gmra.mrb[0].mxu0 %v1627
  %v1898 = vpop.f32.mrb[0].mxu0
  %v1899 = vadd.f32 0.0, %v1898
  %v1900 = vpop.f32.mrb[0].mxu0
  %1901 = vmatprep.mubr.f32.mxu0 0.0
  %1902 = vmatmul.mubr.f32.gmra.mrb[0].mxu0 %v1630
  %v1903 = vpop.f32.mrb[0].mxu0
  %v1904 = vadd.f32 0.0, %v1903
  %v1905 = vpop.f32.mrb[0].mxu0
  %1906 = vmatprep.mubr.f32.mxu0 0.0
  %1907 = vmatmul.mubr.f32.gmra.mrb[0].mxu0 %v1633
  %v1908 = vpop.f32.mrb[0].mxu0
  %v1909 = vadd.f32 0.0, %v1908
  %v1910 = vpop.f32.mrb[0].mxu0
  %1911 = vmatprep.mubr.f32.mxu0 0.0
  %1912 = vmatmul.mubr.f32.gmra.mrb[0].mxu0 %v1636
  %v1913 = vpop.f32.mrb[0].mxu0
  %v1914 = vadd.f32 0.0, %v1913
  %v1915 = vpop.f32.mrb[0].mxu0
  %1916 = vmatprep.mubr.f32.mxu0 0.0
  %1917 = vmatmul.mubr.f32.gmra.mrb[0].mxu0 %v1639
  %v1918 = vpop.f32.mrb[0].mxu0
  %v1919 = vadd.f32 0.0, %v1918
  %v1920 = vpop.f32.mrb[0].mxu0
  %1921 = vmatprep.mubr.f32.mxu0 0.0
  %1922 = vmatmul.mubr.f32.gmra.mrb[0].mxu0 %v1642
  %v1923 = vpop.f32.mrb[0].mxu0
  %v1924 = vadd.f32 0.0, %v1923
  %v1925 = vpop.f32.mrb[0].mxu0
  %1926 = vmatprep.mubr.f32.mxu0 0.0
  %1927 = vmatmul.mubr.f32.gmra.mrb[0].mxu0 %v1645
  %v1928 = vpop.f32.mrb[0].mxu0
  %v1929 = vadd.f32 0.0, %v1928
  %v1930 = vpop.f32.mrb[0].mxu0
  %1931 = vmatprep.mubr.f32.mxu0 0.0
  %1932 = vmatmul.mubr.f32.gmra.mrb[0].mxu0 %v1648
  %v1933 = vpop.f32.mrb[0].mxu0
  %v1934 = vadd.f32 0.0, %v1933
  %v1935 = vpop.f32.mrb[0].mxu0
  %1936 = vmatprep.mubr.f32.mxu0 0.0
  %1937 = vmatmul.mubr.f32.gmra.mrb[0].mxu0 %v1651
  %v1938 = vpop.f32.mrb[0].mxu0
  %v1939 = vadd.f32 0.0, %v1938
  %v1940 = vpop.f32.mrb[0].mxu0
  %1941 = vmatprep.mubr.f32.mxu0 0.0
  %1942 = vmatmul.mubr.f32.gmra.mrb[0].mxu0 %v1654
  %v1943 = vpop.f32.mrb[0].mxu0
  %v1944 = vadd.f32 0.0, %v1943
  %v1945 = vpop.f32.mrb[0].mxu0
  %1946 = vmatprep.mubr.f32.mxu0 0.0
  %1947 = vmatmul.mubr.f32.gmra.mrb[0].mxu0 %v1657
  %v1948 = vpop.f32.mrb[0].mxu0
  %v1949 = vadd.f32 0.0, %v1948
  %v1950 = vpop.f32.mrb[0].mxu0
  %1951 = vmatprep.mubr.f32.mxu0 0.0
  %1952 = vmatmul.mubr.f32.gmra.mrb[0].mxu0 %v1660
  %v1953 = vpop.f32.mrb[0].mxu0
  %v1954 = vadd.f32 0.0, %v1953
  %v1955 = vpop.f32.mrb[0].mxu0
  %1956 = vmatprep.mubr.f32.mxu0 0.0
  %1957 = vmatmul.mubr.f32.gmra.mrb[0].mxu0 %v1663
  %v1958 = vpop.f32.mrb[0].mxu0
  %v1959 = vadd.f32 0.0, %v1958
  %v1960 = vpop.f32.mrb[0].mxu0
  %1961 = vmatprep.mubr.f32.mxu0 0.0
  %1962 = vmatmul.mubr.f32.gmra.mrb[0].mxu0 %v1666
  %v1963 = vpop.f32.mrb[0].mxu0
  %v1964 = vadd.f32 0.0, %v1963
  %v1965 = vpop.f32.mrb[0].mxu0
  %1966 = vmatprep.mubr.f32.mxu0 0.0
  %1967 = vmatmul.mubr.f32.gmra.mrb[0].mxu0 %v1669
  %v1968 = vpop.f32.mrb[0].mxu0
  %v1969 = vadd.f32 0.0, %v1968
  %v1970 = vpop.f32.mrb[0].mxu0
  %1971 = vmatprep.mubr.f32.mxu0 0.0
  %1972 = vmatmul.mubr.f32.gmra.mrb[0].mxu0 %v1672
  %v1973 = vpop.f32.mrb[0].mxu0
  %v1974 = vadd.f32 0.0, %v1973
  %v1975 = vpop.f32.mrb[0].mxu0
  %1976 = vmatprep.mubr.f32.mxu0 0.0
  %1977 = vmatmul.mubr.f32.gmra.mrb[0].mxu0 %v1675
  %v1978 = vpop.f32.mrb[0].mxu0
  %v1979 = vadd.f32 0.0, %v1978
  %v1980 = vpop.f32.mrb[0].mxu0
  %1981 = vmatprep.mubr.f32.mxu0 0.0
  %1982 = vmatmul.mubr.f32.gmra.mrb[0].mxu0 %v1678
  %v1983 = vpop.f32.mrb[0].mxu0
  %v1984 = vadd.f32 0.0, %v1983
  %v1985 = vpop.f32.mrb[0].mxu0
  %1986 = vmatprep.mubr.f32.mxu0 0.0
  %1987 = vmatmul.mubr.f32.gmra.mrb[0].mxu0 %v1681
  %v1988 = vpop.f32.mrb[0].mxu0
  %v1989 = vadd.f32 0.0, %v1988
  %v1990 = vpop.f32.mrb[0].mxu0
  %1991 = vmatprep.mubr.f32.mxu0 0.0
  %1992 = vmatmul.mubr.f32.gmra.mrb[0].mxu0 %v1684
  %v1993 = vpop.f32.mrb[0].mxu0
  %v1994 = vadd.f32 0.0, %v1993
  %v1995 = vpop.f32.mrb[0].mxu0
  %1996 = vmatprep.mubr.f32.mxu0 0.0
  %1997 = vmatmul.mubr.f32.gmra.mrb[0].mxu0 %v1687
  %v1998 = vpop.f32.mrb[0].mxu0
  %v1999 = vadd.f32 0.0, %v1998
  %v2000 = vpop.f32.mrb[0].mxu0
  %2001 = vmatprep.mubr.f32.mxu0 0.0
  %2002 = vmatmul.mubr.f32.gmra.mrb[0].mxu0 %v1690
  %v2003 = vpop.f32.mrb[0].mxu0
  %v2004 = vadd.f32 0.0, %v2003
  %v2005 = vpop.f32.mrb[0].mxu0
  %2006 = vmatprep.mubr.f32.mxu0 0.0
  %2007 = vmatmul.mubr.f32.gmra.mrb[0].mxu0 %v1693
  %v2008 = vpop.f32.mrb[0].mxu0
  %v2009 = vadd.f32 0.0, %v2008
  %v2010 = vpop.f32.mrb[0].mxu0
  %2011 = vmatprep.mubr.f32.mxu0 0.0
  %2012 = vmatmul.mubr.f32.gmra.mrb[0].mxu0 %v1696
  %v2013 = vpop.f32.mrb[0].mxu0
  %v2014 = vadd.f32 0.0, %v2013
  %v2015 = vpop.f32.mrb[0].mxu0
  %2016 = vmatprep.mubr.f32.mxu0 0.0
  %2017 = vmatmul.mubr.f32.gmra.mrb[0].mxu0 %v1699
  %v2018 = vpop.f32.mrb[0].mxu0
  %v2019 = vadd.f32 0.0, %v2018
  %v2020 = vpop.f32.mrb[0].mxu0
  %2021 = vmatprep.mubr.f32.mxu0 0.0
  %2022 = vmatmul.mubr.f32.gmra.mrb[0].mxu0 %v1702
  %v2023 = vpop.f32.mrb[0].mxu0
  %v2024 = vadd.f32 0.0, %v2023
  %v2025 = vpop.f32.mrb[0].mxu0
  %2026 = vmatprep.mubr.f32.mxu0 0.0
  %2027 = vmatmul.mubr.f32.gmra.mrb[0].mxu0 %v1705
  %v2028 = vpop.f32.mrb[0].mxu0
  %v2029 = vadd.f32 0.0, %v2028
  %v2030 = vpop.f32.mrb[0].mxu0
  %2031 = vmatprep.mubr.f32.mxu0 0.0
  %2032 = vmatmul.mubr.f32.gmra.mrb[0].mxu0 %v1708
  %v2033 = vpop.f32.mrb[0].mxu0
  %v2034 = vadd.f32 0.0, %v2033
  %v2035 = vpop.f32.mrb[0].mxu0
  %2036 = vmatprep.mubr.f32.mxu0 0.0
  %2037 = vmatmul.mubr.f32.gmra.mrb[0].mxu0 %v1711
  %v2038 = vpop.f32.mrb[0].mxu0
  %v2039 = vadd.f32 0.0, %v2038
  %v2040 = vpop.f32.mrb[0].mxu0
  %2041 = vmatprep.mubr.f32.mxu0 0.0
  %2042 = vmatmul.mubr.f32.gmra.mrb[0].mxu0 %v1714
  %v2043 = vpop.f32.mrb[0].mxu0
  %v2044 = vadd.f32 0.0, %v2043
  %v2045 = vpop.f32.mrb[0].mxu0
  %2046 = vmatprep.mubr.f32.mxu0 0.0
  %2047 = vmatmul.mubr.f32.gmra.mrb[0].mxu0 %v1717
  %v2048 = vpop.f32.mrb[0].mxu0
  %v2049 = vadd.f32 0.0, %v2048
  %v2050 = vpop.f32.mrb[0].mxu0
  %2051 = vmatprep.mubr.f32.mxu0 0.0
  %2052 = vmatmul.mubr.f32.gmra.mrb[0].mxu0 %v1720
  %v2053 = vpop.f32.mrb[0].mxu0
  %v2054 = vadd.f32 0.0, %v2053
  %v2055 = vpop.f32.mrb[0].mxu0
  %2056 = vmatprep.mubr.f32.mxu0 0.0
  %2057 = vmatmul.mubr.f32.gmra.mrb[0].mxu0 %v1723
  %v2058 = vpop.f32.mrb[0].mxu0
  %v2059 = vadd.f32 0.0, %v2058
  %v2060 = vpop.f32.mrb[0].mxu0
  %2061 = vmatprep.mubr.f32.mxu0 0.0
  %2062 = vmatmul.mubr.f32.gmra.mrb[0].mxu0 %v1726
  %v2063 = vpop.f32.mrb[0].mxu0
  %v2064 = vadd.f32 0.0, %v2063
  %v2065 = vpop.f32.mrb[0].mxu0
  %2066 = vmatprep.mubr.f32.mxu0 0.0
  %2067 = vmatmul.mubr.f32.gmra.mrb[0].mxu0 %v1729
  %v2068 = vpop.f32.mrb[0].mxu0
  %v2069 = vadd.f32 0.0, %v2068
  %v2070 = vpop.f32.mrb[0].mxu0
  %2071 = vmatprep.mubr.f32.mxu0 0.0
  %2072 = vmatmul.mubr.f32.gmra.mrb[0].mxu0 %v1732
  %v2073 = vpop.f32.mrb[0].mxu0
  %v2074 = vadd.f32 0.0, %v2073
  %v2075 = vpop.f32.mrb[0].mxu0
  %2076 = vmatprep.mubr.f32.mxu0 0.0
  %2077 = vmatmul.mubr.f32.gmra.mrb[0].mxu0 %v1735
  %v2078 = vpop.f32.mrb[0].mxu0
  %v2079 = vadd.f32 0.0, %v2078
  %v2080 = vpop.f32.mrb[0].mxu0
  %2081 = vdwg.mxu0
  %v2082 = vsel %vm191, %v1804, -inf
  %v2083 = vsel %vm191, %v1844, -inf
  %v2084 = vmax.f32 %v2082, %v2083
  %v2085 = vsel %vm191, %v1884, -inf
  %v2086 = vmax.f32 %v2084, %v2085
  %v2087 = vsel %vm191, %v1924, -inf
  %v2088 = vmax.f32 %v2086, %v2087
  %v2089 = vsel %vm191, %v1964, -inf
  %v2090 = vmax.f32 %v2088, %v2089
  %v2091 = vsel %vm191, %v2004, -inf
  %v2092 = vmax.f32 %v2090, %v2091
  %v2093 = vsel %vm191, %v2044, -inf
  %v2094 = vmax.f32 %v2092, %v2093
  %v2095 = vsel %vm191, %v1809, -inf
  %v2096 = vsel %vm191, %v1849, -inf
  %v2097 = vmax.f32 %v2095, %v2096
  %v2098 = vsel %vm191, %v1889, -inf
  %v2099 = vmax.f32 %v2097, %v2098
  %v2100 = vsel %vm191, %v1929, -inf
  %v2101 = vmax.f32 %v2099, %v2100
  %v2102 = vsel %vm191, %v1969, -inf
  %v2103 = vmax.f32 %v2101, %v2102
  %v2104 = vsel %vm191, %v2009, -inf
  %v2105 = vmax.f32 %v2103, %v2104
  %v2106 = vsel %vm191, %v2049, -inf
  %v2107 = vmax.f32 %v2105, %v2106
  %v2108 = vsel %vm191, %v1814, -inf
  %v2109 = vsel %vm191, %v1854, -inf
  %v2110 = vmax.f32 %v2108, %v2109
  %v2111 = vsel %vm191, %v1894, -inf
  %v2112 = vmax.f32 %v2110, %v2111
  %v2113 = vsel %vm191, %v1934, -inf
  %v2114 = vmax.f32 %v2112, %v2113
  %v2115 = vsel %vm191, %v1974, -inf
  %v2116 = vmax.f32 %v2114, %v2115
  %v2117 = vsel %vm191, %v2014, -inf
  %v2118 = vmax.f32 %v2116, %v2117
  %v2119 = vsel %vm191, %v2054, -inf
  %v2120 = vmax.f32 %v2118, %v2119
  %v2121 = vsel %vm191, %v1819, -inf
  %v2122 = vsel %vm191, %v1859, -inf
  %v2123 = vmax.f32 %v2121, %v2122
  %v2124 = vsel %vm191, %v1899, -inf
  %v2125 = vmax.f32 %v2123, %v2124
  %v2126 = vsel %vm191, %v1939, -inf
  %v2127 = vmax.f32 %v2125, %v2126
  %v2128 = vsel %vm191, %v1979, -inf
  %v2129 = vmax.f32 %v2127, %v2128
  %v2130 = vsel %vm191, %v2019, -inf
  %v2131 = vmax.f32 %v2129, %v2130
  %v2132 = vsel %vm191, %v2059, -inf
  %v2133 = vmax.f32 %v2131, %v2132
  %v2134 = vsel %vm191, %v1824, -inf
  %v2135 = vsel %vm191, %v1864, -inf
  %v2136 = vmax.f32 %v2134, %v2135
  %v2137 = vsel %vm191, %v1904, -inf
  %v2138 = vmax.f32 %v2136, %v2137
  %v2139 = vsel %vm191, %v1944, -inf
  %v2140 = vmax.f32 %v2138, %v2139
  %v2141 = vsel %vm191, %v1984, -inf
  %v2142 = vmax.f32 %v2140, %v2141
  %v2143 = vsel %vm191, %v2024, -inf
  %v2144 = vmax.f32 %v2142, %v2143
  %v2145 = vsel %vm191, %v2064, -inf
  %v2146 = vmax.f32 %v2144, %v2145
  %v2147 = vsel %vm191, %v1829, -inf
  %v2148 = vsel %vm191, %v1869, -inf
  %v2149 = vmax.f32 %v2147, %v2148
  %v2150 = vsel %vm191, %v1909, -inf
  %v2151 = vmax.f32 %v2149, %v2150
  %v2152 = vsel %vm191, %v1949, -inf
  %v2153 = vmax.f32 %v2151, %v2152
  %v2154 = vsel %vm191, %v1989, -inf
  %v2155 = vmax.f32 %v2153, %v2154
  %v2156 = vsel %vm191, %v2029, -inf
  %v2157 = vmax.f32 %v2155, %v2156
  %v2158 = vsel %vm191, %v2069, -inf
  %v2159 = vmax.f32 %v2157, %v2158
  %v2160 = vsel %vm191, %v1834, -inf
  %v2161 = vsel %vm191, %v1874, -inf
  %v2162 = vmax.f32 %v2160, %v2161
  %v2163 = vsel %vm191, %v1914, -inf
  %v2164 = vmax.f32 %v2162, %v2163
  %v2165 = vsel %vm191, %v1954, -inf
  %v2166 = vmax.f32 %v2164, %v2165
  %v2167 = vsel %vm191, %v1994, -inf
  %v2168 = vmax.f32 %v2166, %v2167
  %v2169 = vsel %vm191, %v2034, -inf
  %v2170 = vmax.f32 %v2168, %v2169
  %v2171 = vsel %vm191, %v2074, -inf
  %v2172 = vmax.f32 %v2170, %v2171
  %v2173 = vsel %vm191, %v1839, -inf
  %v2174 = vsel %vm191, %v1879, -inf
  %v2175 = vmax.f32 %v2173, %v2174
  %v2176 = vsel %vm191, %v1919, -inf
  %v2177 = vmax.f32 %v2175, %v2176
  %v2178 = vsel %vm191, %v1959, -inf
  %v2179 = vmax.f32 %v2177, %v2178
  %v2180 = vsel %vm191, %v1999, -inf
  %v2181 = vmax.f32 %v2179, %v2180
  %v2182 = vsel %vm191, %v2039, -inf
  %v2183 = vmax.f32 %v2181, %v2182
  %v2184 = vsel %vm191, %v2079, -inf
  %v2185 = vmax.f32 %v2183, %v2184
  %v2186 = vsub.f32 %v1804, %v2094
  %v2187 = vsub.f32 %v1809, %v2107
  %v2188 = vsub.f32 %v1814, %v2120
  %v2189 = vsub.f32 %v1819, %v2133
  %v2190 = vsub.f32 %v1824, %v2146
  %v2191 = vsub.f32 %v1829, %v2159
  %v2192 = vsub.f32 %v1834, %v2172
  %v2193 = vsub.f32 %v1839, %v2185
  %v2194 = vsub.f32 %v1844, %v2094
  %v2195 = vsub.f32 %v1849, %v2107
  %v2196 = vsub.f32 %v1854, %v2120
  %v2197 = vsub.f32 %v1859, %v2133
  %v2198 = vsub.f32 %v1864, %v2146
  %v2199 = vsub.f32 %v1869, %v2159
  %v2200 = vsub.f32 %v1874, %v2172
  %v2201 = vsub.f32 %v1879, %v2185
  %v2202 = vsub.f32 %v1884, %v2094
  %v2203 = vsub.f32 %v1889, %v2107
  %v2204 = vsub.f32 %v1894, %v2120
  %v2205 = vsub.f32 %v1899, %v2133
  %v2206 = vsub.f32 %v1904, %v2146
  %v2207 = vsub.f32 %v1909, %v2159
  %v2208 = vsub.f32 %v1914, %v2172
  %v2209 = vsub.f32 %v1919, %v2185
  %v2210 = vsub.f32 %v1924, %v2094
  %v2211 = vsub.f32 %v1929, %v2107
  %v2212 = vsub.f32 %v1934, %v2120
  %v2213 = vsub.f32 %v1939, %v2133
  %v2214 = vsub.f32 %v1944, %v2146
  %v2215 = vsub.f32 %v1949, %v2159
  %v2216 = vsub.f32 %v1954, %v2172
  %v2217 = vsub.f32 %v1959, %v2185
  %v2218 = vsub.f32 %v1964, %v2094
  %v2219 = vsub.f32 %v1969, %v2107
  %v2220 = vsub.f32 %v1974, %v2120
  %v2221 = vsub.f32 %v1979, %v2133
  %v2222 = vsub.f32 %v1984, %v2146
  %v2223 = vsub.f32 %v1989, %v2159
  %v2224 = vsub.f32 %v1994, %v2172
  %v2225 = vsub.f32 %v1999, %v2185
  %v2226 = vsub.f32 %v2004, %v2094
  %v2227 = vsub.f32 %v2009, %v2107
  %v2228 = vsub.f32 %v2014, %v2120
  %v2229 = vsub.f32 %v2019, %v2133
  %v2230 = vsub.f32 %v2024, %v2146
  %v2231 = vsub.f32 %v2029, %v2159
  %v2232 = vsub.f32 %v2034, %v2172
  %v2233 = vsub.f32 %v2039, %v2185
  %v2234 = vsub.f32 %v2044, %v2094
  %v2235 = vsub.f32 %v2049, %v2107
  %v2236 = vsub.f32 %v2054, %v2120
  %v2237 = vsub.f32 %v2059, %v2133
  %v2238 = vsub.f32 %v2064, %v2146
  %v2239 = vsub.f32 %v2069, %v2159
  %v2240 = vsub.f32 %v2074, %v2172
  %v2241 = vsub.f32 %v2079, %v2185
  %v2242 = vmul.f32 %v2186, 1.442695
  %v2243 = vpow.pop %v2242
  %v2244 = vmul.f32 %v2187, 1.442695
  %v2245 = vpow.pop %v2244
  %v2246 = vmul.f32 %v2188, 1.442695
  %v2247 = vpow.pop %v2246
  %v2248 = vmul.f32 %v2189, 1.442695
  %v2249 = vpow.pop %v2248
  %v2250 = vmul.f32 %v2190, 1.442695
  %v2251 = vpow.pop %v2250
  %v2252 = vmul.f32 %v2191, 1.442695
  %v2253 = vpow.pop %v2252
  %v2254 = vmul.f32 %v2192, 1.442695
  %v2255 = vpow.pop %v2254
  %v2256 = vmul.f32 %v2193, 1.442695
  %v2257 = vpow.pop %v2256
  %v2258 = vmul.f32 %v2194, 1.442695
  %v2259 = vpow.pop %v2258
  %v2260 = vmul.f32 %v2195, 1.442695
  %v2261 = vpow.pop %v2260
  %v2262 = vmul.f32 %v2196, 1.442695
  %v2263 = vpow.pop %v2262
  %v2264 = vmul.f32 %v2197, 1.442695
  %v2265 = vpow.pop %v2264
  %v2266 = vmul.f32 %v2198, 1.442695
  %v2267 = vpow.pop %v2266
  %v2268 = vmul.f32 %v2199, 1.442695
  %v2269 = vpow.pop %v2268
  %v2270 = vmul.f32 %v2200, 1.442695
  %v2271 = vpow.pop %v2270
  %v2272 = vmul.f32 %v2201, 1.442695
  %v2273 = vpow.pop %v2272
  %v2274 = vmul.f32 %v2202, 1.442695
  %v2275 = vpow.pop %v2274
  %v2276 = vmul.f32 %v2203, 1.442695
  %v2277 = vpow.pop %v2276
  %v2278 = vmul.f32 %v2204, 1.442695
  %v2279 = vpow.pop %v2278
  %v2280 = vmul.f32 %v2205, 1.442695
  %v2281 = vpow.pop %v2280
  %v2282 = vmul.f32 %v2206, 1.442695
  %v2283 = vpow.pop %v2282
  %v2284 = vmul.f32 %v2207, 1.442695
  %v2285 = vpow.pop %v2284
  %v2286 = vmul.f32 %v2208, 1.442695
  %v2287 = vpow.pop %v2286
  %v2288 = vmul.f32 %v2209, 1.442695
  %v2289 = vpow.pop %v2288
  %v2290 = vmul.f32 %v2210, 1.442695
  %v2291 = vpow.pop %v2290
  %v2292 = vmul.f32 %v2211, 1.442695
  %v2293 = vpow.pop %v2292
  %v2294 = vmul.f32 %v2212, 1.442695
  %v2295 = vpow.pop %v2294
  %v2296 = vmul.f32 %v2213, 1.442695
  %v2297 = vpow.pop %v2296
  %v2298 = vmul.f32 %v2214, 1.442695
  %v2299 = vpow.pop %v2298
  %v2300 = vmul.f32 %v2215, 1.442695
  %v2301 = vpow.pop %v2300
  %v2302 = vmul.f32 %v2216, 1.442695
  %v2303 = vpow.pop %v2302
  %v2304 = vmul.f32 %v2217, 1.442695
  %v2305 = vpow.pop %v2304
  %v2306 = vmul.f32 %v2218, 1.442695
  %v2307 = vpow.pop %v2306
  %v2308 = vmul.f32 %v2219, 1.442695
  %v2309 = vpow.pop %v2308
  %v2310 = vmul.f32 %v2220, 1.442695
  %v2311 = vpow.pop %v2310
  %v2312 = vmul.f32 %v2221, 1.442695
  %v2313 = vpow.pop %v2312
  %v2314 = vmul.f32 %v2222, 1.442695
  %v2315 = vpow.pop %v2314
  %v2316 = vmul.f32 %v2223, 1.442695
  %v2317 = vpow.pop %v2316
  %v2318 = vmul.f32 %v2224, 1.442695
  %v2319 = vpow.pop %v2318
  %v2320 = vmul.f32 %v2225, 1.442695
  %v2321 = vpow.pop %v2320
  %v2322 = vmul.f32 %v2226, 1.442695
  %v2323 = vpow.pop %v2322
  %v2324 = vmul.f32 %v2227, 1.442695
  %v2325 = vpow.pop %v2324
  %v2326 = vmul.f32 %v2228, 1.442695
  %v2327 = vpow.pop %v2326
  %v2328 = vmul.f32 %v2229, 1.442695
  %v2329 = vpow.pop %v2328
  %v2330 = vmul.f32 %v2230, 1.442695
  %v2331 = vpow.pop %v2330
  %v2332 = vmul.f32 %v2231, 1.442695
  %v2333 = vpow.pop %v2332
  %v2334 = vmul.f32 %v2232, 1.442695
  %v2335 = vpow.pop %v2334
  %v2336 = vmul.f32 %v2233, 1.442695
  %v2337 = vpow.pop %v2336
  %v2338 = vmul.f32 %v2234, 1.442695
  %v2339 = vpow.pop %v2338
  %v2340 = vmul.f32 %v2235, 1.442695
  %v2341 = vpow.pop %v2340
  %v2342 = vmul.f32 %v2236, 1.442695
  %v2343 = vpow.pop %v2342
  %v2344 = vmul.f32 %v2237, 1.442695
  %v2345 = vpow.pop %v2344
  %v2346 = vmul.f32 %v2238, 1.442695
  %v2347 = vpow.pop %v2346
  %v2348 = vmul.f32 %v2239, 1.442695
  %v2349 = vpow.pop %v2348
  %v2350 = vmul.f32 %v2240, 1.442695
  %v2351 = vpow.pop %v2350
  %v2352 = vmul.f32 %v2241, 1.442695
  %v2353 = vpow.pop %v2352
  %v2354 = vsel %vm191, %v2243, 0.0
  %v2355 = vsel %vm191, %v2259, 0.0
  %v2356 = vadd.f32 %v2354, %v2355
  %v2357 = vsel %vm191, %v2275, 0.0
  %v2358 = vadd.f32 %v2356, %v2357
  %v2359 = vsel %vm191, %v2291, 0.0
  %v2360 = vadd.f32 %v2358, %v2359
  %v2361 = vsel %vm191, %v2307, 0.0
  %v2362 = vadd.f32 %v2360, %v2361
  %v2363 = vsel %vm191, %v2323, 0.0
  %v2364 = vadd.f32 %v2362, %v2363
  %v2365 = vsel %vm191, %v2339, 0.0
  %v2366 = vadd.f32 %v2364, %v2365
  %v2367 = vsel %vm191, %v2245, 0.0
  %v2368 = vsel %vm191, %v2261, 0.0
  %v2369 = vadd.f32 %v2367, %v2368
  %v2370 = vsel %vm191, %v2277, 0.0
  %v2371 = vadd.f32 %v2369, %v2370
  %v2372 = vsel %vm191, %v2293, 0.0
  %v2373 = vadd.f32 %v2371, %v2372
  %v2374 = vsel %vm191, %v2309, 0.0
  %v2375 = vadd.f32 %v2373, %v2374
  %v2376 = vsel %vm191, %v2325, 0.0
  %v2377 = vadd.f32 %v2375, %v2376
  %v2378 = vsel %vm191, %v2341, 0.0
  %v2379 = vadd.f32 %v2377, %v2378
  %v2380 = vsel %vm191, %v2247, 0.0
  %v2381 = vsel %vm191, %v2263, 0.0
  %v2382 = vadd.f32 %v2380, %v2381
  %v2383 = vsel %vm191, %v2279, 0.0
  %v2384 = vadd.f32 %v2382, %v2383
  %v2385 = vsel %vm191, %v2295, 0.0
  %v2386 = vadd.f32 %v2384, %v2385
  %v2387 = vsel %vm191, %v2311, 0.0
  %v2388 = vadd.f32 %v2386, %v2387
  %v2389 = vsel %vm191, %v2327, 0.0
  %v2390 = vadd.f32 %v2388, %v2389
  %v2391 = vsel %vm191, %v2343, 0.0
  %v2392 = vadd.f32 %v2390, %v2391
  %v2393 = vsel %vm191, %v2249, 0.0
  %v2394 = vsel %vm191, %v2265, 0.0
  %v2395 = vadd.f32 %v2393, %v2394
  %v2396 = vsel %vm191, %v2281, 0.0
  %v2397 = vadd.f32 %v2395, %v2396
  %v2398 = vsel %vm191, %v2297, 0.0
  %v2399 = vadd.f32 %v2397, %v2398
  %v2400 = vsel %vm191, %v2313, 0.0
  %v2401 = vadd.f32 %v2399, %v2400
  %v2402 = vsel %vm191, %v2329, 0.0
  %v2403 = vadd.f32 %v2401, %v2402
  %v2404 = vsel %vm191, %v2345, 0.0
  %v2405 = vadd.f32 %v2403, %v2404
  %v2406 = vsel %vm191, %v2251, 0.0
  %v2407 = vsel %vm191, %v2267, 0.0
  %v2408 = vadd.f32 %v2406, %v2407
  %v2409 = vsel %vm191, %v2283, 0.0
  %v2410 = vadd.f32 %v2408, %v2409
  %v2411 = vsel %vm191, %v2299, 0.0
  %v2412 = vadd.f32 %v2410, %v2411
  %v2413 = vsel %vm191, %v2315, 0.0
  %v2414 = vadd.f32 %v2412, %v2413
  %v2415 = vsel %vm191, %v2331, 0.0
  %v2416 = vadd.f32 %v2414, %v2415
  %v2417 = vsel %vm191, %v2347, 0.0
  %v2418 = vadd.f32 %v2416, %v2417
  %v2419 = vsel %vm191, %v2253, 0.0
  %v2420 = vsel %vm191, %v2269, 0.0
  %v2421 = vadd.f32 %v2419, %v2420
  %v2422 = vsel %vm191, %v2285, 0.0
  %v2423 = vadd.f32 %v2421, %v2422
  %v2424 = vsel %vm191, %v2301, 0.0
  %v2425 = vadd.f32 %v2423, %v2424
  %v2426 = vsel %vm191, %v2317, 0.0
  %v2427 = vadd.f32 %v2425, %v2426
  %v2428 = vsel %vm191, %v2333, 0.0
  %v2429 = vadd.f32 %v2427, %v2428
  %v2430 = vsel %vm191, %v2349, 0.0
  %v2431 = vadd.f32 %v2429, %v2430
  %v2432 = vsel %vm191, %v2255, 0.0
  %v2433 = vsel %vm191, %v2271, 0.0
  %v2434 = vadd.f32 %v2432, %v2433
  %v2435 = vsel %vm191, %v2287, 0.0
  %v2436 = vadd.f32 %v2434, %v2435
  %v2437 = vsel %vm191, %v2303, 0.0
  %v2438 = vadd.f32 %v2436, %v2437
  %v2439 = vsel %vm191, %v2319, 0.0
  %v2440 = vadd.f32 %v2438, %v2439
  %v2441 = vsel %vm191, %v2335, 0.0
  %v2442 = vadd.f32 %v2440, %v2441
  %v2443 = vsel %vm191, %v2351, 0.0
  %v2444 = vadd.f32 %v2442, %v2443
  %v2445 = vsel %vm191, %v2257, 0.0
  %v2446 = vsel %vm191, %v2273, 0.0
  %v2447 = vadd.f32 %v2445, %v2446
  %v2448 = vsel %vm191, %v2289, 0.0
  %v2449 = vadd.f32 %v2447, %v2448
  %v2450 = vsel %vm191, %v2305, 0.0
  %v2451 = vadd.f32 %v2449, %v2450
  %v2452 = vsel %vm191, %v2321, 0.0
  %v2453 = vadd.f32 %v2451, %v2452
  %v2454 = vsel %vm191, %v2337, 0.0
  %v2455 = vadd.f32 %v2453, %v2454
  %v2456 = vsel %vm191, %v2353, 0.0
  %v2457 = vadd.f32 %v2455, %v2456
  %v2458 = vrcp.pop %v2366
  %v2459 = vrcp.pop %v2379
  %v2460 = vrcp.pop %v2392
  %v2461 = vrcp.pop %v2405
  %v2462 = vrcp.pop %v2418
  %v2463 = vrcp.pop %v2431
  %v2464 = vrcp.pop %v2444
  %v2465 = vrcp.pop %v2457
  %v2466 = vmul.f32 %v2243, %v2458
  %v2467 = vmul.f32 %v2245, %v2459
  %v2468 = vmul.f32 %v2247, %v2460
  %v2469 = vmul.f32 %v2249, %v2461
  %v2470 = vmul.f32 %v2251, %v2462
  %v2471 = vmul.f32 %v2253, %v2463
  %v2472 = vmul.f32 %v2255, %v2464
  %v2473 = vmul.f32 %v2257, %v2465
  %v2474 = vmul.f32 %v2259, %v2458
  %v2475 = vmul.f32 %v2261, %v2459
  %v2476 = vmul.f32 %v2263, %v2460
  %v2477 = vmul.f32 %v2265, %v2461
  %v2478 = vmul.f32 %v2267, %v2462
  %v2479 = vmul.f32 %v2269, %v2463
  %v2480 = vmul.f32 %v2271, %v2464
  %v2481 = vmul.f32 %v2273, %v2465
  %v2482 = vmul.f32 %v2275, %v2458
  %v2483 = vmul.f32 %v2277, %v2459
  %v2484 = vmul.f32 %v2279, %v2460
  %v2485 = vmul.f32 %v2281, %v2461
  %v2486 = vmul.f32 %v2283, %v2462
  %v2487 = vmul.f32 %v2285, %v2463
  %v2488 = vmul.f32 %v2287, %v2464
  %v2489 = vmul.f32 %v2289, %v2465
  %v2490 = vmul.f32 %v2291, %v2458
  %v2491 = vmul.f32 %v2293, %v2459
  %v2492 = vmul.f32 %v2295, %v2460
  %v2493 = vmul.f32 %v2297, %v2461
  %v2494 = vmul.f32 %v2299, %v2462
  %v2495 = vmul.f32 %v2301, %v2463
  %v2496 = vmul.f32 %v2303, %v2464
  %v2497 = vmul.f32 %v2305, %v2465
  %v2498 = vmul.f32 %v2307, %v2458
  %v2499 = vmul.f32 %v2309, %v2459
  %v2500 = vmul.f32 %v2311, %v2460
  %v2501 = vmul.f32 %v2313, %v2461
  %v2502 = vmul.f32 %v2315, %v2462
  %v2503 = vmul.f32 %v2317, %v2463
  %v2504 = vmul.f32 %v2319, %v2464
  %v2505 = vmul.f32 %v2321, %v2465
  %v2506 = vmul.f32 %v2323, %v2458
  %v2507 = vmul.f32 %v2325, %v2459
  %v2508 = vmul.f32 %v2327, %v2460
  %v2509 = vmul.f32 %v2329, %v2461
  %v2510 = vmul.f32 %v2331, %v2462
  %v2511 = vmul.f32 %v2333, %v2463
  %v2512 = vmul.f32 %v2335, %v2464
  %v2513 = vmul.f32 %v2337, %v2465
  %v2514 = vmul.f32 %v2339, %v2458
  %v2515 = vmul.f32 %v2341, %v2459
  %v2516 = vmul.f32 %v2343, %v2460
  %v2517 = vmul.f32 %v2345, %v2461
  %v2518 = vmul.f32 %v2347, %v2462
  %v2519 = vmul.f32 %v2349, %v2463
  %v2520 = vmul.f32 %v2351, %v2464
  %v2521 = vmul.f32 %v2353, %v2465
  %v2522 = vmul.f32 %v2466, %v1235
  %v2523 = vmul.f32 %v2467, %v1240
  %v2524 = vmul.f32 %v2468, %v1245
  %v2525 = vmul.f32 %v2469, %v1250
  %v2526 = vmul.f32 %v2470, %v1255
  %v2527 = vmul.f32 %v2471, %v1260
  %v2528 = vmul.f32 %v2472, %v1265
  %v2529 = vmul.f32 %v2473, %v1270
  %v2530 = vmul.f32 %v2474, %v1275
  %v2531 = vmul.f32 %v2475, %v1280
  %v2532 = vmul.f32 %v2476, %v1285
  %v2533 = vmul.f32 %v2477, %v1290
  %v2534 = vmul.f32 %v2478, %v1295
  %v2535 = vmul.f32 %v2479, %v1300
  %v2536 = vmul.f32 %v2480, %v1305
  %v2537 = vmul.f32 %v2481, %v1310
  %v2538 = vmul.f32 %v2482, %v1315
  %v2539 = vmul.f32 %v2483, %v1320
  %v2540 = vmul.f32 %v2484, %v1325
  %v2541 = vmul.f32 %v2485, %v1330
  %v2542 = vmul.f32 %v2486, %v1335
  %v2543 = vmul.f32 %v2487, %v1340
  %v2544 = vmul.f32 %v2488, %v1345
  %v2545 = vmul.f32 %v2489, %v1350
  %v2546 = vmul.f32 %v2490, %v1355
  %v2547 = vmul.f32 %v2491, %v1360
  %v2548 = vmul.f32 %v2492, %v1365
  %v2549 = vmul.f32 %v2493, %v1370
  %v2550 = vmul.f32 %v2494, %v1375
  %v2551 = vmul.f32 %v2495, %v1380
  %v2552 = vmul.f32 %v2496, %v1385
  %v2553 = vmul.f32 %v2497, %v1390
  %v2554 = vmul.f32 %v2498, %v1395
  %v2555 = vmul.f32 %v2499, %v1400
  %v2556 = vmul.f32 %v2500, %v1405
  %v2557 = vmul.f32 %v2501, %v1410
  %v2558 = vmul.f32 %v2502, %v1415
  %v2559 = vmul.f32 %v2503, %v1420
  %v2560 = vmul.f32 %v2504, %v1425
  %v2561 = vmul.f32 %v2505, %v1430
  %v2562 = vmul.f32 %v2506, %v1435
  %v2563 = vmul.f32 %v2507, %v1440
  %v2564 = vmul.f32 %v2508, %v1445
  %v2565 = vmul.f32 %v2509, %v1450
  %v2566 = vmul.f32 %v2510, %v1455
  %v2567 = vmul.f32 %v2511, %v1460
  %v2568 = vmul.f32 %v2512, %v1465
  %v2569 = vmul.f32 %v2513, %v1470
  %v2570 = vmul.f32 %v2514, %v1475
  %v2571 = vmul.f32 %v2515, %v1480
  %v2572 = vmul.f32 %v2516, %v1485
  %v2573 = vmul.f32 %v2517, %v1490
  %v2574 = vmul.f32 %v2518, %v1495
  %v2575 = vmul.f32 %v2519, %v1500
  %v2576 = vmul.f32 %v2520, %v1505
  %v2577 = vmul.f32 %v2521, %v1510
  %v2578 = vsel %vm191, %v2522, 0.0
  %v2579 = vsel %vm191, %v2530, 0.0
  %v2580 = vadd.f32 %v2578, %v2579
  %v2581 = vsel %vm191, %v2538, 0.0
  %v2582 = vadd.f32 %v2580, %v2581
  %v2583 = vsel %vm191, %v2546, 0.0
  %v2584 = vadd.f32 %v2582, %v2583
  %v2585 = vsel %vm191, %v2554, 0.0
  %v2586 = vadd.f32 %v2584, %v2585
  %v2587 = vsel %vm191, %v2562, 0.0
  %v2588 = vadd.f32 %v2586, %v2587
  %v2589 = vsel %vm191, %v2570, 0.0
  %v2590 = vadd.f32 %v2588, %v2589
  %v2591 = vsel %vm191, %v2523, 0.0
  %v2592 = vsel %vm191, %v2531, 0.0
  %v2593 = vadd.f32 %v2591, %v2592
  %v2594 = vsel %vm191, %v2539, 0.0
  %v2595 = vadd.f32 %v2593, %v2594
  %v2596 = vsel %vm191, %v2547, 0.0
  %v2597 = vadd.f32 %v2595, %v2596
  %v2598 = vsel %vm191, %v2555, 0.0
  %v2599 = vadd.f32 %v2597, %v2598
  %v2600 = vsel %vm191, %v2563, 0.0
  %v2601 = vadd.f32 %v2599, %v2600
  %v2602 = vsel %vm191, %v2571, 0.0
  %v2603 = vadd.f32 %v2601, %v2602
  %v2604 = vsel %vm191, %v2524, 0.0
  %v2605 = vsel %vm191, %v2532, 0.0
  %v2606 = vadd.f32 %v2604, %v2605
  %v2607 = vsel %vm191, %v2540, 0.0
  %v2608 = vadd.f32 %v2606, %v2607
  %v2609 = vsel %vm191, %v2548, 0.0
  %v2610 = vadd.f32 %v2608, %v2609
  %v2611 = vsel %vm191, %v2556, 0.0
  %v2612 = vadd.f32 %v2610, %v2611
  %v2613 = vsel %vm191, %v2564, 0.0
  %v2614 = vadd.f32 %v2612, %v2613
  %v2615 = vsel %vm191, %v2572, 0.0
  %v2616 = vadd.f32 %v2614, %v2615
  %v2617 = vsel %vm191, %v2525, 0.0
  %v2618 = vsel %vm191, %v2533, 0.0
  %v2619 = vadd.f32 %v2617, %v2618
  %v2620 = vsel %vm191, %v2541, 0.0
  %v2621 = vadd.f32 %v2619, %v2620
  %v2622 = vsel %vm191, %v2549, 0.0
  %v2623 = vadd.f32 %v2621, %v2622
  %v2624 = vsel %vm191, %v2557, 0.0
  %v2625 = vadd.f32 %v2623, %v2624
  %v2626 = vsel %vm191, %v2565, 0.0
  %v2627 = vadd.f32 %v2625, %v2626
  %v2628 = vsel %vm191, %v2573, 0.0
  %v2629 = vadd.f32 %v2627, %v2628
  %v2630 = vsel %vm191, %v2526, 0.0
  %v2631 = vsel %vm191, %v2534, 0.0
  %v2632 = vadd.f32 %v2630, %v2631
  %v2633 = vsel %vm191, %v2542, 0.0
  %v2634 = vadd.f32 %v2632, %v2633
  %v2635 = vsel %vm191, %v2550, 0.0
  %v2636 = vadd.f32 %v2634, %v2635
  %v2637 = vsel %vm191, %v2558, 0.0
  %v2638 = vadd.f32 %v2636, %v2637
  %v2639 = vsel %vm191, %v2566, 0.0
  %v2640 = vadd.f32 %v2638, %v2639
  %v2641 = vsel %vm191, %v2574, 0.0
  %v2642 = vadd.f32 %v2640, %v2641
  %v2643 = vsel %vm191, %v2527, 0.0
  %v2644 = vsel %vm191, %v2535, 0.0
  %v2645 = vadd.f32 %v2643, %v2644
  %v2646 = vsel %vm191, %v2543, 0.0
  %v2647 = vadd.f32 %v2645, %v2646
  %v2648 = vsel %vm191, %v2551, 0.0
  %v2649 = vadd.f32 %v2647, %v2648
  %v2650 = vsel %vm191, %v2559, 0.0
  %v2651 = vadd.f32 %v2649, %v2650
  %v2652 = vsel %vm191, %v2567, 0.0
  %v2653 = vadd.f32 %v2651, %v2652
  %v2654 = vsel %vm191, %v2575, 0.0
  %v2655 = vadd.f32 %v2653, %v2654
  %v2656 = vsel %vm191, %v2528, 0.0
  %v2657 = vsel %vm191, %v2536, 0.0
  %v2658 = vadd.f32 %v2656, %v2657
  %v2659 = vsel %vm191, %v2544, 0.0
  %v2660 = vadd.f32 %v2658, %v2659
  %v2661 = vsel %vm191, %v2552, 0.0
  %v2662 = vadd.f32 %v2660, %v2661
  %v2663 = vsel %vm191, %v2560, 0.0
  %v2664 = vadd.f32 %v2662, %v2663
  %v2665 = vsel %vm191, %v2568, 0.0
  %v2666 = vadd.f32 %v2664, %v2665
  %v2667 = vsel %vm191, %v2576, 0.0
  %v2668 = vadd.f32 %v2666, %v2667
  %v2669 = vsel %vm191, %v2529, 0.0
  %v2670 = vsel %vm191, %v2537, 0.0
  %v2671 = vadd.f32 %v2669, %v2670
  %v2672 = vsel %vm191, %v2545, 0.0
  %v2673 = vadd.f32 %v2671, %v2672
  %v2674 = vsel %vm191, %v2553, 0.0
  %v2675 = vadd.f32 %v2673, %v2674
  %v2676 = vsel %vm191, %v2561, 0.0
  %v2677 = vadd.f32 %v2675, %v2676
  %v2678 = vsel %vm191, %v2569, 0.0
  %v2679 = vadd.f32 %v2677, %v2678
  %v2680 = vsel %vm191, %v2577, 0.0
  %v2681 = vadd.f32 %v2679, %v2680
  %v2682 = vld [vmem:[%s12] sm:$0xff]
  %v2683 = vld [vmem:[%s12 + $0x8] sm:$0xff]
  %v2684 = vld [vmem:[%s12 + $0x10] sm:$0xff]
  %v2685 = vld [vmem:[%s12 + $0x18] sm:$0xff]
  %v2686 = vld [vmem:[%s13] sm:$0x1]
  %v2688 = vlaneseq
  %v2689 = vshrl.u32 %v2688, 7
  %v2690 = vsub.s32 0, %v2689
  %v2691 = vrot.slane %v2686, %v2690
  %v2694 = vsel %vm191, %v2590, 0
  %v2697 = vsel %vm191, %v2603, 0
  %v2700 = vsel %vm191, %v2616, 0
  %v2703 = vsel %vm191, %v2629, 0
  %v2706 = vsel %vm191, %v2642, 0
  %v2709 = vsel %vm191, %v2655, 0
  %v2712 = vsel %vm191, %v2668, 0
  %v2715 = vsel %vm191, %v2681, 0
  %2717 = vmatprep.subr.mxu0 0.0
  %2718 = vmatpush1.msra.mxu0 %v2682
  %2719 = vmatprep.subr.mxu0 0.0
  %2720 = vmatpush1.msra.mxu0 %v2683
  %2721 = vmatprep.subr.mxu0 0.0
  %2722 = vmatpush1.msra.mxu0 %v2684
  %2723 = vmatprep.subr.mxu0 0.0
  %2724 = vmatpush1.msra.mxu0 %v2685
  %2725 = vmatprep.subr.mxu0 0.0
  %2726 = vmatpush1.msra.mxu0 0.0
  %2727 = vmatprep.subr.mxu0 0.0
  %2728 = vmatpush1.msra.mxu0 0.0
  %2729 = vmatprep.subr.mxu0 0.0
  %2730 = vmatpush1.msra.mxu0 0.0
  %2731 = vmatprep.subr.mxu0 0.0
  %2732 = vmatpush1.msra.mxu0 0.0
  %2733 = vmatprep.subr.mxu0 0.0
  %2734 = vmatpush1.msra.mxu0 0.0
  %2735 = vmatprep.subr.mxu0 0.0
  %2736 = vmatpush1.msra.mxu0 0.0
  %2737 = vmatprep.subr.mxu0 0.0
  %2738 = vmatpush1.msra.mxu0 0.0
  %2739 = vmatprep.subr.mxu0 0.0
  %2740 = vmatpush1.msra.mxu0 0.0
  %2741 = vmatprep.subr.mxu0 0.0
  %2742 = vmatpush1.msra.mxu0 0.0
  %2743 = vmatprep.subr.mxu0 0.0
  %2744 = vmatpush1.msra.mxu0 0.0
  %2745 = vmatprep.subr.mxu0 0.0
  %2746 = vmatpush1.msra.mxu0 0.0
  %2747 = vmatprep.subr.mxu0 0.0
  %2748 = vmatpush1.msra.mxu0 0.0
  %2749 = vmatprep.subr.mxu0 0.0
  %2750 = vmatpush1.msra.mxu0 0.0
  %2751 = vmatprep.subr.mxu0 0.0
  %2752 = vmatpush1.msra.mxu0 0.0
  %2753 = vmatprep.subr.mxu0 0.0
  %2754 = vmatpush1.msra.mxu0 0.0
  %2755 = vmatprep.subr.mxu0 0.0
  %2756 = vmatpush1.msra.mxu0 0.0
  %2757 = vmatprep.subr.mxu0 0.0
  %2758 = vmatpush1.msra.mxu0 0.0
  %2759 = vmatprep.subr.mxu0 0.0
  %2760 = vmatpush1.msra.mxu0 0.0
  %2761 = vmatprep.subr.mxu0 0.0
  %2762 = vmatpush1.msra.mxu0 0.0
  %2763 = vmatprep.subr.mxu0 0.0
  %2764 = vmatpush1.msra.mxu0 0.0
  %2765 = vmatprep.subr.mxu0 0.0
  %2766 = vmatpush1.msra.mxu0 0.0
  %2767 = vmatprep.subr.mxu0 0.0
  %2768 = vmatpush1.msra.mxu0 0.0
  %2769 = vmatprep.subr.mxu0 0.0
  %2770 = vmatpush1.msra.mxu0 0.0
  %2771 = vmatprep.subr.mxu0 0.0
  %2772 = vmatpush1.msra.mxu0 0.0
  %2773 = vmatprep.subr.mxu0 0.0
  %2774 = vmatpush1.msra.mxu0 0.0
  %2775 = vmatprep.subr.mxu0 0.0
  %2776 = vmatpush1.msra.mxu0 0.0
  %2777 = vmatprep.subr.mxu0 0.0
  %2778 = vmatpush1.msra.mxu0 0.0
  %2779 = vmatprep.subr.mxu0 0.0
  %2780 = vmatpush1.msra.mxu0 0.0
  %2781 = vmatprep.mubr.f32.mxu0 0.0
  %2782 = vmatmul.mubr.f32.gmra.mrb[0].mxu0 %v2694
  %v2783 = vpop.f32.mrb[0].mxu0
  %v2784 = vadd.f32 %v2691, %v2783
  %v2785 = vpop.f32.mrb[0].mxu0
  %2786 = vmatprep.mubr.f32.mxu0 0.0
  %2787 = vmatmul.mubr.f32.gmra.mrb[0].mxu0 %v2697
  %v2788 = vpop.f32.mrb[0].mxu0
  %v2789 = vadd.f32 %v2691, %v2788
  %v2790 = vpop.f32.mrb[0].mxu0
  %2791 = vmatprep.mubr.f32.mxu0 0.0
  %2792 = vmatmul.mubr.f32.gmra.mrb[0].mxu0 %v2700
  %v2793 = vpop.f32.mrb[0].mxu0
  %v2794 = vadd.f32 %v2691, %v2793
  %v2795 = vpop.f32.mrb[0].mxu0
  %2796 = vmatprep.mubr.f32.mxu0 0.0
  %2797 = vmatmul.mubr.f32.gmra.mrb[0].mxu0 %v2703
  %v2798 = vpop.f32.mrb[0].mxu0
  %v2799 = vadd.f32 %v2691, %v2798
  %v2800 = vpop.f32.mrb[0].mxu0
  %2801 = vmatprep.mubr.f32.mxu0 0.0
  %2802 = vmatmul.mubr.f32.gmra.mrb[0].mxu0 %v2706
  %v2803 = vpop.f32.mrb[0].mxu0
  %v2804 = vadd.f32 %v2691, %v2803
  %v2805 = vpop.f32.mrb[0].mxu0
  %2806 = vmatprep.mubr.f32.mxu0 0.0
  %2807 = vmatmul.mubr.f32.gmra.mrb[0].mxu0 %v2709
  %v2808 = vpop.f32.mrb[0].mxu0
  %v2809 = vadd.f32 %v2691, %v2808
  %v2810 = vpop.f32.mrb[0].mxu0
  %2811 = vmatprep.mubr.f32.mxu0 0.0
  %2812 = vmatmul.mubr.f32.gmra.mrb[0].mxu0 %v2712
  %v2813 = vpop.f32.mrb[0].mxu0
  %v2814 = vadd.f32 %v2691, %v2813
  %v2815 = vpop.f32.mrb[0].mxu0
  %2816 = vmatprep.mubr.f32.mxu0 0.0
  %2817 = vmatmul.mubr.f32.gmra.mrb[0].mxu0 %v2715
  %v2818 = vpop.f32.mrb[0].mxu0
  %v2819 = vadd.f32 %v2691, %v2818
  %v2820 = vpop.f32.mrb[0].mxu0
  %2821 = vdwg.mxu0
  %v2822 = vadd.f32 %v65, %v2784
  %v2823 = vadd.f32 %v66, %v2789
  %v2824 = vadd.f32 %v67, %v2794
  %v2825 = vadd.f32 %v68, %v2799
  %v2826 = vadd.f32 %v69, %v2804
  %v2827 = vadd.f32 %v70, %v2809
  %v2828 = vadd.f32 %v71, %v2814
  %v2829 = vadd.f32 %v72, %v2819
  %v2830 = vld [vmem:[%s14] sm:$0x1]
  %v2831 = vld [vmem:[%s15] sm:$0x1]
  %v2832 = vsel %vm191, %v2822, 0.0
  %2833 = vadd.xlane.f32.xlu0 %v2832
  %v2834 = vpop.xlane.xlu0 %2833
  %v2835 = vsel %vm191, %v2823, 0.0
  %2836 = vadd.xlane.f32.xlu0 %v2835
  %v2837 = vpop.xlane.xlu0 %2836
  %v2838 = vsel %vm191, %v2824, 0.0
  %2839 = vadd.xlane.f32.xlu0 %v2838
  %v2840 = vpop.xlane.xlu0 %2839
  %v2841 = vsel %vm191, %v2825, 0.0
  %2842 = vadd.xlane.f32.xlu0 %v2841
  %v2843 = vpop.xlane.xlu0 %2842
  %v2844 = vsel %vm191, %v2826, 0.0
  %2845 = vadd.xlane.f32.xlu0 %v2844
  %v2846 = vpop.xlane.xlu0 %2845
  %v2847 = vsel %vm191, %v2827, 0.0
  %2848 = vadd.xlane.f32.xlu0 %v2847
  %v2849 = vpop.xlane.xlu0 %2848
  %v2850 = vsel %vm191, %v2828, 0.0
  %2851 = vadd.xlane.f32.xlu0 %v2850
  %v2852 = vpop.xlane.xlu0 %2851
  %v2853 = vsel %vm191, %v2829, 0.0
  %2854 = vadd.xlane.f32.xlu0 %v2853
  %v2855 = vpop.xlane.xlu0 %2854
  %v2856 = vmul.f32 %v2834, %v216
  %v2857 = vmul.f32 %v2837, %v216
  %v2858 = vmul.f32 %v2840, %v216
  %v2859 = vmul.f32 %v2843, %v216
  %v2860 = vmul.f32 %v2846, %v216
  %v2861 = vmul.f32 %v2849, %v216
  %v2862 = vmul.f32 %v2852, %v216
  %v2863 = vmul.f32 %v2855, %v216
  %v2864 = vsub.f32 %v2822, %v2856
  %v2865 = vsub.f32 %v2823, %v2857
  %v2866 = vsub.f32 %v2824, %v2858
  %v2867 = vsub.f32 %v2825, %v2859
  %v2868 = vsub.f32 %v2826, %v2860
  %v2869 = vsub.f32 %v2827, %v2861
  %v2870 = vsub.f32 %v2828, %v2862
  %v2871 = vsub.f32 %v2829, %v2863
  %v2872 = vmul.f32 %v2864, %v2864
  %v2873 = vmul.f32 %v2865, %v2865
  %v2874 = vmul.f32 %v2866, %v2866
  %v2875 = vmul.f32 %v2867, %v2867
  %v2876 = vmul.f32 %v2868, %v2868
  %v2877 = vmul.f32 %v2869, %v2869
  %v2878 = vmul.f32 %v2870, %v2870
  %v2879 = vmul.f32 %v2871, %v2871
  %v2880 = vsel %vm191, %v2872, 0.0
  %2881 = vadd.xlane.f32.xlu0 %v2880
  %v2882 = vpop.xlane.xlu0 %2881
  %v2883 = vsel %vm191, %v2873, 0.0
  %2884 = vadd.xlane.f32.xlu0 %v2883
  %v2885 = vpop.xlane.xlu0 %2884
  %v2886 = vsel %vm191, %v2874, 0.0
  %2887 = vadd.xlane.f32.xlu0 %v2886
  %v2888 = vpop.xlane.xlu0 %2887
  %v2889 = vsel %vm191, %v2875, 0.0
  %2890 = vadd.xlane.f32.xlu0 %v2889
  %v2891 = vpop.xlane.xlu0 %2890
  %v2892 = vsel %vm191, %v2876, 0.0
  %2893 = vadd.xlane.f32.xlu0 %v2892
  %v2894 = vpop.xlane.xlu0 %2893
  %v2895 = vsel %vm191, %v2877, 0.0
  %2896 = vadd.xlane.f32.xlu0 %v2895
  %v2897 = vpop.xlane.xlu0 %2896
  %v2898 = vsel %vm191, %v2878, 0.0
  %2899 = vadd.xlane.f32.xlu0 %v2898
  %v2900 = vpop.xlane.xlu0 %2899
  %v2901 = vsel %vm191, %v2879, 0.0
  %2902 = vadd.xlane.f32.xlu0 %v2901
  %v2903 = vpop.xlane.xlu0 %2902
  %v2904 = vmul.f32 %v2882, %v216
  %v2905 = vmul.f32 %v2885, %v216
  %v2906 = vmul.f32 %v2888, %v216
  %v2907 = vmul.f32 %v2891, %v216
  %v2908 = vmul.f32 %v2894, %v216
  %v2909 = vmul.f32 %v2897, %v216
  %v2910 = vmul.f32 %v2900, %v216
  %v2911 = vmul.f32 %v2903, %v216
  %v2912 = vadd.f32 %v2904, 1e-05
  %v2913 = vadd.f32 %v2905, 1e-05
  %v2914 = vadd.f32 %v2906, 1e-05
  %v2915 = vadd.f32 %v2907, 1e-05
  %v2916 = vadd.f32 %v2908, 1e-05
  %v2917 = vadd.f32 %v2909, 1e-05
  %v2918 = vadd.f32 %v2910, 1e-05
  %v2919 = vadd.f32 %v2911, 1e-05
  %v2920 = vrsqrt.pop %v2912
  %v2921 = vrsqrt.pop %v2913
  %v2922 = vrsqrt.pop %v2914
  %v2923 = vrsqrt.pop %v2915
  %v2924 = vrsqrt.pop %v2916
  %v2925 = vrsqrt.pop %v2917
  %v2926 = vrsqrt.pop %v2918
  %v2927 = vrsqrt.pop %v2919
  %v2928 = vmul.f32 %v2864, %v2920
  %v2929 = vmul.f32 %v2865, %v2921
  %v2930 = vmul.f32 %v2866, %v2922
  %v2931 = vmul.f32 %v2867, %v2923
  %v2932 = vmul.f32 %v2868, %v2924
  %v2933 = vmul.f32 %v2869, %v2925
  %v2934 = vmul.f32 %v2870, %v2926
  %v2935 = vmul.f32 %v2871, %v2927
  %v2937 = vlaneseq
  %v2938 = vshrl.u32 %v2937, 7
  %v2939 = vsub.s32 0, %v2938
  %v2940 = vrot.slane %v2830, %v2939
  %v2942 = vmul.f32 %v2928, %v2940
  %v2943 = vmul.f32 %v2929, %v2940
  %v2944 = vmul.f32 %v2930, %v2940
  %v2945 = vmul.f32 %v2931, %v2940
  %v2946 = vmul.f32 %v2932, %v2940
  %v2947 = vmul.f32 %v2933, %v2940
  %v2948 = vmul.f32 %v2934, %v2940
  %v2949 = vmul.f32 %v2935, %v2940
  %v2951 = vlaneseq
  %v2952 = vshrl.u32 %v2951, 7
  %v2953 = vsub.s32 0, %v2952
  %v2954 = vrot.slane %v2831, %v2953
  %v2956 = vadd.f32 %v2942, %v2954
  %v2957 = vadd.f32 %v2943, %v2954
  %v2958 = vadd.f32 %v2944, %v2954
  %v2959 = vadd.f32 %v2945, %v2954
  %v2960 = vadd.f32 %v2946, %v2954
  %v2961 = vadd.f32 %v2947, %v2954
  %v2962 = vadd.f32 %v2948, %v2954
  %v2963 = vadd.f32 %v2949, %v2954
  %v2964 = vld [vmem:[%s16] sm:$0xff]
  %v2965 = vld [vmem:[%s16 + $0x8] sm:$0xff]
  %v2966 = vld [vmem:[%s16 + $0x10] sm:$0xff]
  %v2967 = vld [vmem:[%s16 + $0x18] sm:$0xff]
  %v2968 = vld [vmem:[%s17] sm:$0x1]
  %v2970 = vlaneseq
  %v2971 = vshrl.u32 %v2970, 7
  %v2972 = vsub.s32 0, %v2971
  %v2973 = vrot.slane %v2968, %v2972
  %v2976 = vsel %vm191, %v2956, 0
  %v2979 = vsel %vm191, %v2957, 0
  %v2982 = vsel %vm191, %v2958, 0
  %v2985 = vsel %vm191, %v2959, 0
  %v2988 = vsel %vm191, %v2960, 0
  %v2991 = vsel %vm191, %v2961, 0
  %v2994 = vsel %vm191, %v2962, 0
  %v2997 = vsel %vm191, %v2963, 0
  %2999 = vmatprep.subr.mxu0 0.0
  %3000 = vmatpush1.msra.mxu0 %v2964
  %3001 = vmatprep.subr.mxu0 0.0
  %3002 = vmatpush1.msra.mxu0 %v2965
  %3003 = vmatprep.subr.mxu0 0.0
  %3004 = vmatpush1.msra.mxu0 %v2966
  %3005 = vmatprep.subr.mxu0 0.0
  %3006 = vmatpush1.msra.mxu0 %v2967
  %3007 = vmatprep.subr.mxu0 0.0
  %3008 = vmatpush1.msra.mxu0 0.0
  %3009 = vmatprep.subr.mxu0 0.0
  %3010 = vmatpush1.msra.mxu0 0.0
  %3011 = vmatprep.subr.mxu0 0.0
  %3012 = vmatpush1.msra.mxu0 0.0
  %3013 = vmatprep.subr.mxu0 0.0
  %3014 = vmatpush1.msra.mxu0 0.0
  %3015 = vmatprep.subr.mxu0 0.0
  %3016 = vmatpush1.msra.mxu0 0.0
  %3017 = vmatprep.subr.mxu0 0.0
  %3018 = vmatpush1.msra.mxu0 0.0
  %3019 = vmatprep.subr.mxu0 0.0
  %3020 = vmatpush1.msra.mxu0 0.0
  %3021 = vmatprep.subr.mxu0 0.0
  %3022 = vmatpush1.msra.mxu0 0.0
  %3023 = vmatprep.subr.mxu0 0.0
  %3024 = vmatpush1.msra.mxu0 0.0
  %3025 = vmatprep.subr.mxu0 0.0
  %3026 = vmatpush1.msra.mxu0 0.0
  %3027 = vmatprep.subr.mxu0 0.0
  %3028 = vmatpush1.msra.mxu0 0.0
  %3029 = vmatprep.subr.mxu0 0.0
  %3030 = vmatpush1.msra.mxu0 0.0
  %3031 = vmatprep.subr.mxu0 0.0
  %3032 = vmatpush1.msra.mxu0 0.0
  %3033 = vmatprep.subr.mxu0 0.0
  %3034 = vmatpush1.msra.mxu0 0.0
  %3035 = vmatprep.subr.mxu0 0.0
  %3036 = vmatpush1.msra.mxu0 0.0
  %3037 = vmatprep.subr.mxu0 0.0
  %3038 = vmatpush1.msra.mxu0 0.0
  %3039 = vmatprep.subr.mxu0 0.0
  %3040 = vmatpush1.msra.mxu0 0.0
  %3041 = vmatprep.subr.mxu0 0.0
  %3042 = vmatpush1.msra.mxu0 0.0
  %3043 = vmatprep.subr.mxu0 0.0
  %3044 = vmatpush1.msra.mxu0 0.0
  %3045 = vmatprep.subr.mxu0 0.0
  %3046 = vmatpush1.msra.mxu0 0.0
  %3047 = vmatprep.subr.mxu0 0.0
  %3048 = vmatpush1.msra.mxu0 0.0
  %3049 = vmatprep.subr.mxu0 0.0
  %3050 = vmatpush1.msra.mxu0 0.0
  %3051 = vmatprep.subr.mxu0 0.0
  %3052 = vmatpush1.msra.mxu0 0.0
  %3053 = vmatprep.subr.mxu0 0.0
  %3054 = vmatpush1.msra.mxu0 0.0
  %3055 = vmatprep.subr.mxu0 0.0
  %3056 = vmatpush1.msra.mxu0 0.0
  %3057 = vmatprep.subr.mxu0 0.0
  %3058 = vmatpush1.msra.mxu0 0.0
  %3059 = vmatprep.subr.mxu0 0.0
  %3060 = vmatpush1.msra.mxu0 0.0
  %3061 = vmatprep.subr.mxu0 0.0
  %3062 = vmatpush1.msra.mxu0 0.0
  %3063 = vmatprep.mubr.f32.mxu0 0.0
  %3064 = vmatmul.mubr.f32.gmra.mrb[0].mxu0 %v2976
  %v3065 = vpop.f32.mrb[0].mxu0
  %v3066 = vadd.f32 %v2973, %v3065
  %v3067 = vpop.f32.mrb[0].mxu0
  %3068 = vmatprep.mubr.f32.mxu0 0.0
  %3069 = vmatmul.mubr.f32.gmra.mrb[0].mxu0 %v2979
  %v3070 = vpop.f32.mrb[0].mxu0
  %v3071 = vadd.f32 %v2973, %v3070
  %v3072 = vpop.f32.mrb[0].mxu0
  %3073 = vmatprep.mubr.f32.mxu0 0.0
  %3074 = vmatmul.mubr.f32.gmra.mrb[0].mxu0 %v2982
  %v3075 = vpop.f32.mrb[0].mxu0
  %v3076 = vadd.f32 %v2973, %v3075
  %v3077 = vpop.f32.mrb[0].mxu0
  %3078 = vmatprep.mubr.f32.mxu0 0.0
  %3079 = vmatmul.mubr.f32.gmra.mrb[0].mxu0 %v2985
  %v3080 = vpop.f32.mrb[0].mxu0
  %v3081 = vadd.f32 %v2973, %v3080
  %v3082 = vpop.f32.mrb[0].mxu0
  %3083 = vmatprep.mubr.f32.mxu0 0.0
  %3084 = vmatmul.mubr.f32.gmra.mrb[0].mxu0 %v2988
  %v3085 = vpop.f32.mrb[0].mxu0
  %v3086 = vadd.f32 %v2973, %v3085
  %v3087 = vpop.f32.mrb[0].mxu0
  %3088 = vmatprep.mubr.f32.mxu0 0.0
  %3089 = vmatmul.mubr.f32.gmra.mrb[0].mxu0 %v2991
  %v3090 = vpop.f32.mrb[0].mxu0
  %v3091 = vadd.f32 %v2973, %v3090
  %v3092 = vpop.f32.mrb[0].mxu0
  %3093 = vmatprep.mubr.f32.mxu0 0.0
  %3094 = vmatmul.mubr.f32.gmra.mrb[0].mxu0 %v2994
  %v3095 = vpop.f32.mrb[0].mxu0
  %v3096 = vadd.f32 %v2973, %v3095
  %v3097 = vpop.f32.mrb[0].mxu0
  %3098 = vmatprep.mubr.f32.mxu0 0.0
  %3099 = vmatmul.mubr.f32.gmra.mrb[0].mxu0 %v2997
  %v3100 = vpop.f32.mrb[0].mxu0
  %v3101 = vadd.f32 %v2973, %v3100
  %v3102 = vpop.f32.mrb[0].mxu0
  %3103 = vdwg.mxu0
  %v3104 = vmax.f32 %v3066, 0.0
  %v3105 = vmax.f32 %v3071, 0.0
  %v3106 = vmax.f32 %v3076, 0.0
  %v3107 = vmax.f32 %v3081, 0.0
  %v3108 = vmax.f32 %v3086, 0.0
  %v3109 = vmax.f32 %v3091, 0.0
  %v3110 = vmax.f32 %v3096, 0.0
  %v3111 = vmax.f32 %v3101, 0.0
  %v3112 = vld [vmem:[%s18] sm:$0xff]
  %v3113 = vld [vmem:[%s18 + $0x8] sm:$0xff]
  %v3114 = vld [vmem:[%s18 + $0x10] sm:$0xff]
  %v3115 = vld [vmem:[%s18 + $0x18] sm:$0xff]
  %v3116 = vld [vmem:[%s18 + $0x20] sm:$0xff]
  %v3117 = vld [vmem:[%s18 + $0x28] sm:$0xff]
  %v3118 = vld [vmem:[%s18 + $0x30] sm:$0xff]
  %v3119 = vld [vmem:[%s18 + $0x38] sm:$0xff]
  %v3120 = vld [vmem:[%s19] sm:$0x1]
  %v3122 = vlaneseq
  %v3123 = vshrl.u32 %v3122, 7
  %v3124 = vsub.s32 0, %v3123
  %v3125 = vrot.slane %v3120, %v3124
  %vm3127 = vcmask 523264
  %v3129 = vsel %vm3127, %v3104, 0
  %v3132 = vsel %vm3127, %v3105, 0
  %v3135 = vsel %vm3127, %v3106, 0
  %v3138 = vsel %vm3127, %v3107, 0
  %v3141 = vsel %vm3127, %v3108, 0
  %v3144 = vsel %vm3127, %v3109, 0
  %v3147 = vsel %vm3127, %v3110, 0
  %v3150 = vsel %vm3127, %v3111, 0
  %3152 = vmatprep.subr.mxu0 0.0
  %3153 = vmatpush1.msra.mxu0 %v3112
  %3154 = vmatprep.subr.mxu0 0.0
  %3155 = vmatpush1.msra.mxu0 %v3113
  %3156 = vmatprep.subr.mxu0 0.0
  %3157 = vmatpush1.msra.mxu0 %v3114
  %3158 = vmatprep.subr.mxu0 0.0
  %3159 = vmatpush1.msra.mxu0 %v3115
  %3160 = vmatprep.subr.mxu0 0.0
  %3161 = vmatpush1.msra.mxu0 %v3116
  %3162 = vmatprep.subr.mxu0 0.0
  %3163 = vmatpush1.msra.mxu0 %v3117
  %3164 = vmatprep.subr.mxu0 0.0
  %3165 = vmatpush1.msra.mxu0 %v3118
  %3166 = vmatprep.subr.mxu0 0.0
  %3167 = vmatpush1.msra.mxu0 %v3119
  %3168 = vmatprep.subr.mxu0 0.0
  %3169 = vmatpush1.msra.mxu0 0.0
  %3170 = vmatprep.subr.mxu0 0.0
  %3171 = vmatpush1.msra.mxu0 0.0
  %3172 = vmatprep.subr.mxu0 0.0
  %3173 = vmatpush1.msra.mxu0 0.0
  %3174 = vmatprep.subr.mxu0 0.0
  %3175 = vmatpush1.msra.mxu0 0.0
  %3176 = vmatprep.subr.mxu0 0.0
  %3177 = vmatpush1.msra.mxu0 0.0
  %3178 = vmatprep.subr.mxu0 0.0
  %3179 = vmatpush1.msra.mxu0 0.0
  %3180 = vmatprep.subr.mxu0 0.0
  %3181 = vmatpush1.msra.mxu0 0.0
  %3182 = vmatprep.subr.mxu0 0.0
  %3183 = vmatpush1.msra.mxu0 0.0
  %3184 = vmatprep.subr.mxu0 0.0
  %3185 = vmatpush1.msra.mxu0 0.0
  %3186 = vmatprep.subr.mxu0 0.0
  %3187 = vmatpush1.msra.mxu0 0.0
  %3188 = vmatprep.subr.mxu0 0.0
  %3189 = vmatpush1.msra.mxu0 0.0
  %3190 = vmatprep.subr.mxu0 0.0
  %3191 = vmatpush1.msra.mxu0 0.0
  %3192 = vmatprep.subr.mxu0 0.0
  %3193 = vmatpush1.msra.mxu0 0.0
  %3194 = vmatprep.subr.mxu0 0.0
  %3195 = vmatpush1.msra.mxu0 0.0
  %3196 = vmatprep.subr.mxu0 0.0
  %3197 = vmatpush1.msra.mxu0 0.0
  %3198 = vmatprep.subr.mxu0 0.0
  %3199 = vmatpush1.msra.mxu0 0.0
  %3200 = vmatprep.subr.mxu0 0.0
  %3201 = vmatpush1.msra.mxu0 0.0
  %3202 = vmatprep.subr.mxu0 0.0
  %3203 = vmatpush1.msra.mxu0 0.0
  %3204 = vmatprep.subr.mxu0 0.0
  %3205 = vmatpush1.msra.mxu0 0.0
  %3206 = vmatprep.subr.mxu0 0.0
  %3207 = vmatpush1.msra.mxu0 0.0
  %3208 = vmatprep.subr.mxu0 0.0
  %3209 = vmatpush1.msra.mxu0 0.0
  %3210 = vmatprep.subr.mxu0 0.0
  %3211 = vmatpush1.msra.mxu0 0.0
  %3212 = vmatprep.subr.mxu0 0.0
  %3213 = vmatpush1.msra.mxu0 0.0
  %3214 = vmatprep.subr.mxu0 0.0
  %3215 = vmatpush1.msra.mxu0 0.0
  %3216 = vmatprep.mubr.f32.mxu0 0.0
  %3217 = vmatmul.mubr.f32.gmra.mrb[0].mxu0 %v3129
  %v3218 = vpop.f32.mrb[0].mxu0
  %v3219 = vadd.f32 %v3125, %v3218
  %v3220 = vpop.f32.mrb[0].mxu0
  %3221 = vmatprep.mubr.f32.mxu0 0.0
  %3222 = vmatmul.mubr.f32.gmra.mrb[0].mxu0 %v3132
  %v3223 = vpop.f32.mrb[0].mxu0
  %v3224 = vadd.f32 %v3125, %v3223
  %v3225 = vpop.f32.mrb[0].mxu0
  %3226 = vmatprep.mubr.f32.mxu0 0.0
  %3227 = vmatmul.mubr.f32.gmra.mrb[0].mxu0 %v3135
  %v3228 = vpop.f32.mrb[0].mxu0
  %v3229 = vadd.f32 %v3125, %v3228
  %v3230 = vpop.f32.mrb[0].mxu0
  %3231 = vmatprep.mubr.f32.mxu0 0.0
  %3232 = vmatmul.mubr.f32.gmra.mrb[0].mxu0 %v3138
  %v3233 = vpop.f32.mrb[0].mxu0
  %v3234 = vadd.f32 %v3125, %v3233
  %v3235 = vpop.f32.mrb[0].mxu0
  %3236 = vmatprep.mubr.f32.mxu0 0.0
  %3237 = vmatmul.mubr.f32.gmra.mrb[0].mxu0 %v3141
  %v3238 = vpop.f32.mrb[0].mxu0
  %v3239 = vadd.f32 %v3125, %v3238
  %v3240 = vpop.f32.mrb[0].mxu0
  %3241 = vmatprep.mubr.f32.mxu0 0.0
  %3242 = vmatmul.mubr.f32.gmra.mrb[0].mxu0 %v3144
  %v3243 = vpop.f32.mrb[0].mxu0
  %v3244 = vadd.f32 %v3125, %v3243
  %v3245 = vpop.f32.mrb[0].mxu0
  %3246 = vmatprep.mubr.f32.mxu0 0.0
  %3247 = vmatmul.mubr.f32.gmra.mrb[0].mxu0 %v3147
  %v3248 = vpop.f32.mrb[0].mxu0
  %v3249 = vadd.f32 %v3125, %v3248
  %v3250 = vpop.f32.mrb[0].mxu0
  %3251 = vmatprep.mubr.f32.mxu0 0.0
  %3252 = vmatmul.mubr.f32.gmra.mrb[0].mxu0 %v3150
  %v3253 = vpop.f32.mrb[0].mxu0
  %v3254 = vadd.f32 %v3125, %v3253
  %v3255 = vpop.f32.mrb[0].mxu0
  %3256 = vdwg.mxu0
  %v3257 = vadd.f32 %v2822, %v3219
  %v3258 = vadd.f32 %v2823, %v3224
  %v3259 = vadd.f32 %v2824, %v3229
  %v3260 = vadd.f32 %v2825, %v3234
  %v3261 = vadd.f32 %v2826, %v3239
  %v3262 = vadd.f32 %v2827, %v3244
  %v3263 = vadd.f32 %v2828, %v3249
  %v3264 = vadd.f32 %v2829, %v3254
  %s3265 = scalar_lea.vmem %s4, 1
  %v3266 = vld [vmem:[%s3265] sm:$0x1]
  %s3267 = scalar_lea.vmem %s5, 1
  %v3268 = vld [vmem:[%s3267] sm:$0x1]
  %v3269 = vsel %vm191, %v3257, 0.0
  %3270 = vadd.xlane.f32.xlu0 %v3269
  %v3271 = vpop.xlane.xlu0 %3270
  %v3272 = vsel %vm191, %v3258, 0.0
  %3273 = vadd.xlane.f32.xlu0 %v3272
  %v3274 = vpop.xlane.xlu0 %3273
  %v3275 = vsel %vm191, %v3259, 0.0
  %3276 = vadd.xlane.f32.xlu0 %v3275
  %v3277 = vpop.xlane.xlu0 %3276
  %v3278 = vsel %vm191, %v3260, 0.0
  %3279 = vadd.xlane.f32.xlu0 %v3278
  %v3280 = vpop.xlane.xlu0 %3279
  %v3281 = vsel %vm191, %v3261, 0.0
  %3282 = vadd.xlane.f32.xlu0 %v3281
  %v3283 = vpop.xlane.xlu0 %3282
  %v3284 = vsel %vm191, %v3262, 0.0
  %3285 = vadd.xlane.f32.xlu0 %v3284
  %v3286 = vpop.xlane.xlu0 %3285
  %v3287 = vsel %vm191, %v3263, 0.0
  %3288 = vadd.xlane.f32.xlu0 %v3287
  %v3289 = vpop.xlane.xlu0 %3288
  %v3290 = vsel %vm191, %v3264, 0.0
  %3291 = vadd.xlane.f32.xlu0 %v3290
  %v3292 = vpop.xlane.xlu0 %3291
  %v3293 = vmul.f32 %v3271, %v216
  %v3294 = vmul.f32 %v3274, %v216
  %v3295 = vmul.f32 %v3277, %v216
  %v3296 = vmul.f32 %v3280, %v216
  %v3297 = vmul.f32 %v3283, %v216
  %v3298 = vmul.f32 %v3286, %v216
  %v3299 = vmul.f32 %v3289, %v216
  %v3300 = vmul.f32 %v3292, %v216
  %v3301 = vsub.f32 %v3257, %v3293
  %v3302 = vsub.f32 %v3258, %v3294
  %v3303 = vsub.f32 %v3259, %v3295
  %v3304 = vsub.f32 %v3260, %v3296
  %v3305 = vsub.f32 %v3261, %v3297
  %v3306 = vsub.f32 %v3262, %v3298
  %v3307 = vsub.f32 %v3263, %v3299
  %v3308 = vsub.f32 %v3264, %v3300
  %v3309 = vmul.f32 %v3301, %v3301
  %v3310 = vmul.f32 %v3302, %v3302
  %v3311 = vmul.f32 %v3303, %v3303
  %v3312 = vmul.f32 %v3304, %v3304
  %v3313 = vmul.f32 %v3305, %v3305
  %v3314 = vmul.f32 %v3306, %v3306
  %v3315 = vmul.f32 %v3307, %v3307
  %v3316 = vmul.f32 %v3308, %v3308
  %v3317 = vsel %vm191, %v3309, 0.0
  %3318 = vadd.xlane.f32.xlu0 %v3317
  %v3319 = vpop.xlane.xlu0 %3318
  %v3320 = vsel %vm191, %v3310, 0.0
  %3321 = vadd.xlane.f32.xlu0 %v3320
  %v3322 = vpop.xlane.xlu0 %3321
  %v3323 = vsel %vm191, %v3311, 0.0
  %3324 = vadd.xlane.f32.xlu0 %v3323
  %v3325 = vpop.xlane.xlu0 %3324
  %v3326 = vsel %vm191, %v3312, 0.0
  %3327 = vadd.xlane.f32.xlu0 %v3326
  %v3328 = vpop.xlane.xlu0 %3327
  %v3329 = vsel %vm191, %v3313, 0.0
  %3330 = vadd.xlane.f32.xlu0 %v3329
  %v3331 = vpop.xlane.xlu0 %3330
  %v3332 = vsel %vm191, %v3314, 0.0
  %3333 = vadd.xlane.f32.xlu0 %v3332
  %v3334 = vpop.xlane.xlu0 %3333
  %v3335 = vsel %vm191, %v3315, 0.0
  %3336 = vadd.xlane.f32.xlu0 %v3335
  %v3337 = vpop.xlane.xlu0 %3336
  %v3338 = vsel %vm191, %v3316, 0.0
  %3339 = vadd.xlane.f32.xlu0 %v3338
  %v3340 = vpop.xlane.xlu0 %3339
  %v3341 = vmul.f32 %v3319, %v216
  %v3342 = vmul.f32 %v3322, %v216
  %v3343 = vmul.f32 %v3325, %v216
  %v3344 = vmul.f32 %v3328, %v216
  %v3345 = vmul.f32 %v3331, %v216
  %v3346 = vmul.f32 %v3334, %v216
  %v3347 = vmul.f32 %v3337, %v216
  %v3348 = vmul.f32 %v3340, %v216
  %v3349 = vadd.f32 %v3341, 1e-05
  %v3350 = vadd.f32 %v3342, 1e-05
  %v3351 = vadd.f32 %v3343, 1e-05
  %v3352 = vadd.f32 %v3344, 1e-05
  %v3353 = vadd.f32 %v3345, 1e-05
  %v3354 = vadd.f32 %v3346, 1e-05
  %v3355 = vadd.f32 %v3347, 1e-05
  %v3356 = vadd.f32 %v3348, 1e-05
  %v3357 = vrsqrt.pop %v3349
  %v3358 = vrsqrt.pop %v3350
  %v3359 = vrsqrt.pop %v3351
  %v3360 = vrsqrt.pop %v3352
  %v3361 = vrsqrt.pop %v3353
  %v3362 = vrsqrt.pop %v3354
  %v3363 = vrsqrt.pop %v3355
  %v3364 = vrsqrt.pop %v3356
  %v3365 = vmul.f32 %v3301, %v3357
  %v3366 = vmul.f32 %v3302, %v3358
  %v3367 = vmul.f32 %v3303, %v3359
  %v3368 = vmul.f32 %v3304, %v3360
  %v3369 = vmul.f32 %v3305, %v3361
  %v3370 = vmul.f32 %v3306, %v3362
  %v3371 = vmul.f32 %v3307, %v3363
  %v3372 = vmul.f32 %v3308, %v3364
  %v3374 = vlaneseq
  %v3375 = vshrl.u32 %v3374, 7
  %v3376 = vsub.s32 0, %v3375
  %v3377 = vrot.slane %v3266, %v3376
  %v3379 = vmul.f32 %v3365, %v3377
  %v3380 = vmul.f32 %v3366, %v3377
  %v3381 = vmul.f32 %v3367, %v3377
  %v3382 = vmul.f32 %v3368, %v3377
  %v3383 = vmul.f32 %v3369, %v3377
  %v3384 = vmul.f32 %v3370, %v3377
  %v3385 = vmul.f32 %v3371, %v3377
  %v3386 = vmul.f32 %v3372, %v3377
  %v3388 = vlaneseq
  %v3389 = vshrl.u32 %v3388, 7
  %v3390 = vsub.s32 0, %v3389
  %v3391 = vrot.slane %v3268, %v3390
  %v3393 = vadd.f32 %v3379, %v3391
  %v3394 = vadd.f32 %v3380, %v3391
  %v3395 = vadd.f32 %v3381, %v3391
  %v3396 = vadd.f32 %v3382, %v3391
  %v3397 = vadd.f32 %v3383, %v3391
  %v3398 = vadd.f32 %v3384, %v3391
  %v3399 = vadd.f32 %v3385, %v3391
  %v3400 = vadd.f32 %v3386, %v3391
  %s3401 = scalar_lea.vmem %s6, 32
  %v3402 = vld [vmem:[%s3401] sm:$0xff]
  %v3403 = vld [vmem:[%s3401 + $0x8] sm:$0xff]
  %v3404 = vld [vmem:[%s3401 + $0x10] sm:$0xff]
  %v3405 = vld [vmem:[%s3401 + $0x18] sm:$0xff]
  %s3406 = scalar_lea.vmem %s9, 1
  %v3407 = vld [vmem:[%s3406] sm:$0x1]
  %v3409 = vlaneseq
  %v3410 = vshrl.u32 %v3409, 7
  %v3411 = vsub.s32 0, %v3410
  %v3412 = vrot.slane %v3407, %v3411
  %v3415 = vsel %vm191, %v3393, 0
  %v3418 = vsel %vm191, %v3394, 0
  %v3421 = vsel %vm191, %v3395, 0
  %v3424 = vsel %vm191, %v3396, 0
  %v3427 = vsel %vm191, %v3397, 0
  %v3430 = vsel %vm191, %v3398, 0
  %v3433 = vsel %vm191, %v3399, 0
  %v3436 = vsel %vm191, %v3400, 0
  %3438 = vmatprep.subr.mxu0 0.0
  %3439 = vmatpush1.msra.mxu0 %v3402
  %3440 = vmatprep.subr.mxu0 0.0
  %3441 = vmatpush1.msra.mxu0 %v3403
  %3442 = vmatprep.subr.mxu0 0.0
  %3443 = vmatpush1.msra.mxu0 %v3404
  %3444 = vmatprep.subr.mxu0 0.0
  %3445 = vmatpush1.msra.mxu0 %v3405
  %3446 = vmatprep.subr.mxu0 0.0
  %3447 = vmatpush1.msra.mxu0 0.0
  %3448 = vmatprep.subr.mxu0 0.0
  %3449 = vmatpush1.msra.mxu0 0.0
  %3450 = vmatprep.subr.mxu0 0.0
  %3451 = vmatpush1.msra.mxu0 0.0
  %3452 = vmatprep.subr.mxu0 0.0
  %3453 = vmatpush1.msra.mxu0 0.0
  %3454 = vmatprep.subr.mxu0 0.0
  %3455 = vmatpush1.msra.mxu0 0.0
  %3456 = vmatprep.subr.mxu0 0.0
  %3457 = vmatpush1.msra.mxu0 0.0
  %3458 = vmatprep.subr.mxu0 0.0
  %3459 = vmatpush1.msra.mxu0 0.0
  %3460 = vmatprep.subr.mxu0 0.0
  %3461 = vmatpush1.msra.mxu0 0.0
  %3462 = vmatprep.subr.mxu0 0.0
  %3463 = vmatpush1.msra.mxu0 0.0
  %3464 = vmatprep.subr.mxu0 0.0
  %3465 = vmatpush1.msra.mxu0 0.0
  %3466 = vmatprep.subr.mxu0 0.0
  %3467 = vmatpush1.msra.mxu0 0.0
  %3468 = vmatprep.subr.mxu0 0.0
  %3469 = vmatpush1.msra.mxu0 0.0
  %3470 = vmatprep.subr.mxu0 0.0
  %3471 = vmatpush1.msra.mxu0 0.0
  %3472 = vmatprep.subr.mxu0 0.0
  %3473 = vmatpush1.msra.mxu0 0.0
  %3474 = vmatprep.subr.mxu0 0.0
  %3475 = vmatpush1.msra.mxu0 0.0
  %3476 = vmatprep.subr.mxu0 0.0
  %3477 = vmatpush1.msra.mxu0 0.0
  %3478 = vmatprep.subr.mxu0 0.0
  %3479 = vmatpush1.msra.mxu0 0.0
  %3480 = vmatprep.subr.mxu0 0.0
  %3481 = vmatpush1.msra.mxu0 0.0
  %3482 = vmatprep.subr.mxu0 0.0
  %3483 = vmatpush1.msra.mxu0 0.0
  %3484 = vmatprep.subr.mxu0 0.0
  %3485 = vmatpush1.msra.mxu0 0.0
  %3486 = vmatprep.subr.mxu0 0.0
  %3487 = vmatpush1.msra.mxu0 0.0
  %3488 = vmatprep.subr.mxu0 0.0
  %3489 = vmatpush1.msra.mxu0 0.0
  %3490 = vmatprep.subr.mxu0 0.0
  %3491 = vmatpush1.msra.mxu0 0.0
  %3492 = vmatprep.subr.mxu0 0.0
  %3493 = vmatpush1.msra.mxu0 0.0
  %3494 = vmatprep.subr.mxu0 0.0
  %3495 = vmatpush1.msra.mxu0 0.0
  %3496 = vmatprep.subr.mxu0 0.0
  %3497 = vmatpush1.msra.mxu0 0.0
  %3498 = vmatprep.subr.mxu0 0.0
  %3499 = vmatpush1.msra.mxu0 0.0
  %3500 = vmatprep.subr.mxu0 0.0
  %3501 = vmatpush1.msra.mxu0 0.0
  %3502 = vmatprep.mubr.f32.mxu0 0.0
  %3503 = vmatmul.mubr.f32.gmra.mrb[0].mxu0 %v3415
  %v3504 = vpop.f32.mrb[0].mxu0
  %v3505 = vadd.f32 %v3412, %v3504
  %v3506 = vpop.f32.mrb[0].mxu0
  %3507 = vmatprep.mubr.f32.mxu0 0.0
  %3508 = vmatmul.mubr.f32.gmra.mrb[0].mxu0 %v3418
  %v3509 = vpop.f32.mrb[0].mxu0
  %v3510 = vadd.f32 %v3412, %v3509
  %v3511 = vpop.f32.mrb[0].mxu0
  %3512 = vmatprep.mubr.f32.mxu0 0.0
  %3513 = vmatmul.mubr.f32.gmra.mrb[0].mxu0 %v3421
  %v3514 = vpop.f32.mrb[0].mxu0
  %v3515 = vadd.f32 %v3412, %v3514
  %v3516 = vpop.f32.mrb[0].mxu0
  %3517 = vmatprep.mubr.f32.mxu0 0.0
  %3518 = vmatmul.mubr.f32.gmra.mrb[0].mxu0 %v3424
  %v3519 = vpop.f32.mrb[0].mxu0
  %v3520 = vadd.f32 %v3412, %v3519
  %v3521 = vpop.f32.mrb[0].mxu0
  %3522 = vmatprep.mubr.f32.mxu0 0.0
  %3523 = vmatmul.mubr.f32.gmra.mrb[0].mxu0 %v3427
  %v3524 = vpop.f32.mrb[0].mxu0
  %v3525 = vadd.f32 %v3412, %v3524
  %v3526 = vpop.f32.mrb[0].mxu0
  %3527 = vmatprep.mubr.f32.mxu0 0.0
  %3528 = vmatmul.mubr.f32.gmra.mrb[0].mxu0 %v3430
  %v3529 = vpop.f32.mrb[0].mxu0
  %v3530 = vadd.f32 %v3412, %v3529
  %v3531 = vpop.f32.mrb[0].mxu0
  %3532 = vmatprep.mubr.f32.mxu0 0.0
  %3533 = vmatmul.mubr.f32.gmra.mrb[0].mxu0 %v3433
  %v3534 = vpop.f32.mrb[0].mxu0
  %v3535 = vadd.f32 %v3412, %v3534
  %v3536 = vpop.f32.mrb[0].mxu0
  %3537 = vmatprep.mubr.f32.mxu0 0.0
  %3538 = vmatmul.mubr.f32.gmra.mrb[0].mxu0 %v3436
  %v3539 = vpop.f32.mrb[0].mxu0
  %v3540 = vadd.f32 %v3412, %v3539
  %v3541 = vpop.f32.mrb[0].mxu0
  %3542 = vdwg.mxu0
  %s3543 = scalar_lea.vmem %s7, 32
  %v3544 = vld [vmem:[%s3543] sm:$0xff]
  %v3545 = vld [vmem:[%s3543 + $0x8] sm:$0xff]
  %v3546 = vld [vmem:[%s3543 + $0x10] sm:$0xff]
  %v3547 = vld [vmem:[%s3543 + $0x18] sm:$0xff]
  %s3548 = scalar_lea.vmem %s10, 1
  %v3549 = vld [vmem:[%s3548] sm:$0x1]
  %v3551 = vlaneseq
  %v3552 = vshrl.u32 %v3551, 7
  %v3553 = vsub.s32 0, %v3552
  %v3554 = vrot.slane %v3549, %v3553
  %3556 = vmatprep.subr.mxu0 0.0
  %3557 = vmatpush1.msra.mxu0 %v3544
  %3558 = vmatprep.subr.mxu0 0.0
  %3559 = vmatpush1.msra.mxu0 %v3545
  %3560 = vmatprep.subr.mxu0 0.0
  %3561 = vmatpush1.msra.mxu0 %v3546
  %3562 = vmatprep.subr.mxu0 0.0
  %3563 = vmatpush1.msra.mxu0 %v3547
  %3564 = vmatprep.subr.mxu0 0.0
  %3565 = vmatpush1.msra.mxu0 0.0
  %3566 = vmatprep.subr.mxu0 0.0
  %3567 = vmatpush1.msra.mxu0 0.0
  %3568 = vmatprep.subr.mxu0 0.0
  %3569 = vmatpush1.msra.mxu0 0.0
  %3570 = vmatprep.subr.mxu0 0.0
  %3571 = vmatpush1.msra.mxu0 0.0
  %3572 = vmatprep.subr.mxu0 0.0
  %3573 = vmatpush1.msra.mxu0 0.0
  %3574 = vmatprep.subr.mxu0 0.0
  %3575 = vmatpush1.msra.mxu0 0.0
  %3576 = vmatprep.subr.mxu0 0.0
  %3577 = vmatpush1.msra.mxu0 0.0
  %3578 = vmatprep.subr.mxu0 0.0
  %3579 = vmatpush1.msra.mxu0 0.0
  %3580 = vmatprep.subr.mxu0 0.0
  %3581 = vmatpush1.msra.mxu0 0.0
  %3582 = vmatprep.subr.mxu0 0.0
  %3583 = vmatpush1.msra.mxu0 0.0
  %3584 = vmatprep.subr.mxu0 0.0
  %3585 = vmatpush1.msra.mxu0 0.0
  %3586 = vmatprep.subr.mxu0 0.0
  %3587 = vmatpush1.msra.mxu0 0.0
  %3588 = vmatprep.subr.mxu0 0.0
  %3589 = vmatpush1.msra.mxu0 0.0
  %3590 = vmatprep.subr.mxu0 0.0
  %3591 = vmatpush1.msra.mxu0 0.0
  %3592 = vmatprep.subr.mxu0 0.0
  %3593 = vmatpush1.msra.mxu0 0.0
  %3594 = vmatprep.subr.mxu0 0.0
  %3595 = vmatpush1.msra.mxu0 0.0
  %3596 = vmatprep.subr.mxu0 0.0
  %3597 = vmatpush1.msra.mxu0 0.0
  %3598 = vmatprep.subr.mxu0 0.0
  %3599 = vmatpush1.msra.mxu0 0.0
  %3600 = vmatprep.subr.mxu0 0.0
  %3601 = vmatpush1.msra.mxu0 0.0
  %3602 = vmatprep.subr.mxu0 0.0
  %3603 = vmatpush1.msra.mxu0 0.0
  %3604 = vmatprep.subr.mxu0 0.0
  %3605 = vmatpush1.msra.mxu0 0.0
  %3606 = vmatprep.subr.mxu0 0.0
  %3607 = vmatpush1.msra.mxu0 0.0
  %3608 = vmatprep.subr.mxu0 0.0
  %3609 = vmatpush1.msra.mxu0 0.0
  %3610 = vmatprep.subr.mxu0 0.0
  %3611 = vmatpush1.msra.mxu0 0.0
  %3612 = vmatprep.subr.mxu0 0.0
  %3613 = vmatpush1.msra.mxu0 0.0
  %3614 = vmatprep.subr.mxu0 0.0
  %3615 = vmatpush1.msra.mxu0 0.0
  %3616 = vmatprep.subr.mxu0 0.0
  %3617 = vmatpush1.msra.mxu0 0.0
  %3618 = vmatprep.subr.mxu0 0.0
  %3619 = vmatpush1.msra.mxu0 0.0
  %3620 = vmatprep.mubr.f32.mxu0 0.0
  %3621 = vmatmul.mubr.f32.gmra.mrb[0].mxu0 %v477
  %v3622 = vpop.f32.mrb[0].mxu0
  %v3623 = vadd.f32 %v3554, %v3622
  %v3624 = vpop.f32.mrb[0].mxu0
  %3625 = vmatprep.mubr.f32.mxu0 0.0
  %3626 = vmatmul.mubr.f32.gmra.mrb[0].mxu0 %v480
  %v3627 = vpop.f32.mrb[0].mxu0
  %v3628 = vadd.f32 %v3554, %v3627
  %v3629 = vpop.f32.mrb[0].mxu0
  %3630 = vmatprep.mubr.f32.mxu0 0.0
  %3631 = vmatmul.mubr.f32.gmra.mrb[0].mxu0 %v483
  %v3632 = vpop.f32.mrb[0].mxu0
  %v3633 = vadd.f32 %v3554, %v3632
  %v3634 = vpop.f32.mrb[0].mxu0
  %3635 = vmatprep.mubr.f32.mxu0 0.0
  %3636 = vmatmul.mubr.f32.gmra.mrb[0].mxu0 %v486
  %v3637 = vpop.f32.mrb[0].mxu0
  %v3638 = vadd.f32 %v3554, %v3637
  %v3639 = vpop.f32.mrb[0].mxu0
  %3640 = vmatprep.mubr.f32.mxu0 0.0
  %3641 = vmatmul.mubr.f32.gmra.mrb[0].mxu0 %v489
  %v3642 = vpop.f32.mrb[0].mxu0
  %v3643 = vadd.f32 %v3554, %v3642
  %v3644 = vpop.f32.mrb[0].mxu0
  %3645 = vmatprep.mubr.f32.mxu0 0.0
  %3646 = vmatmul.mubr.f32.gmra.mrb[0].mxu0 %v492
  %v3647 = vpop.f32.mrb[0].mxu0
  %v3648 = vadd.f32 %v3554, %v3647
  %v3649 = vpop.f32.mrb[0].mxu0
  %3650 = vmatprep.mubr.f32.mxu0 0.0
  %3651 = vmatmul.mubr.f32.gmra.mrb[0].mxu0 %v495
  %v3652 = vpop.f32.mrb[0].mxu0
  %v3653 = vadd.f32 %v3554, %v3652
  %v3654 = vpop.f32.mrb[0].mxu0
  %3655 = vmatprep.mubr.f32.mxu0 0.0
  %3656 = vmatmul.mubr.f32.gmra.mrb[0].mxu0 %v498
  %v3657 = vpop.f32.mrb[0].mxu0
  %v3658 = vadd.f32 %v3554, %v3657
  %v3659 = vpop.f32.mrb[0].mxu0
  %3660 = vmatprep.mubr.f32.mxu0 0.0
  %3661 = vmatmul.mubr.f32.gmra.mrb[0].mxu0 %v501
  %v3662 = vpop.f32.mrb[0].mxu0
  %v3663 = vadd.f32 %v3554, %v3662
  %v3664 = vpop.f32.mrb[0].mxu0
  %3665 = vmatprep.mubr.f32.mxu0 0.0
  %3666 = vmatmul.mubr.f32.gmra.mrb[0].mxu0 %v504
  %v3667 = vpop.f32.mrb[0].mxu0
  %v3668 = vadd.f32 %v3554, %v3667
  %v3669 = vpop.f32.mrb[0].mxu0
  %3670 = vmatprep.mubr.f32.mxu0 0.0
  %3671 = vmatmul.mubr.f32.gmra.mrb[0].mxu0 %v507
  %v3672 = vpop.f32.mrb[0].mxu0
  %v3673 = vadd.f32 %v3554, %v3672
  %v3674 = vpop.f32.mrb[0].mxu0
  %3675 = vmatprep.mubr.f32.mxu0 0.0
  %3676 = vmatmul.mubr.f32.gmra.mrb[0].mxu0 %v510
  %v3677 = vpop.f32.mrb[0].mxu0
  %v3678 = vadd.f32 %v3554, %v3677
  %v3679 = vpop.f32.mrb[0].mxu0
  %3680 = vmatprep.mubr.f32.mxu0 0.0
  %3681 = vmatmul.mubr.f32.gmra.mrb[0].mxu0 %v513
  %v3682 = vpop.f32.mrb[0].mxu0
  %v3683 = vadd.f32 %v3554, %v3682
  %v3684 = vpop.f32.mrb[0].mxu0
  %3685 = vmatprep.mubr.f32.mxu0 0.0
  %3686 = vmatmul.mubr.f32.gmra.mrb[0].mxu0 %v516
  %v3687 = vpop.f32.mrb[0].mxu0
  %v3688 = vadd.f32 %v3554, %v3687
  %v3689 = vpop.f32.mrb[0].mxu0
  %3690 = vmatprep.mubr.f32.mxu0 0.0
  %3691 = vmatmul.mubr.f32.gmra.mrb[0].mxu0 %v519
  %v3692 = vpop.f32.mrb[0].mxu0
  %v3693 = vadd.f32 %v3554, %v3692
  %v3694 = vpop.f32.mrb[0].mxu0
  %3695 = vmatprep.mubr.f32.mxu0 0.0
  %3696 = vmatmul.mubr.f32.gmra.mrb[0].mxu0 %v522
  %v3697 = vpop.f32.mrb[0].mxu0
  %v3698 = vadd.f32 %v3554, %v3697
  %v3699 = vpop.f32.mrb[0].mxu0
  %3700 = vmatprep.mubr.f32.mxu0 0.0
  %3701 = vmatmul.mubr.f32.gmra.mrb[0].mxu0 %v525
  %v3702 = vpop.f32.mrb[0].mxu0
  %v3703 = vadd.f32 %v3554, %v3702
  %v3704 = vpop.f32.mrb[0].mxu0
  %3705 = vmatprep.mubr.f32.mxu0 0.0
  %3706 = vmatmul.mubr.f32.gmra.mrb[0].mxu0 %v528
  %v3707 = vpop.f32.mrb[0].mxu0
  %v3708 = vadd.f32 %v3554, %v3707
  %v3709 = vpop.f32.mrb[0].mxu0
  %3710 = vmatprep.mubr.f32.mxu0 0.0
  %3711 = vmatmul.mubr.f32.gmra.mrb[0].mxu0 %v531
  %v3712 = vpop.f32.mrb[0].mxu0
  %v3713 = vadd.f32 %v3554, %v3712
  %v3714 = vpop.f32.mrb[0].mxu0
  %3715 = vmatprep.mubr.f32.mxu0 0.0
  %3716 = vmatmul.mubr.f32.gmra.mrb[0].mxu0 %v534
  %v3717 = vpop.f32.mrb[0].mxu0
  %v3718 = vadd.f32 %v3554, %v3717
  %v3719 = vpop.f32.mrb[0].mxu0
  %3720 = vmatprep.mubr.f32.mxu0 0.0
  %3721 = vmatmul.mubr.f32.gmra.mrb[0].mxu0 %v537
  %v3722 = vpop.f32.mrb[0].mxu0
  %v3723 = vadd.f32 %v3554, %v3722
  %v3724 = vpop.f32.mrb[0].mxu0
  %3725 = vmatprep.mubr.f32.mxu0 0.0
  %3726 = vmatmul.mubr.f32.gmra.mrb[0].mxu0 %v540
  %v3727 = vpop.f32.mrb[0].mxu0
  %v3728 = vadd.f32 %v3554, %v3727
  %v3729 = vpop.f32.mrb[0].mxu0
  %3730 = vmatprep.mubr.f32.mxu0 0.0
  %3731 = vmatmul.mubr.f32.gmra.mrb[0].mxu0 %v543
  %v3732 = vpop.f32.mrb[0].mxu0
  %v3733 = vadd.f32 %v3554, %v3732
  %v3734 = vpop.f32.mrb[0].mxu0
  %3735 = vmatprep.mubr.f32.mxu0 0.0
  %3736 = vmatmul.mubr.f32.gmra.mrb[0].mxu0 %v546
  %v3737 = vpop.f32.mrb[0].mxu0
  %v3738 = vadd.f32 %v3554, %v3737
  %v3739 = vpop.f32.mrb[0].mxu0
  %3740 = vmatprep.mubr.f32.mxu0 0.0
  %3741 = vmatmul.mubr.f32.gmra.mrb[0].mxu0 %v549
  %v3742 = vpop.f32.mrb[0].mxu0
  %v3743 = vadd.f32 %v3554, %v3742
  %v3744 = vpop.f32.mrb[0].mxu0
  %3745 = vmatprep.mubr.f32.mxu0 0.0
  %3746 = vmatmul.mubr.f32.gmra.mrb[0].mxu0 %v552
  %v3747 = vpop.f32.mrb[0].mxu0
  %v3748 = vadd.f32 %v3554, %v3747
  %v3749 = vpop.f32.mrb[0].mxu0
  %3750 = vmatprep.mubr.f32.mxu0 0.0
  %3751 = vmatmul.mubr.f32.gmra.mrb[0].mxu0 %v555
  %v3752 = vpop.f32.mrb[0].mxu0
  %v3753 = vadd.f32 %v3554, %v3752
  %v3754 = vpop.f32.mrb[0].mxu0
  %3755 = vmatprep.mubr.f32.mxu0 0.0
  %3756 = vmatmul.mubr.f32.gmra.mrb[0].mxu0 %v558
  %v3757 = vpop.f32.mrb[0].mxu0
  %v3758 = vadd.f32 %v3554, %v3757
  %v3759 = vpop.f32.mrb[0].mxu0
  %3760 = vmatprep.mubr.f32.mxu0 0.0
  %3761 = vmatmul.mubr.f32.gmra.mrb[0].mxu0 %v561
  %v3762 = vpop.f32.mrb[0].mxu0
  %v3763 = vadd.f32 %v3554, %v3762
  %v3764 = vpop.f32.mrb[0].mxu0
  %3765 = vmatprep.mubr.f32.mxu0 0.0
  %3766 = vmatmul.mubr.f32.gmra.mrb[0].mxu0 %v564
  %v3767 = vpop.f32.mrb[0].mxu0
  %v3768 = vadd.f32 %v3554, %v3767
  %v3769 = vpop.f32.mrb[0].mxu0
  %3770 = vmatprep.mubr.f32.mxu0 0.0
  %3771 = vmatmul.mubr.f32.gmra.mrb[0].mxu0 %v567
  %v3772 = vpop.f32.mrb[0].mxu0
  %v3773 = vadd.f32 %v3554, %v3772
  %v3774 = vpop.f32.mrb[0].mxu0
  %3775 = vmatprep.mubr.f32.mxu0 0.0
  %3776 = vmatmul.mubr.f32.gmra.mrb[0].mxu0 %v570
  %v3777 = vpop.f32.mrb[0].mxu0
  %v3778 = vadd.f32 %v3554, %v3777
  %v3779 = vpop.f32.mrb[0].mxu0
  %3780 = vmatprep.mubr.f32.mxu0 0.0
  %3781 = vmatmul.mubr.f32.gmra.mrb[0].mxu0 %v573
  %v3782 = vpop.f32.mrb[0].mxu0
  %v3783 = vadd.f32 %v3554, %v3782
  %v3784 = vpop.f32.mrb[0].mxu0
  %3785 = vmatprep.mubr.f32.mxu0 0.0
  %3786 = vmatmul.mubr.f32.gmra.mrb[0].mxu0 %v576
  %v3787 = vpop.f32.mrb[0].mxu0
  %v3788 = vadd.f32 %v3554, %v3787
  %v3789 = vpop.f32.mrb[0].mxu0
  %3790 = vmatprep.mubr.f32.mxu0 0.0
  %3791 = vmatmul.mubr.f32.gmra.mrb[0].mxu0 %v579
  %v3792 = vpop.f32.mrb[0].mxu0
  %v3793 = vadd.f32 %v3554, %v3792
  %v3794 = vpop.f32.mrb[0].mxu0
  %3795 = vmatprep.mubr.f32.mxu0 0.0
  %3796 = vmatmul.mubr.f32.gmra.mrb[0].mxu0 %v582
  %v3797 = vpop.f32.mrb[0].mxu0
  %v3798 = vadd.f32 %v3554, %v3797
  %v3799 = vpop.f32.mrb[0].mxu0
  %3800 = vmatprep.mubr.f32.mxu0 0.0
  %3801 = vmatmul.mubr.f32.gmra.mrb[0].mxu0 %v585
  %v3802 = vpop.f32.mrb[0].mxu0
  %v3803 = vadd.f32 %v3554, %v3802
  %v3804 = vpop.f32.mrb[0].mxu0
  %3805 = vmatprep.mubr.f32.mxu0 0.0
  %3806 = vmatmul.mubr.f32.gmra.mrb[0].mxu0 %v588
  %v3807 = vpop.f32.mrb[0].mxu0
  %v3808 = vadd.f32 %v3554, %v3807
  %v3809 = vpop.f32.mrb[0].mxu0
  %3810 = vmatprep.mubr.f32.mxu0 0.0
  %3811 = vmatmul.mubr.f32.gmra.mrb[0].mxu0 %v591
  %v3812 = vpop.f32.mrb[0].mxu0
  %v3813 = vadd.f32 %v3554, %v3812
  %v3814 = vpop.f32.mrb[0].mxu0
  %3815 = vmatprep.mubr.f32.mxu0 0.0
  %3816 = vmatmul.mubr.f32.gmra.mrb[0].mxu0 %v594
  %v3817 = vpop.f32.mrb[0].mxu0
  %v3818 = vadd.f32 %v3554, %v3817
  %v3819 = vpop.f32.mrb[0].mxu0
  %3820 = vmatprep.mubr.f32.mxu0 0.0
  %3821 = vmatmul.mubr.f32.gmra.mrb[0].mxu0 %v597
  %v3822 = vpop.f32.mrb[0].mxu0
  %v3823 = vadd.f32 %v3554, %v3822
  %v3824 = vpop.f32.mrb[0].mxu0
  %3825 = vmatprep.mubr.f32.mxu0 0.0
  %3826 = vmatmul.mubr.f32.gmra.mrb[0].mxu0 %v600
  %v3827 = vpop.f32.mrb[0].mxu0
  %v3828 = vadd.f32 %v3554, %v3827
  %v3829 = vpop.f32.mrb[0].mxu0
  %3830 = vmatprep.mubr.f32.mxu0 0.0
  %3831 = vmatmul.mubr.f32.gmra.mrb[0].mxu0 %v603
  %v3832 = vpop.f32.mrb[0].mxu0
  %v3833 = vadd.f32 %v3554, %v3832
  %v3834 = vpop.f32.mrb[0].mxu0
  %3835 = vmatprep.mubr.f32.mxu0 0.0
  %3836 = vmatmul.mubr.f32.gmra.mrb[0].mxu0 %v606
  %v3837 = vpop.f32.mrb[0].mxu0
  %v3838 = vadd.f32 %v3554, %v3837
  %v3839 = vpop.f32.mrb[0].mxu0
  %3840 = vmatprep.mubr.f32.mxu0 0.0
  %3841 = vmatmul.mubr.f32.gmra.mrb[0].mxu0 %v609
  %v3842 = vpop.f32.mrb[0].mxu0
  %v3843 = vadd.f32 %v3554, %v3842
  %v3844 = vpop.f32.mrb[0].mxu0
  %3845 = vmatprep.mubr.f32.mxu0 0.0
  %3846 = vmatmul.mubr.f32.gmra.mrb[0].mxu0 %v612
  %v3847 = vpop.f32.mrb[0].mxu0
  %v3848 = vadd.f32 %v3554, %v3847
  %v3849 = vpop.f32.mrb[0].mxu0
  %3850 = vmatprep.mubr.f32.mxu0 0.0
  %3851 = vmatmul.mubr.f32.gmra.mrb[0].mxu0 %v615
  %v3852 = vpop.f32.mrb[0].mxu0
  %v3853 = vadd.f32 %v3554, %v3852
  %v3854 = vpop.f32.mrb[0].mxu0
  %3855 = vmatprep.mubr.f32.mxu0 0.0
  %3856 = vmatmul.mubr.f32.gmra.mrb[0].mxu0 %v618
  %v3857 = vpop.f32.mrb[0].mxu0
  %v3858 = vadd.f32 %v3554, %v3857
  %v3859 = vpop.f32.mrb[0].mxu0
  %3860 = vmatprep.mubr.f32.mxu0 0.0
  %3861 = vmatmul.mubr.f32.gmra.mrb[0].mxu0 %v621
  %v3862 = vpop.f32.mrb[0].mxu0
  %v3863 = vadd.f32 %v3554, %v3862
  %v3864 = vpop.f32.mrb[0].mxu0
  %3865 = vmatprep.mubr.f32.mxu0 0.0
  %3866 = vmatmul.mubr.f32.gmra.mrb[0].mxu0 %v624
  %v3867 = vpop.f32.mrb[0].mxu0
  %v3868 = vadd.f32 %v3554, %v3867
  %v3869 = vpop.f32.mrb[0].mxu0
  %3870 = vmatprep.mubr.f32.mxu0 0.0
  %3871 = vmatmul.mubr.f32.gmra.mrb[0].mxu0 %v627
  %v3872 = vpop.f32.mrb[0].mxu0
  %v3873 = vadd.f32 %v3554, %v3872
  %v3874 = vpop.f32.mrb[0].mxu0
  %3875 = vmatprep.mubr.f32.mxu0 0.0
  %3876 = vmatmul.mubr.f32.gmra.mrb[0].mxu0 %v630
  %v3877 = vpop.f32.mrb[0].mxu0
  %v3878 = vadd.f32 %v3554, %v3877
  %v3879 = vpop.f32.mrb[0].mxu0
  %3880 = vmatprep.mubr.f32.mxu0 0.0
  %3881 = vmatmul.mubr.f32.gmra.mrb[0].mxu0 %v633
  %v3882 = vpop.f32.mrb[0].mxu0
  %v3883 = vadd.f32 %v3554, %v3882
  %v3884 = vpop.f32.mrb[0].mxu0
  %3885 = vmatprep.mubr.f32.mxu0 0.0
  %3886 = vmatmul.mubr.f32.gmra.mrb[0].mxu0 %v636
  %v3887 = vpop.f32.mrb[0].mxu0
  %v3888 = vadd.f32 %v3554, %v3887
  %v3889 = vpop.f32.mrb[0].mxu0
  %3890 = vmatprep.mubr.f32.mxu0 0.0
  %3891 = vmatmul.mubr.f32.gmra.mrb[0].mxu0 %v639
  %v3892 = vpop.f32.mrb[0].mxu0
  %v3893 = vadd.f32 %v3554, %v3892
  %v3894 = vpop.f32.mrb[0].mxu0
  %3895 = vmatprep.mubr.f32.mxu0 0.0
  %3896 = vmatmul.mubr.f32.gmra.mrb[0].mxu0 %v642
  %v3897 = vpop.f32.mrb[0].mxu0
  %v3898 = vadd.f32 %v3554, %v3897
  %v3899 = vpop.f32.mrb[0].mxu0
  %3900 = vdwg.mxu0
  %s3901 = scalar_lea.vmem %s8, 32
  %v3902 = vld [vmem:[%s3901] sm:$0xff]
  %v3903 = vld [vmem:[%s3901 + $0x8] sm:$0xff]
  %v3904 = vld [vmem:[%s3901 + $0x10] sm:$0xff]
  %v3905 = vld [vmem:[%s3901 + $0x18] sm:$0xff]
  %s3906 = scalar_lea.vmem %s11, 1
  %v3907 = vld [vmem:[%s3906] sm:$0x1]
  %v3909 = vlaneseq
  %v3910 = vshrl.u32 %v3909, 7
  %v3911 = vsub.s32 0, %v3910
  %v3912 = vrot.slane %v3907, %v3911
  %3914 = vmatprep.subr.mxu0 0.0
  %3915 = vmatpush1.msra.mxu0 %v3902
  %3916 = vmatprep.subr.mxu0 0.0
  %3917 = vmatpush1.msra.mxu0 %v3903
  %3918 = vmatprep.subr.mxu0 0.0
  %3919 = vmatpush1.msra.mxu0 %v3904
  %3920 = vmatprep.subr.mxu0 0.0
  %3921 = vmatpush1.msra.mxu0 %v3905
  %3922 = vmatprep.subr.mxu0 0.0
  %3923 = vmatpush1.msra.mxu0 0.0
  %3924 = vmatprep.subr.mxu0 0.0
  %3925 = vmatpush1.msra.mxu0 0.0
  %3926 = vmatprep.subr.mxu0 0.0
  %3927 = vmatpush1.msra.mxu0 0.0
  %3928 = vmatprep.subr.mxu0 0.0
  %3929 = vmatpush1.msra.mxu0 0.0
  %3930 = vmatprep.subr.mxu0 0.0
  %3931 = vmatpush1.msra.mxu0 0.0
  %3932 = vmatprep.subr.mxu0 0.0
  %3933 = vmatpush1.msra.mxu0 0.0
  %3934 = vmatprep.subr.mxu0 0.0
  %3935 = vmatpush1.msra.mxu0 0.0
  %3936 = vmatprep.subr.mxu0 0.0
  %3937 = vmatpush1.msra.mxu0 0.0
  %3938 = vmatprep.subr.mxu0 0.0
  %3939 = vmatpush1.msra.mxu0 0.0
  %3940 = vmatprep.subr.mxu0 0.0
  %3941 = vmatpush1.msra.mxu0 0.0
  %3942 = vmatprep.subr.mxu0 0.0
  %3943 = vmatpush1.msra.mxu0 0.0
  %3944 = vmatprep.subr.mxu0 0.0
  %3945 = vmatpush1.msra.mxu0 0.0
  %3946 = vmatprep.subr.mxu0 0.0
  %3947 = vmatpush1.msra.mxu0 0.0
  %3948 = vmatprep.subr.mxu0 0.0
  %3949 = vmatpush1.msra.mxu0 0.0
  %3950 = vmatprep.subr.mxu0 0.0
  %3951 = vmatpush1.msra.mxu0 0.0
  %3952 = vmatprep.subr.mxu0 0.0
  %3953 = vmatpush1.msra.mxu0 0.0
  %3954 = vmatprep.subr.mxu0 0.0
  %3955 = vmatpush1.msra.mxu0 0.0
  %3956 = vmatprep.subr.mxu0 0.0
  %3957 = vmatpush1.msra.mxu0 0.0
  %3958 = vmatprep.subr.mxu0 0.0
  %3959 = vmatpush1.msra.mxu0 0.0
  %3960 = vmatprep.subr.mxu0 0.0
  %3961 = vmatpush1.msra.mxu0 0.0
  %3962 = vmatprep.subr.mxu0 0.0
  %3963 = vmatpush1.msra.mxu0 0.0
  %3964 = vmatprep.subr.mxu0 0.0
  %3965 = vmatpush1.msra.mxu0 0.0
  %3966 = vmatprep.subr.mxu0 0.0
  %3967 = vmatpush1.msra.mxu0 0.0
  %3968 = vmatprep.subr.mxu0 0.0
  %3969 = vmatpush1.msra.mxu0 0.0
  %3970 = vmatprep.subr.mxu0 0.0
  %3971 = vmatpush1.msra.mxu0 0.0
  %3972 = vmatprep.subr.mxu0 0.0
  %3973 = vmatpush1.msra.mxu0 0.0
  %3974 = vmatprep.subr.mxu0 0.0
  %3975 = vmatpush1.msra.mxu0 0.0
  %3976 = vmatprep.subr.mxu0 0.0
  %3977 = vmatpush1.msra.mxu0 0.0
  %3978 = vmatprep.mubr.f32.mxu0 0.0
  %3979 = vmatmul.mubr.f32.gmra.mrb[0].mxu0 %v1001
  %v3980 = vpop.f32.mrb[0].mxu0
  %v3981 = vadd.f32 %v3912, %v3980
  %v3982 = vpop.f32.mrb[0].mxu0
  %3983 = vmatprep.mubr.f32.mxu0 0.0
  %3984 = vmatmul.mubr.f32.gmra.mrb[0].mxu0 %v1004
  %v3985 = vpop.f32.mrb[0].mxu0
  %v3986 = vadd.f32 %v3912, %v3985
  %v3987 = vpop.f32.mrb[0].mxu0
  %3988 = vmatprep.mubr.f32.mxu0 0.0
  %3989 = vmatmul.mubr.f32.gmra.mrb[0].mxu0 %v1007
  %v3990 = vpop.f32.mrb[0].mxu0
  %v3991 = vadd.f32 %v3912, %v3990
  %v3992 = vpop.f32.mrb[0].mxu0
  %3993 = vmatprep.mubr.f32.mxu0 0.0
  %3994 = vmatmul.mubr.f32.gmra.mrb[0].mxu0 %v1010
  %v3995 = vpop.f32.mrb[0].mxu0
  %v3996 = vadd.f32 %v3912, %v3995
  %v3997 = vpop.f32.mrb[0].mxu0
  %3998 = vmatprep.mubr.f32.mxu0 0.0
  %3999 = vmatmul.mubr.f32.gmra.mrb[0].mxu0 %v1013
  %v4000 = vpop.f32.mrb[0].mxu0
  %v4001 = vadd.f32 %v3912, %v4000
  %v4002 = vpop.f32.mrb[0].mxu0
  %4003 = vmatprep.mubr.f32.mxu0 0.0
  %4004 = vmatmul.mubr.f32.gmra.mrb[0].mxu0 %v1016
  %v4005 = vpop.f32.mrb[0].mxu0
  %v4006 = vadd.f32 %v3912, %v4005
  %v4007 = vpop.f32.mrb[0].mxu0
  %4008 = vmatprep.mubr.f32.mxu0 0.0
  %4009 = vmatmul.mubr.f32.gmra.mrb[0].mxu0 %v1019
  %v4010 = vpop.f32.mrb[0].mxu0
  %v4011 = vadd.f32 %v3912, %v4010
  %v4012 = vpop.f32.mrb[0].mxu0
  %4013 = vmatprep.mubr.f32.mxu0 0.0
  %4014 = vmatmul.mubr.f32.gmra.mrb[0].mxu0 %v1022
  %v4015 = vpop.f32.mrb[0].mxu0
  %v4016 = vadd.f32 %v3912, %v4015
  %v4017 = vpop.f32.mrb[0].mxu0
  %4018 = vmatprep.mubr.f32.mxu0 0.0
  %4019 = vmatmul.mubr.f32.gmra.mrb[0].mxu0 %v1025
  %v4020 = vpop.f32.mrb[0].mxu0
  %v4021 = vadd.f32 %v3912, %v4020
  %v4022 = vpop.f32.mrb[0].mxu0
  %4023 = vmatprep.mubr.f32.mxu0 0.0
  %4024 = vmatmul.mubr.f32.gmra.mrb[0].mxu0 %v1028
  %v4025 = vpop.f32.mrb[0].mxu0
  %v4026 = vadd.f32 %v3912, %v4025
  %v4027 = vpop.f32.mrb[0].mxu0
  %4028 = vmatprep.mubr.f32.mxu0 0.0
  %4029 = vmatmul.mubr.f32.gmra.mrb[0].mxu0 %v1031
  %v4030 = vpop.f32.mrb[0].mxu0
  %v4031 = vadd.f32 %v3912, %v4030
  %v4032 = vpop.f32.mrb[0].mxu0
  %4033 = vmatprep.mubr.f32.mxu0 0.0
  %4034 = vmatmul.mubr.f32.gmra.mrb[0].mxu0 %v1034
  %v4035 = vpop.f32.mrb[0].mxu0
  %v4036 = vadd.f32 %v3912, %v4035
  %v4037 = vpop.f32.mrb[0].mxu0
  %4038 = vmatprep.mubr.f32.mxu0 0.0
  %4039 = vmatmul.mubr.f32.gmra.mrb[0].mxu0 %v1037
  %v4040 = vpop.f32.mrb[0].mxu0
  %v4041 = vadd.f32 %v3912, %v4040
  %v4042 = vpop.f32.mrb[0].mxu0
  %4043 = vmatprep.mubr.f32.mxu0 0.0
  %4044 = vmatmul.mubr.f32.gmra.mrb[0].mxu0 %v1040
  %v4045 = vpop.f32.mrb[0].mxu0
  %v4046 = vadd.f32 %v3912, %v4045
  %v4047 = vpop.f32.mrb[0].mxu0
  %4048 = vmatprep.mubr.f32.mxu0 0.0
  %4049 = vmatmul.mubr.f32.gmra.mrb[0].mxu0 %v1043
  %v4050 = vpop.f32.mrb[0].mxu0
  %v4051 = vadd.f32 %v3912, %v4050
  %v4052 = vpop.f32.mrb[0].mxu0
  %4053 = vmatprep.mubr.f32.mxu0 0.0
  %4054 = vmatmul.mubr.f32.gmra.mrb[0].mxu0 %v1046
  %v4055 = vpop.f32.mrb[0].mxu0
  %v4056 = vadd.f32 %v3912, %v4055
  %v4057 = vpop.f32.mrb[0].mxu0
  %4058 = vmatprep.mubr.f32.mxu0 0.0
  %4059 = vmatmul.mubr.f32.gmra.mrb[0].mxu0 %v1049
  %v4060 = vpop.f32.mrb[0].mxu0
  %v4061 = vadd.f32 %v3912, %v4060
  %v4062 = vpop.f32.mrb[0].mxu0
  %4063 = vmatprep.mubr.f32.mxu0 0.0
  %4064 = vmatmul.mubr.f32.gmra.mrb[0].mxu0 %v1052
  %v4065 = vpop.f32.mrb[0].mxu0
  %v4066 = vadd.f32 %v3912, %v4065
  %v4067 = vpop.f32.mrb[0].mxu0
  %4068 = vmatprep.mubr.f32.mxu0 0.0
  %4069 = vmatmul.mubr.f32.gmra.mrb[0].mxu0 %v1055
  %v4070 = vpop.f32.mrb[0].mxu0
  %v4071 = vadd.f32 %v3912, %v4070
  %v4072 = vpop.f32.mrb[0].mxu0
  %4073 = vmatprep.mubr.f32.mxu0 0.0
  %4074 = vmatmul.mubr.f32.gmra.mrb[0].mxu0 %v1058
  %v4075 = vpop.f32.mrb[0].mxu0
  %v4076 = vadd.f32 %v3912, %v4075
  %v4077 = vpop.f32.mrb[0].mxu0
  %4078 = vmatprep.mubr.f32.mxu0 0.0
  %4079 = vmatmul.mubr.f32.gmra.mrb[0].mxu0 %v1061
  %v4080 = vpop.f32.mrb[0].mxu0
  %v4081 = vadd.f32 %v3912, %v4080
  %v4082 = vpop.f32.mrb[0].mxu0
  %4083 = vmatprep.mubr.f32.mxu0 0.0
  %4084 = vmatmul.mubr.f32.gmra.mrb[0].mxu0 %v1064
  %v4085 = vpop.f32.mrb[0].mxu0
  %v4086 = vadd.f32 %v3912, %v4085
  %v4087 = vpop.f32.mrb[0].mxu0
  %4088 = vmatprep.mubr.f32.mxu0 0.0
  %4089 = vmatmul.mubr.f32.gmra.mrb[0].mxu0 %v1067
  %v4090 = vpop.f32.mrb[0].mxu0
  %v4091 = vadd.f32 %v3912, %v4090
  %v4092 = vpop.f32.mrb[0].mxu0
  %4093 = vmatprep.mubr.f32.mxu0 0.0
  %4094 = vmatmul.mubr.f32.gmra.mrb[0].mxu0 %v1070
  %v4095 = vpop.f32.mrb[0].mxu0
  %v4096 = vadd.f32 %v3912, %v4095
  %v4097 = vpop.f32.mrb[0].mxu0
  %4098 = vmatprep.mubr.f32.mxu0 0.0
  %4099 = vmatmul.mubr.f32.gmra.mrb[0].mxu0 %v1073
  %v4100 = vpop.f32.mrb[0].mxu0
  %v4101 = vadd.f32 %v3912, %v4100
  %v4102 = vpop.f32.mrb[0].mxu0
  %4103 = vmatprep.mubr.f32.mxu0 0.0
  %4104 = vmatmul.mubr.f32.gmra.mrb[0].mxu0 %v1076
  %v4105 = vpop.f32.mrb[0].mxu0
  %v4106 = vadd.f32 %v3912, %v4105
  %v4107 = vpop.f32.mrb[0].mxu0
  %4108 = vmatprep.mubr.f32.mxu0 0.0
  %4109 = vmatmul.mubr.f32.gmra.mrb[0].mxu0 %v1079
  %v4110 = vpop.f32.mrb[0].mxu0
  %v4111 = vadd.f32 %v3912, %v4110
  %v4112 = vpop.f32.mrb[0].mxu0
  %4113 = vmatprep.mubr.f32.mxu0 0.0
  %4114 = vmatmul.mubr.f32.gmra.mrb[0].mxu0 %v1082
  %v4115 = vpop.f32.mrb[0].mxu0
  %v4116 = vadd.f32 %v3912, %v4115
  %v4117 = vpop.f32.mrb[0].mxu0
  %4118 = vmatprep.mubr.f32.mxu0 0.0
  %4119 = vmatmul.mubr.f32.gmra.mrb[0].mxu0 %v1085
  %v4120 = vpop.f32.mrb[0].mxu0
  %v4121 = vadd.f32 %v3912, %v4120
  %v4122 = vpop.f32.mrb[0].mxu0
  %4123 = vmatprep.mubr.f32.mxu0 0.0
  %4124 = vmatmul.mubr.f32.gmra.mrb[0].mxu0 %v1088
  %v4125 = vpop.f32.mrb[0].mxu0
  %v4126 = vadd.f32 %v3912, %v4125
  %v4127 = vpop.f32.mrb[0].mxu0
  %4128 = vmatprep.mubr.f32.mxu0 0.0
  %4129 = vmatmul.mubr.f32.gmra.mrb[0].mxu0 %v1091
  %v4130 = vpop.f32.mrb[0].mxu0
  %v4131 = vadd.f32 %v3912, %v4130
  %v4132 = vpop.f32.mrb[0].mxu0
  %4133 = vmatprep.mubr.f32.mxu0 0.0
  %4134 = vmatmul.mubr.f32.gmra.mrb[0].mxu0 %v1094
  %v4135 = vpop.f32.mrb[0].mxu0
  %v4136 = vadd.f32 %v3912, %v4135
  %v4137 = vpop.f32.mrb[0].mxu0
  %4138 = vmatprep.mubr.f32.mxu0 0.0
  %4139 = vmatmul.mubr.f32.gmra.mrb[0].mxu0 %v1097
  %v4140 = vpop.f32.mrb[0].mxu0
  %v4141 = vadd.f32 %v3912, %v4140
  %v4142 = vpop.f32.mrb[0].mxu0
  %4143 = vmatprep.mubr.f32.mxu0 0.0
  %4144 = vmatmul.mubr.f32.gmra.mrb[0].mxu0 %v1100
  %v4145 = vpop.f32.mrb[0].mxu0
  %v4146 = vadd.f32 %v3912, %v4145
  %v4147 = vpop.f32.mrb[0].mxu0
  %4148 = vmatprep.mubr.f32.mxu0 0.0
  %4149 = vmatmul.mubr.f32.gmra.mrb[0].mxu0 %v1103
  %v4150 = vpop.f32.mrb[0].mxu0
  %v4151 = vadd.f32 %v3912, %v4150
  %v4152 = vpop.f32.mrb[0].mxu0
  %4153 = vmatprep.mubr.f32.mxu0 0.0
  %4154 = vmatmul.mubr.f32.gmra.mrb[0].mxu0 %v1106
  %v4155 = vpop.f32.mrb[0].mxu0
  %v4156 = vadd.f32 %v3912, %v4155
  %v4157 = vpop.f32.mrb[0].mxu0
  %4158 = vmatprep.mubr.f32.mxu0 0.0
  %4159 = vmatmul.mubr.f32.gmra.mrb[0].mxu0 %v1109
  %v4160 = vpop.f32.mrb[0].mxu0
  %v4161 = vadd.f32 %v3912, %v4160
  %v4162 = vpop.f32.mrb[0].mxu0
  %4163 = vmatprep.mubr.f32.mxu0 0.0
  %4164 = vmatmul.mubr.f32.gmra.mrb[0].mxu0 %v1112
  %v4165 = vpop.f32.mrb[0].mxu0
  %v4166 = vadd.f32 %v3912, %v4165
  %v4167 = vpop.f32.mrb[0].mxu0
  %4168 = vmatprep.mubr.f32.mxu0 0.0
  %4169 = vmatmul.mubr.f32.gmra.mrb[0].mxu0 %v1115
  %v4170 = vpop.f32.mrb[0].mxu0
  %v4171 = vadd.f32 %v3912, %v4170
  %v4172 = vpop.f32.mrb[0].mxu0
  %4173 = vmatprep.mubr.f32.mxu0 0.0
  %4174 = vmatmul.mubr.f32.gmra.mrb[0].mxu0 %v1118
  %v4175 = vpop.f32.mrb[0].mxu0
  %v4176 = vadd.f32 %v3912, %v4175
  %v4177 = vpop.f32.mrb[0].mxu0
  %4178 = vmatprep.mubr.f32.mxu0 0.0
  %4179 = vmatmul.mubr.f32.gmra.mrb[0].mxu0 %v1121
  %v4180 = vpop.f32.mrb[0].mxu0
  %v4181 = vadd.f32 %v3912, %v4180
  %v4182 = vpop.f32.mrb[0].mxu0
  %4183 = vmatprep.mubr.f32.mxu0 0.0
  %4184 = vmatmul.mubr.f32.gmra.mrb[0].mxu0 %v1124
  %v4185 = vpop.f32.mrb[0].mxu0
  %v4186 = vadd.f32 %v3912, %v4185
  %v4187 = vpop.f32.mrb[0].mxu0
  %4188 = vmatprep.mubr.f32.mxu0 0.0
  %4189 = vmatmul.mubr.f32.gmra.mrb[0].mxu0 %v1127
  %v4190 = vpop.f32.mrb[0].mxu0
  %v4191 = vadd.f32 %v3912, %v4190
  %v4192 = vpop.f32.mrb[0].mxu0
  %4193 = vmatprep.mubr.f32.mxu0 0.0
  %4194 = vmatmul.mubr.f32.gmra.mrb[0].mxu0 %v1130
  %v4195 = vpop.f32.mrb[0].mxu0
  %v4196 = vadd.f32 %v3912, %v4195
  %v4197 = vpop.f32.mrb[0].mxu0
  %4198 = vmatprep.mubr.f32.mxu0 0.0
  %4199 = vmatmul.mubr.f32.gmra.mrb[0].mxu0 %v1133
  %v4200 = vpop.f32.mrb[0].mxu0
  %v4201 = vadd.f32 %v3912, %v4200
  %v4202 = vpop.f32.mrb[0].mxu0
  %4203 = vmatprep.mubr.f32.mxu0 0.0
  %4204 = vmatmul.mubr.f32.gmra.mrb[0].mxu0 %v1136
  %v4205 = vpop.f32.mrb[0].mxu0
  %v4206 = vadd.f32 %v3912, %v4205
  %v4207 = vpop.f32.mrb[0].mxu0
  %4208 = vmatprep.mubr.f32.mxu0 0.0
  %4209 = vmatmul.mubr.f32.gmra.mrb[0].mxu0 %v1139
  %v4210 = vpop.f32.mrb[0].mxu0
  %v4211 = vadd.f32 %v3912, %v4210
  %v4212 = vpop.f32.mrb[0].mxu0
  %4213 = vmatprep.mubr.f32.mxu0 0.0
  %4214 = vmatmul.mubr.f32.gmra.mrb[0].mxu0 %v1142
  %v4215 = vpop.f32.mrb[0].mxu0
  %v4216 = vadd.f32 %v3912, %v4215
  %v4217 = vpop.f32.mrb[0].mxu0
  %4218 = vmatprep.mubr.f32.mxu0 0.0
  %4219 = vmatmul.mubr.f32.gmra.mrb[0].mxu0 %v1145
  %v4220 = vpop.f32.mrb[0].mxu0
  %v4221 = vadd.f32 %v3912, %v4220
  %v4222 = vpop.f32.mrb[0].mxu0
  %4223 = vmatprep.mubr.f32.mxu0 0.0
  %4224 = vmatmul.mubr.f32.gmra.mrb[0].mxu0 %v1148
  %v4225 = vpop.f32.mrb[0].mxu0
  %v4226 = vadd.f32 %v3912, %v4225
  %v4227 = vpop.f32.mrb[0].mxu0
  %4228 = vmatprep.mubr.f32.mxu0 0.0
  %4229 = vmatmul.mubr.f32.gmra.mrb[0].mxu0 %v1151
  %v4230 = vpop.f32.mrb[0].mxu0
  %v4231 = vadd.f32 %v3912, %v4230
  %v4232 = vpop.f32.mrb[0].mxu0
  %4233 = vmatprep.mubr.f32.mxu0 0.0
  %4234 = vmatmul.mubr.f32.gmra.mrb[0].mxu0 %v1154
  %v4235 = vpop.f32.mrb[0].mxu0
  %v4236 = vadd.f32 %v3912, %v4235
  %v4237 = vpop.f32.mrb[0].mxu0
  %4238 = vmatprep.mubr.f32.mxu0 0.0
  %4239 = vmatmul.mubr.f32.gmra.mrb[0].mxu0 %v1157
  %v4240 = vpop.f32.mrb[0].mxu0
  %v4241 = vadd.f32 %v3912, %v4240
  %v4242 = vpop.f32.mrb[0].mxu0
  %4243 = vmatprep.mubr.f32.mxu0 0.0
  %4244 = vmatmul.mubr.f32.gmra.mrb[0].mxu0 %v1160
  %v4245 = vpop.f32.mrb[0].mxu0
  %v4246 = vadd.f32 %v3912, %v4245
  %v4247 = vpop.f32.mrb[0].mxu0
  %4248 = vmatprep.mubr.f32.mxu0 0.0
  %4249 = vmatmul.mubr.f32.gmra.mrb[0].mxu0 %v1163
  %v4250 = vpop.f32.mrb[0].mxu0
  %v4251 = vadd.f32 %v3912, %v4250
  %v4252 = vpop.f32.mrb[0].mxu0
  %4253 = vmatprep.mubr.f32.mxu0 0.0
  %4254 = vmatmul.mubr.f32.gmra.mrb[0].mxu0 %v1166
  %v4255 = vpop.f32.mrb[0].mxu0
  %v4256 = vadd.f32 %v3912, %v4255
  %v4257 = vpop.f32.mrb[0].mxu0
  %4258 = vdwg.mxu0
  %v4259 = vmul.f32 %v3623, %v3505
  %v4260 = vmul.f32 %v3628, %v3510
  %v4261 = vmul.f32 %v3633, %v3515
  %v4262 = vmul.f32 %v3638, %v3520
  %v4263 = vmul.f32 %v3643, %v3525
  %v4264 = vmul.f32 %v3648, %v3530
  %v4265 = vmul.f32 %v3653, %v3535
  %v4266 = vmul.f32 %v3658, %v3540
  %v4267 = vmul.f32 %v3663, %v3505
  %v4268 = vmul.f32 %v3668, %v3510
  %v4269 = vmul.f32 %v3673, %v3515
  %v4270 = vmul.f32 %v3678, %v3520
  %v4271 = vmul.f32 %v3683, %v3525
  %v4272 = vmul.f32 %v3688, %v3530
  %v4273 = vmul.f32 %v3693, %v3535
  %v4274 = vmul.f32 %v3698, %v3540
  %v4275 = vmul.f32 %v3703, %v3505
  %v4276 = vmul.f32 %v3708, %v3510
  %v4277 = vmul.f32 %v3713, %v3515
  %v4278 = vmul.f32 %v3718, %v3520
  %v4279 = vmul.f32 %v3723, %v3525
  %v4280 = vmul.f32 %v3728, %v3530
  %v4281 = vmul.f32 %v3733, %v3535
  %v4282 = vmul.f32 %v3738, %v3540
  %v4283 = vmul.f32 %v3743, %v3505
  %v4284 = vmul.f32 %v3748, %v3510
  %v4285 = vmul.f32 %v3753, %v3515
  %v4286 = vmul.f32 %v3758, %v3520
  %v4287 = vmul.f32 %v3763, %v3525
  %v4288 = vmul.f32 %v3768, %v3530
  %v4289 = vmul.f32 %v3773, %v3535
  %v4290 = vmul.f32 %v3778, %v3540
  %v4291 = vmul.f32 %v3783, %v3505
  %v4292 = vmul.f32 %v3788, %v3510
  %v4293 = vmul.f32 %v3793, %v3515
  %v4294 = vmul.f32 %v3798, %v3520
  %v4295 = vmul.f32 %v3803, %v3525
  %v4296 = vmul.f32 %v3808, %v3530
  %v4297 = vmul.f32 %v3813, %v3535
  %v4298 = vmul.f32 %v3818, %v3540
  %v4299 = vmul.f32 %v3823, %v3505
  %v4300 = vmul.f32 %v3828, %v3510
  %v4301 = vmul.f32 %v3833, %v3515
  %v4302 = vmul.f32 %v3838, %v3520
  %v4303 = vmul.f32 %v3843, %v3525
  %v4304 = vmul.f32 %v3848, %v3530
  %v4305 = vmul.f32 %v3853, %v3535
  %v4306 = vmul.f32 %v3858, %v3540
  %v4307 = vmul.f32 %v3863, %v3505
  %v4308 = vmul.f32 %v3868, %v3510
  %v4309 = vmul.f32 %v3873, %v3515
  %v4310 = vmul.f32 %v3878, %v3520
  %v4311 = vmul.f32 %v3883, %v3525
  %v4312 = vmul.f32 %v3888, %v3530
  %v4313 = vmul.f32 %v3893, %v3535
  %v4314 = vmul.f32 %v3898, %v3540
  %v4316 = vsel %vm191, %v4259, 0
  %v4319 = vsel %vm191, %v4260, 0
  %v4322 = vsel %vm191, %v4261, 0
  %v4325 = vsel %vm191, %v4262, 0
  %v4328 = vsel %vm191, %v4263, 0
  %v4331 = vsel %vm191, %v4264, 0
  %v4334 = vsel %vm191, %v4265, 0
  %v4337 = vsel %vm191, %v4266, 0
  %v4340 = vsel %vm191, %v4267, 0
  %v4343 = vsel %vm191, %v4268, 0
  %v4346 = vsel %vm191, %v4269, 0
  %v4349 = vsel %vm191, %v4270, 0
  %v4352 = vsel %vm191, %v4271, 0
  %v4355 = vsel %vm191, %v4272, 0
  %v4358 = vsel %vm191, %v4273, 0
  %v4361 = vsel %vm191, %v4274, 0
  %v4364 = vsel %vm191, %v4275, 0
  %v4367 = vsel %vm191, %v4276, 0
  %v4370 = vsel %vm191, %v4277, 0
  %v4373 = vsel %vm191, %v4278, 0
  %v4376 = vsel %vm191, %v4279, 0
  %v4379 = vsel %vm191, %v4280, 0
  %v4382 = vsel %vm191, %v4281, 0
  %v4385 = vsel %vm191, %v4282, 0
  %v4388 = vsel %vm191, %v4283, 0
  %v4391 = vsel %vm191, %v4284, 0
  %v4394 = vsel %vm191, %v4285, 0
  %v4397 = vsel %vm191, %v4286, 0
  %v4400 = vsel %vm191, %v4287, 0
  %v4403 = vsel %vm191, %v4288, 0
  %v4406 = vsel %vm191, %v4289, 0
  %v4409 = vsel %vm191, %v4290, 0
  %v4412 = vsel %vm191, %v4291, 0
  %v4415 = vsel %vm191, %v4292, 0
  %v4418 = vsel %vm191, %v4293, 0
  %v4421 = vsel %vm191, %v4294, 0
  %v4424 = vsel %vm191, %v4295, 0
  %v4427 = vsel %vm191, %v4296, 0
  %v4430 = vsel %vm191, %v4297, 0
  %v4433 = vsel %vm191, %v4298, 0
  %v4436 = vsel %vm191, %v4299, 0
  %v4439 = vsel %vm191, %v4300, 0
  %v4442 = vsel %vm191, %v4301, 0
  %v4445 = vsel %vm191, %v4302, 0
  %v4448 = vsel %vm191, %v4303, 0
  %v4451 = vsel %vm191, %v4304, 0
  %v4454 = vsel %vm191, %v4305, 0
  %v4457 = vsel %vm191, %v4306, 0
  %v4460 = vsel %vm191, %v4307, 0
  %v4463 = vsel %vm191, %v4308, 0
  %v4466 = vsel %vm191, %v4309, 0
  %v4469 = vsel %vm191, %v4310, 0
  %v4472 = vsel %vm191, %v4311, 0
  %v4475 = vsel %vm191, %v4312, 0
  %v4478 = vsel %vm191, %v4313, 0
  %v4481 = vsel %vm191, %v4314, 0
  %4483 = vmatprep.subr.mxu0 0.0
  %4484 = vmatpush1.msra.mxu0 %v185
  %4485 = vmatprep.subr.mxu0 0.0
  %4486 = vmatpush1.msra.mxu0 %v186
  %4487 = vmatprep.subr.mxu0 0.0
  %4488 = vmatpush1.msra.mxu0 %v187
  %4489 = vmatprep.subr.mxu0 0.0
  %4490 = vmatpush1.msra.mxu0 %v188
  %4491 = vmatprep.subr.mxu0 0.0
  %4492 = vmatpush1.msra.mxu0 0.0
  %4493 = vmatprep.subr.mxu0 0.0
  %4494 = vmatpush1.msra.mxu0 0.0
  %4495 = vmatprep.subr.mxu0 0.0
  %4496 = vmatpush1.msra.mxu0 0.0
  %4497 = vmatprep.subr.mxu0 0.0
  %4498 = vmatpush1.msra.mxu0 0.0
  %4499 = vmatprep.subr.mxu0 0.0
  %4500 = vmatpush1.msra.mxu0 0.0
  %4501 = vmatprep.subr.mxu0 0.0
  %4502 = vmatpush1.msra.mxu0 0.0
  %4503 = vmatprep.subr.mxu0 0.0
  %4504 = vmatpush1.msra.mxu0 0.0
  %4505 = vmatprep.subr.mxu0 0.0
  %4506 = vmatpush1.msra.mxu0 0.0
  %4507 = vmatprep.subr.mxu0 0.0
  %4508 = vmatpush1.msra.mxu0 0.0
  %4509 = vmatprep.subr.mxu0 0.0
  %4510 = vmatpush1.msra.mxu0 0.0
  %4511 = vmatprep.subr.mxu0 0.0
  %4512 = vmatpush1.msra.mxu0 0.0
  %4513 = vmatprep.subr.mxu0 0.0
  %4514 = vmatpush1.msra.mxu0 0.0
  %4515 = vmatprep.subr.mxu0 0.0
  %4516 = vmatpush1.msra.mxu0 0.0
  %4517 = vmatprep.subr.mxu0 0.0
  %4518 = vmatpush1.msra.mxu0 0.0
  %4519 = vmatprep.subr.mxu0 0.0
  %4520 = vmatpush1.msra.mxu0 0.0
  %4521 = vmatprep.subr.mxu0 0.0
  %4522 = vmatpush1.msra.mxu0 0.0
  %4523 = vmatprep.subr.mxu0 0.0
  %4524 = vmatpush1.msra.mxu0 0.0
  %4525 = vmatprep.subr.mxu0 0.0
  %4526 = vmatpush1.msra.mxu0 0.0
  %4527 = vmatprep.subr.mxu0 0.0
  %4528 = vmatpush1.msra.mxu0 0.0
  %4529 = vmatprep.subr.mxu0 0.0
  %4530 = vmatpush1.msra.mxu0 0.0
  %4531 = vmatprep.subr.mxu0 0.0
  %4532 = vmatpush1.msra.mxu0 0.0
  %4533 = vmatprep.subr.mxu0 0.0
  %4534 = vmatpush1.msra.mxu0 0.0
  %4535 = vmatprep.subr.mxu0 0.0
  %4536 = vmatpush1.msra.mxu0 0.0
  %4537 = vmatprep.subr.mxu0 0.0
  %4538 = vmatpush1.msra.mxu0 0.0
  %4539 = vmatprep.subr.mxu0 0.0
  %4540 = vmatpush1.msra.mxu0 0.0
  %4541 = vmatprep.subr.mxu0 0.0
  %4542 = vmatpush1.msra.mxu0 0.0
  %4543 = vmatprep.subr.mxu0 0.0
  %4544 = vmatpush1.msra.mxu0 0.0
  %4545 = vmatprep.subr.mxu0 0.0
  %4546 = vmatpush1.msra.mxu0 0.0
  %4547 = vmatprep.mubr.f32.mxu0 0.0
  %4548 = vmatmul.mubr.f32.gmra.mrb[0].mxu0 %v4316
  %v4549 = vpop.f32.mrb[0].mxu0
  %v4550 = vadd.f32 0.0, %v4549
  %v4551 = vpop.f32.mrb[0].mxu0
  %4552 = vmatprep.mubr.f32.mxu0 0.0
  %4553 = vmatmul.mubr.f32.gmra.mrb[0].mxu0 %v4319
  %v4554 = vpop.f32.mrb[0].mxu0
  %v4555 = vadd.f32 0.0, %v4554
  %v4556 = vpop.f32.mrb[0].mxu0
  %4557 = vmatprep.mubr.f32.mxu0 0.0
  %4558 = vmatmul.mubr.f32.gmra.mrb[0].mxu0 %v4322
  %v4559 = vpop.f32.mrb[0].mxu0
  %v4560 = vadd.f32 0.0, %v4559
  %v4561 = vpop.f32.mrb[0].mxu0
  %4562 = vmatprep.mubr.f32.mxu0 0.0
  %4563 = vmatmul.mubr.f32.gmra.mrb[0].mxu0 %v4325
  %v4564 = vpop.f32.mrb[0].mxu0
  %v4565 = vadd.f32 0.0, %v4564
  %v4566 = vpop.f32.mrb[0].mxu0
  %4567 = vmatprep.mubr.f32.mxu0 0.0
  %4568 = vmatmul.mubr.f32.gmra.mrb[0].mxu0 %v4328
  %v4569 = vpop.f32.mrb[0].mxu0
  %v4570 = vadd.f32 0.0, %v4569
  %v4571 = vpop.f32.mrb[0].mxu0
  %4572 = vmatprep.mubr.f32.mxu0 0.0
  %4573 = vmatmul.mubr.f32.gmra.mrb[0].mxu0 %v4331
  %v4574 = vpop.f32.mrb[0].mxu0
  %v4575 = vadd.f32 0.0, %v4574
  %v4576 = vpop.f32.mrb[0].mxu0
  %4577 = vmatprep.mubr.f32.mxu0 0.0
  %4578 = vmatmul.mubr.f32.gmra.mrb[0].mxu0 %v4334
  %v4579 = vpop.f32.mrb[0].mxu0
  %v4580 = vadd.f32 0.0, %v4579
  %v4581 = vpop.f32.mrb[0].mxu0
  %4582 = vmatprep.mubr.f32.mxu0 0.0
  %4583 = vmatmul.mubr.f32.gmra.mrb[0].mxu0 %v4337
  %v4584 = vpop.f32.mrb[0].mxu0
  %v4585 = vadd.f32 0.0, %v4584
  %v4586 = vpop.f32.mrb[0].mxu0
  %4587 = vmatprep.mubr.f32.mxu0 0.0
  %4588 = vmatmul.mubr.f32.gmra.mrb[0].mxu0 %v4340
  %v4589 = vpop.f32.mrb[0].mxu0
  %v4590 = vadd.f32 0.0, %v4589
  %v4591 = vpop.f32.mrb[0].mxu0
  %4592 = vmatprep.mubr.f32.mxu0 0.0
  %4593 = vmatmul.mubr.f32.gmra.mrb[0].mxu0 %v4343
  %v4594 = vpop.f32.mrb[0].mxu0
  %v4595 = vadd.f32 0.0, %v4594
  %v4596 = vpop.f32.mrb[0].mxu0
  %4597 = vmatprep.mubr.f32.mxu0 0.0
  %4598 = vmatmul.mubr.f32.gmra.mrb[0].mxu0 %v4346
  %v4599 = vpop.f32.mrb[0].mxu0
  %v4600 = vadd.f32 0.0, %v4599
  %v4601 = vpop.f32.mrb[0].mxu0
  %4602 = vmatprep.mubr.f32.mxu0 0.0
  %4603 = vmatmul.mubr.f32.gmra.mrb[0].mxu0 %v4349
  %v4604 = vpop.f32.mrb[0].mxu0
  %v4605 = vadd.f32 0.0, %v4604
  %v4606 = vpop.f32.mrb[0].mxu0
  %4607 = vmatprep.mubr.f32.mxu0 0.0
  %4608 = vmatmul.mubr.f32.gmra.mrb[0].mxu0 %v4352
  %v4609 = vpop.f32.mrb[0].mxu0
  %v4610 = vadd.f32 0.0, %v4609
  %v4611 = vpop.f32.mrb[0].mxu0
  %4612 = vmatprep.mubr.f32.mxu0 0.0
  %4613 = vmatmul.mubr.f32.gmra.mrb[0].mxu0 %v4355
  %v4614 = vpop.f32.mrb[0].mxu0
  %v4615 = vadd.f32 0.0, %v4614
  %v4616 = vpop.f32.mrb[0].mxu0
  %4617 = vmatprep.mubr.f32.mxu0 0.0
  %4618 = vmatmul.mubr.f32.gmra.mrb[0].mxu0 %v4358
  %v4619 = vpop.f32.mrb[0].mxu0
  %v4620 = vadd.f32 0.0, %v4619
  %v4621 = vpop.f32.mrb[0].mxu0
  %4622 = vmatprep.mubr.f32.mxu0 0.0
  %4623 = vmatmul.mubr.f32.gmra.mrb[0].mxu0 %v4361
  %v4624 = vpop.f32.mrb[0].mxu0
  %v4625 = vadd.f32 0.0, %v4624
  %v4626 = vpop.f32.mrb[0].mxu0
  %4627 = vmatprep.mubr.f32.mxu0 0.0
  %4628 = vmatmul.mubr.f32.gmra.mrb[0].mxu0 %v4364
  %v4629 = vpop.f32.mrb[0].mxu0
  %v4630 = vadd.f32 0.0, %v4629
  %v4631 = vpop.f32.mrb[0].mxu0
  %4632 = vmatprep.mubr.f32.mxu0 0.0
  %4633 = vmatmul.mubr.f32.gmra.mrb[0].mxu0 %v4367
  %v4634 = vpop.f32.mrb[0].mxu0
  %v4635 = vadd.f32 0.0, %v4634
  %v4636 = vpop.f32.mrb[0].mxu0
  %4637 = vmatprep.mubr.f32.mxu0 0.0
  %4638 = vmatmul.mubr.f32.gmra.mrb[0].mxu0 %v4370
  %v4639 = vpop.f32.mrb[0].mxu0
  %v4640 = vadd.f32 0.0, %v4639
  %v4641 = vpop.f32.mrb[0].mxu0
  %4642 = vmatprep.mubr.f32.mxu0 0.0
  %4643 = vmatmul.mubr.f32.gmra.mrb[0].mxu0 %v4373
  %v4644 = vpop.f32.mrb[0].mxu0
  %v4645 = vadd.f32 0.0, %v4644
  %v4646 = vpop.f32.mrb[0].mxu0
  %4647 = vmatprep.mubr.f32.mxu0 0.0
  %4648 = vmatmul.mubr.f32.gmra.mrb[0].mxu0 %v4376
  %v4649 = vpop.f32.mrb[0].mxu0
  %v4650 = vadd.f32 0.0, %v4649
  %v4651 = vpop.f32.mrb[0].mxu0
  %4652 = vmatprep.mubr.f32.mxu0 0.0
  %4653 = vmatmul.mubr.f32.gmra.mrb[0].mxu0 %v4379
  %v4654 = vpop.f32.mrb[0].mxu0
  %v4655 = vadd.f32 0.0, %v4654
  %v4656 = vpop.f32.mrb[0].mxu0
  %4657 = vmatprep.mubr.f32.mxu0 0.0
  %4658 = vmatmul.mubr.f32.gmra.mrb[0].mxu0 %v4382
  %v4659 = vpop.f32.mrb[0].mxu0
  %v4660 = vadd.f32 0.0, %v4659
  %v4661 = vpop.f32.mrb[0].mxu0
  %4662 = vmatprep.mubr.f32.mxu0 0.0
  %4663 = vmatmul.mubr.f32.gmra.mrb[0].mxu0 %v4385
  %v4664 = vpop.f32.mrb[0].mxu0
  %v4665 = vadd.f32 0.0, %v4664
  %v4666 = vpop.f32.mrb[0].mxu0
  %4667 = vmatprep.mubr.f32.mxu0 0.0
  %4668 = vmatmul.mubr.f32.gmra.mrb[0].mxu0 %v4388
  %v4669 = vpop.f32.mrb[0].mxu0
  %v4670 = vadd.f32 0.0, %v4669
  %v4671 = vpop.f32.mrb[0].mxu0
  %4672 = vmatprep.mubr.f32.mxu0 0.0
  %4673 = vmatmul.mubr.f32.gmra.mrb[0].mxu0 %v4391
  %v4674 = vpop.f32.mrb[0].mxu0
  %v4675 = vadd.f32 0.0, %v4674
  %v4676 = vpop.f32.mrb[0].mxu0
  %4677 = vmatprep.mubr.f32.mxu0 0.0
  %4678 = vmatmul.mubr.f32.gmra.mrb[0].mxu0 %v4394
  %v4679 = vpop.f32.mrb[0].mxu0
  %v4680 = vadd.f32 0.0, %v4679
  %v4681 = vpop.f32.mrb[0].mxu0
  %4682 = vmatprep.mubr.f32.mxu0 0.0
  %4683 = vmatmul.mubr.f32.gmra.mrb[0].mxu0 %v4397
  %v4684 = vpop.f32.mrb[0].mxu0
  %v4685 = vadd.f32 0.0, %v4684
  %v4686 = vpop.f32.mrb[0].mxu0
  %4687 = vmatprep.mubr.f32.mxu0 0.0
  %4688 = vmatmul.mubr.f32.gmra.mrb[0].mxu0 %v4400
  %v4689 = vpop.f32.mrb[0].mxu0
  %v4690 = vadd.f32 0.0, %v4689
  %v4691 = vpop.f32.mrb[0].mxu0
  %4692 = vmatprep.mubr.f32.mxu0 0.0
  %4693 = vmatmul.mubr.f32.gmra.mrb[0].mxu0 %v4403
  %v4694 = vpop.f32.mrb[0].mxu0
  %v4695 = vadd.f32 0.0, %v4694
  %v4696 = vpop.f32.mrb[0].mxu0
  %4697 = vmatprep.mubr.f32.mxu0 0.0
  %4698 = vmatmul.mubr.f32.gmra.mrb[0].mxu0 %v4406
  %v4699 = vpop.f32.mrb[0].mxu0
  %v4700 = vadd.f32 0.0, %v4699
  %v4701 = vpop.f32.mrb[0].mxu0
  %4702 = vmatprep.mubr.f32.mxu0 0.0
  %4703 = vmatmul.mubr.f32.gmra.mrb[0].mxu0 %v4409
  %v4704 = vpop.f32.mrb[0].mxu0
  %v4705 = vadd.f32 0.0, %v4704
  %v4706 = vpop.f32.mrb[0].mxu0
  %4707 = vmatprep.mubr.f32.mxu0 0.0
  %4708 = vmatmul.mubr.f32.gmra.mrb[0].mxu0 %v4412
  %v4709 = vpop.f32.mrb[0].mxu0
  %v4710 = vadd.f32 0.0, %v4709
  %v4711 = vpop.f32.mrb[0].mxu0
  %4712 = vmatprep.mubr.f32.mxu0 0.0
  %4713 = vmatmul.mubr.f32.gmra.mrb[0].mxu0 %v4415
  %v4714 = vpop.f32.mrb[0].mxu0
  %v4715 = vadd.f32 0.0, %v4714
  %v4716 = vpop.f32.mrb[0].mxu0
  %4717 = vmatprep.mubr.f32.mxu0 0.0
  %4718 = vmatmul.mubr.f32.gmra.mrb[0].mxu0 %v4418
  %v4719 = vpop.f32.mrb[0].mxu0
  %v4720 = vadd.f32 0.0, %v4719
  %v4721 = vpop.f32.mrb[0].mxu0
  %4722 = vmatprep.mubr.f32.mxu0 0.0
  %4723 = vmatmul.mubr.f32.gmra.mrb[0].mxu0 %v4421
  %v4724 = vpop.f32.mrb[0].mxu0
  %v4725 = vadd.f32 0.0, %v4724
  %v4726 = vpop.f32.mrb[0].mxu0
  %4727 = vmatprep.mubr.f32.mxu0 0.0
  %4728 = vmatmul.mubr.f32.gmra.mrb[0].mxu0 %v4424
  %v4729 = vpop.f32.mrb[0].mxu0
  %v4730 = vadd.f32 0.0, %v4729
  %v4731 = vpop.f32.mrb[0].mxu0
  %4732 = vmatprep.mubr.f32.mxu0 0.0
  %4733 = vmatmul.mubr.f32.gmra.mrb[0].mxu0 %v4427
  %v4734 = vpop.f32.mrb[0].mxu0
  %v4735 = vadd.f32 0.0, %v4734
  %v4736 = vpop.f32.mrb[0].mxu0
  %4737 = vmatprep.mubr.f32.mxu0 0.0
  %4738 = vmatmul.mubr.f32.gmra.mrb[0].mxu0 %v4430
  %v4739 = vpop.f32.mrb[0].mxu0
  %v4740 = vadd.f32 0.0, %v4739
  %v4741 = vpop.f32.mrb[0].mxu0
  %4742 = vmatprep.mubr.f32.mxu0 0.0
  %4743 = vmatmul.mubr.f32.gmra.mrb[0].mxu0 %v4433
  %v4744 = vpop.f32.mrb[0].mxu0
  %v4745 = vadd.f32 0.0, %v4744
  %v4746 = vpop.f32.mrb[0].mxu0
  %4747 = vmatprep.mubr.f32.mxu0 0.0
  %4748 = vmatmul.mubr.f32.gmra.mrb[0].mxu0 %v4436
  %v4749 = vpop.f32.mrb[0].mxu0
  %v4750 = vadd.f32 0.0, %v4749
  %v4751 = vpop.f32.mrb[0].mxu0
  %4752 = vmatprep.mubr.f32.mxu0 0.0
  %4753 = vmatmul.mubr.f32.gmra.mrb[0].mxu0 %v4439
  %v4754 = vpop.f32.mrb[0].mxu0
  %v4755 = vadd.f32 0.0, %v4754
  %v4756 = vpop.f32.mrb[0].mxu0
  %4757 = vmatprep.mubr.f32.mxu0 0.0
  %4758 = vmatmul.mubr.f32.gmra.mrb[0].mxu0 %v4442
  %v4759 = vpop.f32.mrb[0].mxu0
  %v4760 = vadd.f32 0.0, %v4759
  %v4761 = vpop.f32.mrb[0].mxu0
  %4762 = vmatprep.mubr.f32.mxu0 0.0
  %4763 = vmatmul.mubr.f32.gmra.mrb[0].mxu0 %v4445
  %v4764 = vpop.f32.mrb[0].mxu0
  %v4765 = vadd.f32 0.0, %v4764
  %v4766 = vpop.f32.mrb[0].mxu0
  %4767 = vmatprep.mubr.f32.mxu0 0.0
  %4768 = vmatmul.mubr.f32.gmra.mrb[0].mxu0 %v4448
  %v4769 = vpop.f32.mrb[0].mxu0
  %v4770 = vadd.f32 0.0, %v4769
  %v4771 = vpop.f32.mrb[0].mxu0
  %4772 = vmatprep.mubr.f32.mxu0 0.0
  %4773 = vmatmul.mubr.f32.gmra.mrb[0].mxu0 %v4451
  %v4774 = vpop.f32.mrb[0].mxu0
  %v4775 = vadd.f32 0.0, %v4774
  %v4776 = vpop.f32.mrb[0].mxu0
  %4777 = vmatprep.mubr.f32.mxu0 0.0
  %4778 = vmatmul.mubr.f32.gmra.mrb[0].mxu0 %v4454
  %v4779 = vpop.f32.mrb[0].mxu0
  %v4780 = vadd.f32 0.0, %v4779
  %v4781 = vpop.f32.mrb[0].mxu0
  %4782 = vmatprep.mubr.f32.mxu0 0.0
  %4783 = vmatmul.mubr.f32.gmra.mrb[0].mxu0 %v4457
  %v4784 = vpop.f32.mrb[0].mxu0
  %v4785 = vadd.f32 0.0, %v4784
  %v4786 = vpop.f32.mrb[0].mxu0
  %4787 = vmatprep.mubr.f32.mxu0 0.0
  %4788 = vmatmul.mubr.f32.gmra.mrb[0].mxu0 %v4460
  %v4789 = vpop.f32.mrb[0].mxu0
  %v4790 = vadd.f32 0.0, %v4789
  %v4791 = vpop.f32.mrb[0].mxu0
  %4792 = vmatprep.mubr.f32.mxu0 0.0
  %4793 = vmatmul.mubr.f32.gmra.mrb[0].mxu0 %v4463
  %v4794 = vpop.f32.mrb[0].mxu0
  %v4795 = vadd.f32 0.0, %v4794
  %v4796 = vpop.f32.mrb[0].mxu0
  %4797 = vmatprep.mubr.f32.mxu0 0.0
  %4798 = vmatmul.mubr.f32.gmra.mrb[0].mxu0 %v4466
  %v4799 = vpop.f32.mrb[0].mxu0
  %v4800 = vadd.f32 0.0, %v4799
  %v4801 = vpop.f32.mrb[0].mxu0
  %4802 = vmatprep.mubr.f32.mxu0 0.0
  %4803 = vmatmul.mubr.f32.gmra.mrb[0].mxu0 %v4469
  %v4804 = vpop.f32.mrb[0].mxu0
  %v4805 = vadd.f32 0.0, %v4804
  %v4806 = vpop.f32.mrb[0].mxu0
  %4807 = vmatprep.mubr.f32.mxu0 0.0
  %4808 = vmatmul.mubr.f32.gmra.mrb[0].mxu0 %v4472
  %v4809 = vpop.f32.mrb[0].mxu0
  %v4810 = vadd.f32 0.0, %v4809
  %v4811 = vpop.f32.mrb[0].mxu0
  %4812 = vmatprep.mubr.f32.mxu0 0.0
  %4813 = vmatmul.mubr.f32.gmra.mrb[0].mxu0 %v4475
  %v4814 = vpop.f32.mrb[0].mxu0
  %v4815 = vadd.f32 0.0, %v4814
  %v4816 = vpop.f32.mrb[0].mxu0
  %4817 = vmatprep.mubr.f32.mxu0 0.0
  %4818 = vmatmul.mubr.f32.gmra.mrb[0].mxu0 %v4478
  %v4819 = vpop.f32.mrb[0].mxu0
  %v4820 = vadd.f32 0.0, %v4819
  %v4821 = vpop.f32.mrb[0].mxu0
  %4822 = vmatprep.mubr.f32.mxu0 0.0
  %4823 = vmatmul.mubr.f32.gmra.mrb[0].mxu0 %v4481
  %v4824 = vpop.f32.mrb[0].mxu0
  %v4825 = vadd.f32 0.0, %v4824
  %v4826 = vpop.f32.mrb[0].mxu0
  %4827 = vdwg.mxu0
  %v4828 = vsel %vm191, %v4550, -inf
  %v4829 = vsel %vm191, %v4590, -inf
  %v4830 = vmax.f32 %v4828, %v4829
  %v4831 = vsel %vm191, %v4630, -inf
  %v4832 = vmax.f32 %v4830, %v4831
  %v4833 = vsel %vm191, %v4670, -inf
  %v4834 = vmax.f32 %v4832, %v4833
  %v4835 = vsel %vm191, %v4710, -inf
  %v4836 = vmax.f32 %v4834, %v4835
  %v4837 = vsel %vm191, %v4750, -inf
  %v4838 = vmax.f32 %v4836, %v4837
  %v4839 = vsel %vm191, %v4790, -inf
  %v4840 = vmax.f32 %v4838, %v4839
  %v4841 = vsel %vm191, %v4555, -inf
  %v4842 = vsel %vm191, %v4595, -inf
  %v4843 = vmax.f32 %v4841, %v4842
  %v4844 = vsel %vm191, %v4635, -inf
  %v4845 = vmax.f32 %v4843, %v4844
  %v4846 = vsel %vm191, %v4675, -inf
  %v4847 = vmax.f32 %v4845, %v4846
  %v4848 = vsel %vm191, %v4715, -inf
  %v4849 = vmax.f32 %v4847, %v4848
  %v4850 = vsel %vm191, %v4755, -inf
  %v4851 = vmax.f32 %v4849, %v4850
  %v4852 = vsel %vm191, %v4795, -inf
  %v4853 = vmax.f32 %v4851, %v4852
  %v4854 = vsel %vm191, %v4560, -inf
  %v4855 = vsel %vm191, %v4600, -inf
  %v4856 = vmax.f32 %v4854, %v4855
  %v4857 = vsel %vm191, %v4640, -inf
  %v4858 = vmax.f32 %v4856, %v4857
  %v4859 = vsel %vm191, %v4680, -inf
  %v4860 = vmax.f32 %v4858, %v4859
  %v4861 = vsel %vm191, %v4720, -inf
  %v4862 = vmax.f32 %v4860, %v4861
  %v4863 = vsel %vm191, %v4760, -inf
  %v4864 = vmax.f32 %v4862, %v4863
  %v4865 = vsel %vm191, %v4800, -inf
  %v4866 = vmax.f32 %v4864, %v4865
  %v4867 = vsel %vm191, %v4565, -inf
  %v4868 = vsel %vm191, %v4605, -inf
  %v4869 = vmax.f32 %v4867, %v4868
  %v4870 = vsel %vm191, %v4645, -inf
  %v4871 = vmax.f32 %v4869, %v4870
  %v4872 = vsel %vm191, %v4685, -inf
  %v4873 = vmax.f32 %v4871, %v4872
  %v4874 = vsel %vm191, %v4725, -inf
  %v4875 = vmax.f32 %v4873, %v4874
  %v4876 = vsel %vm191, %v4765, -inf
  %v4877 = vmax.f32 %v4875, %v4876
  %v4878 = vsel %vm191, %v4805, -inf
  %v4879 = vmax.f32 %v4877, %v4878
  %v4880 = vsel %vm191, %v4570, -inf
  %v4881 = vsel %vm191, %v4610, -inf
  %v4882 = vmax.f32 %v4880, %v4881
  %v4883 = vsel %vm191, %v4650, -inf
  %v4884 = vmax.f32 %v4882, %v4883
  %v4885 = vsel %vm191, %v4690, -inf
  %v4886 = vmax.f32 %v4884, %v4885
  %v4887 = vsel %vm191, %v4730, -inf
  %v4888 = vmax.f32 %v4886, %v4887
  %v4889 = vsel %vm191, %v4770, -inf
  %v4890 = vmax.f32 %v4888, %v4889
  %v4891 = vsel %vm191, %v4810, -inf
  %v4892 = vmax.f32 %v4890, %v4891
  %v4893 = vsel %vm191, %v4575, -inf
  %v4894 = vsel %vm191, %v4615, -inf
  %v4895 = vmax.f32 %v4893, %v4894
  %v4896 = vsel %vm191, %v4655, -inf
  %v4897 = vmax.f32 %v4895, %v4896
  %v4898 = vsel %vm191, %v4695, -inf
  %v4899 = vmax.f32 %v4897, %v4898
  %v4900 = vsel %vm191, %v4735, -inf
  %v4901 = vmax.f32 %v4899, %v4900
  %v4902 = vsel %vm191, %v4775, -inf
  %v4903 = vmax.f32 %v4901, %v4902
  %v4904 = vsel %vm191, %v4815, -inf
  %v4905 = vmax.f32 %v4903, %v4904
  %v4906 = vsel %vm191, %v4580, -inf
  %v4907 = vsel %vm191, %v4620, -inf
  %v4908 = vmax.f32 %v4906, %v4907
  %v4909 = vsel %vm191, %v4660, -inf
  %v4910 = vmax.f32 %v4908, %v4909
  %v4911 = vsel %vm191, %v4700, -inf
  %v4912 = vmax.f32 %v4910, %v4911
  %v4913 = vsel %vm191, %v4740, -inf
  %v4914 = vmax.f32 %v4912, %v4913
  %v4915 = vsel %vm191, %v4780, -inf
  %v4916 = vmax.f32 %v4914, %v4915
  %v4917 = vsel %vm191, %v4820, -inf
  %v4918 = vmax.f32 %v4916, %v4917
  %v4919 = vsel %vm191, %v4585, -inf
  %v4920 = vsel %vm191, %v4625, -inf
  %v4921 = vmax.f32 %v4919, %v4920
  %v4922 = vsel %vm191, %v4665, -inf
  %v4923 = vmax.f32 %v4921, %v4922
  %v4924 = vsel %vm191, %v4705, -inf
  %v4925 = vmax.f32 %v4923, %v4924
  %v4926 = vsel %vm191, %v4745, -inf
  %v4927 = vmax.f32 %v4925, %v4926
  %v4928 = vsel %vm191, %v4785, -inf
  %v4929 = vmax.f32 %v4927, %v4928
  %v4930 = vsel %vm191, %v4825, -inf
  %v4931 = vmax.f32 %v4929, %v4930
  %v4932 = vsub.f32 %v4550, %v4840
  %v4933 = vsub.f32 %v4555, %v4853
  %v4934 = vsub.f32 %v4560, %v4866
  %v4935 = vsub.f32 %v4565, %v4879
  %v4936 = vsub.f32 %v4570, %v4892
  %v4937 = vsub.f32 %v4575, %v4905
  %v4938 = vsub.f32 %v4580, %v4918
  %v4939 = vsub.f32 %v4585, %v4931
  %v4940 = vsub.f32 %v4590, %v4840
  %v4941 = vsub.f32 %v4595, %v4853
  %v4942 = vsub.f32 %v4600, %v4866
  %v4943 = vsub.f32 %v4605, %v4879
  %v4944 = vsub.f32 %v4610, %v4892
  %v4945 = vsub.f32 %v4615, %v4905
  %v4946 = vsub.f32 %v4620, %v4918
  %v4947 = vsub.f32 %v4625, %v4931
  %v4948 = vsub.f32 %v4630, %v4840
  %v4949 = vsub.f32 %v4635, %v4853
  %v4950 = vsub.f32 %v4640, %v4866
  %v4951 = vsub.f32 %v4645, %v4879
  %v4952 = vsub.f32 %v4650, %v4892
  %v4953 = vsub.f32 %v4655, %v4905
  %v4954 = vsub.f32 %v4660, %v4918
  %v4955 = vsub.f32 %v4665, %v4931
  %v4956 = vsub.f32 %v4670, %v4840
  %v4957 = vsub.f32 %v4675, %v4853
  %v4958 = vsub.f32 %v4680, %v4866
  %v4959 = vsub.f32 %v4685, %v4879
  %v4960 = vsub.f32 %v4690, %v4892
  %v4961 = vsub.f32 %v4695, %v4905
  %v4962 = vsub.f32 %v4700, %v4918
  %v4963 = vsub.f32 %v4705, %v4931
  %v4964 = vsub.f32 %v4710, %v4840
  %v4965 = vsub.f32 %v4715, %v4853
  %v4966 = vsub.f32 %v4720, %v4866
  %v4967 = vsub.f32 %v4725, %v4879
  %v4968 = vsub.f32 %v4730, %v4892
  %v4969 = vsub.f32 %v4735, %v4905
  %v4970 = vsub.f32 %v4740, %v4918
  %v4971 = vsub.f32 %v4745, %v4931
  %v4972 = vsub.f32 %v4750, %v4840
  %v4973 = vsub.f32 %v4755, %v4853
  %v4974 = vsub.f32 %v4760, %v4866
  %v4975 = vsub.f32 %v4765, %v4879
  %v4976 = vsub.f32 %v4770, %v4892
  %v4977 = vsub.f32 %v4775, %v4905
  %v4978 = vsub.f32 %v4780, %v4918
  %v4979 = vsub.f32 %v4785, %v4931
  %v4980 = vsub.f32 %v4790, %v4840
  %v4981 = vsub.f32 %v4795, %v4853
  %v4982 = vsub.f32 %v4800, %v4866
  %v4983 = vsub.f32 %v4805, %v4879
  %v4984 = vsub.f32 %v4810, %v4892
  %v4985 = vsub.f32 %v4815, %v4905
  %v4986 = vsub.f32 %v4820, %v4918
  %v4987 = vsub.f32 %v4825, %v4931
  %v4988 = vmul.f32 %v4932, 1.442695
  %v4989 = vpow.pop %v4988
  %v4990 = vmul.f32 %v4933, 1.442695
  %v4991 = vpow.pop %v4990
  %v4992 = vmul.f32 %v4934, 1.442695
  %v4993 = vpow.pop %v4992
  %v4994 = vmul.f32 %v4935, 1.442695
  %v4995 = vpow.pop %v4994
  %v4996 = vmul.f32 %v4936, 1.442695
  %v4997 = vpow.pop %v4996
  %v4998 = vmul.f32 %v4937, 1.442695
  %v4999 = vpow.pop %v4998
  %v5000 = vmul.f32 %v4938, 1.442695
  %v5001 = vpow.pop %v5000
  %v5002 = vmul.f32 %v4939, 1.442695
  %v5003 = vpow.pop %v5002
  %v5004 = vmul.f32 %v4940, 1.442695
  %v5005 = vpow.pop %v5004
  %v5006 = vmul.f32 %v4941, 1.442695
  %v5007 = vpow.pop %v5006
  %v5008 = vmul.f32 %v4942, 1.442695
  %v5009 = vpow.pop %v5008
  %v5010 = vmul.f32 %v4943, 1.442695
  %v5011 = vpow.pop %v5010
  %v5012 = vmul.f32 %v4944, 1.442695
  %v5013 = vpow.pop %v5012
  %v5014 = vmul.f32 %v4945, 1.442695
  %v5015 = vpow.pop %v5014
  %v5016 = vmul.f32 %v4946, 1.442695
  %v5017 = vpow.pop %v5016
  %v5018 = vmul.f32 %v4947, 1.442695
  %v5019 = vpow.pop %v5018
  %v5020 = vmul.f32 %v4948, 1.442695
  %v5021 = vpow.pop %v5020
  %v5022 = vmul.f32 %v4949, 1.442695
  %v5023 = vpow.pop %v5022
  %v5024 = vmul.f32 %v4950, 1.442695
  %v5025 = vpow.pop %v5024
  %v5026 = vmul.f32 %v4951, 1.442695
  %v5027 = vpow.pop %v5026
  %v5028 = vmul.f32 %v4952, 1.442695
  %v5029 = vpow.pop %v5028
  %v5030 = vmul.f32 %v4953, 1.442695
  %v5031 = vpow.pop %v5030
  %v5032 = vmul.f32 %v4954, 1.442695
  %v5033 = vpow.pop %v5032
  %v5034 = vmul.f32 %v4955, 1.442695
  %v5035 = vpow.pop %v5034
  %v5036 = vmul.f32 %v4956, 1.442695
  %v5037 = vpow.pop %v5036
  %v5038 = vmul.f32 %v4957, 1.442695
  %v5039 = vpow.pop %v5038
  %v5040 = vmul.f32 %v4958, 1.442695
  %v5041 = vpow.pop %v5040
  %v5042 = vmul.f32 %v4959, 1.442695
  %v5043 = vpow.pop %v5042
  %v5044 = vmul.f32 %v4960, 1.442695
  %v5045 = vpow.pop %v5044
  %v5046 = vmul.f32 %v4961, 1.442695
  %v5047 = vpow.pop %v5046
  %v5048 = vmul.f32 %v4962, 1.442695
  %v5049 = vpow.pop %v5048
  %v5050 = vmul.f32 %v4963, 1.442695
  %v5051 = vpow.pop %v5050
  %v5052 = vmul.f32 %v4964, 1.442695
  %v5053 = vpow.pop %v5052
  %v5054 = vmul.f32 %v4965, 1.442695
  %v5055 = vpow.pop %v5054
  %v5056 = vmul.f32 %v4966, 1.442695
  %v5057 = vpow.pop %v5056
  %v5058 = vmul.f32 %v4967, 1.442695
  %v5059 = vpow.pop %v5058
  %v5060 = vmul.f32 %v4968, 1.442695
  %v5061 = vpow.pop %v5060
  %v5062 = vmul.f32 %v4969, 1.442695
  %v5063 = vpow.pop %v5062
  %v5064 = vmul.f32 %v4970, 1.442695
  %v5065 = vpow.pop %v5064
  %v5066 = vmul.f32 %v4971, 1.442695
  %v5067 = vpow.pop %v5066
  %v5068 = vmul.f32 %v4972, 1.442695
  %v5069 = vpow.pop %v5068
  %v5070 = vmul.f32 %v4973, 1.442695
  %v5071 = vpow.pop %v5070
  %v5072 = vmul.f32 %v4974, 1.442695
  %v5073 = vpow.pop %v5072
  %v5074 = vmul.f32 %v4975, 1.442695
  %v5075 = vpow.pop %v5074
  %v5076 = vmul.f32 %v4976, 1.442695
  %v5077 = vpow.pop %v5076
  %v5078 = vmul.f32 %v4977, 1.442695
  %v5079 = vpow.pop %v5078
  %v5080 = vmul.f32 %v4978, 1.442695
  %v5081 = vpow.pop %v5080
  %v5082 = vmul.f32 %v4979, 1.442695
  %v5083 = vpow.pop %v5082
  %v5084 = vmul.f32 %v4980, 1.442695
  %v5085 = vpow.pop %v5084
  %v5086 = vmul.f32 %v4981, 1.442695
  %v5087 = vpow.pop %v5086
  %v5088 = vmul.f32 %v4982, 1.442695
  %v5089 = vpow.pop %v5088
  %v5090 = vmul.f32 %v4983, 1.442695
  %v5091 = vpow.pop %v5090
  %v5092 = vmul.f32 %v4984, 1.442695
  %v5093 = vpow.pop %v5092
  %v5094 = vmul.f32 %v4985, 1.442695
  %v5095 = vpow.pop %v5094
  %v5096 = vmul.f32 %v4986, 1.442695
  %v5097 = vpow.pop %v5096
  %v5098 = vmul.f32 %v4987, 1.442695
  %v5099 = vpow.pop %v5098
  %v5100 = vsel %vm191, %v4989, 0.0
  %v5101 = vsel %vm191, %v5005, 0.0
  %v5102 = vadd.f32 %v5100, %v5101
  %v5103 = vsel %vm191, %v5021, 0.0
  %v5104 = vadd.f32 %v5102, %v5103
  %v5105 = vsel %vm191, %v5037, 0.0
  %v5106 = vadd.f32 %v5104, %v5105
  %v5107 = vsel %vm191, %v5053, 0.0
  %v5108 = vadd.f32 %v5106, %v5107
  %v5109 = vsel %vm191, %v5069, 0.0
  %v5110 = vadd.f32 %v5108, %v5109
  %v5111 = vsel %vm191, %v5085, 0.0
  %v5112 = vadd.f32 %v5110, %v5111
  %v5113 = vsel %vm191, %v4991, 0.0
  %v5114 = vsel %vm191, %v5007, 0.0
  %v5115 = vadd.f32 %v5113, %v5114
  %v5116 = vsel %vm191, %v5023, 0.0
  %v5117 = vadd.f32 %v5115, %v5116
  %v5118 = vsel %vm191, %v5039, 0.0
  %v5119 = vadd.f32 %v5117, %v5118
  %v5120 = vsel %vm191, %v5055, 0.0
  %v5121 = vadd.f32 %v5119, %v5120
  %v5122 = vsel %vm191, %v5071, 0.0
  %v5123 = vadd.f32 %v5121, %v5122
  %v5124 = vsel %vm191, %v5087, 0.0
  %v5125 = vadd.f32 %v5123, %v5124
  %v5126 = vsel %vm191, %v4993, 0.0
  %v5127 = vsel %vm191, %v5009, 0.0
  %v5128 = vadd.f32 %v5126, %v5127
  %v5129 = vsel %vm191, %v5025, 0.0
  %v5130 = vadd.f32 %v5128, %v5129
  %v5131 = vsel %vm191, %v5041, 0.0
  %v5132 = vadd.f32 %v5130, %v5131
  %v5133 = vsel %vm191, %v5057, 0.0
  %v5134 = vadd.f32 %v5132, %v5133
  %v5135 = vsel %vm191, %v5073, 0.0
  %v5136 = vadd.f32 %v5134, %v5135
  %v5137 = vsel %vm191, %v5089, 0.0
  %v5138 = vadd.f32 %v5136, %v5137
  %v5139 = vsel %vm191, %v4995, 0.0
  %v5140 = vsel %vm191, %v5011, 0.0
  %v5141 = vadd.f32 %v5139, %v5140
  %v5142 = vsel %vm191, %v5027, 0.0
  %v5143 = vadd.f32 %v5141, %v5142
  %v5144 = vsel %vm191, %v5043, 0.0
  %v5145 = vadd.f32 %v5143, %v5144
  %v5146 = vsel %vm191, %v5059, 0.0
  %v5147 = vadd.f32 %v5145, %v5146
  %v5148 = vsel %vm191, %v5075, 0.0
  %v5149 = vadd.f32 %v5147, %v5148
  %v5150 = vsel %vm191, %v5091, 0.0
  %v5151 = vadd.f32 %v5149, %v5150
  %v5152 = vsel %vm191, %v4997, 0.0
  %v5153 = vsel %vm191, %v5013, 0.0
  %v5154 = vadd.f32 %v5152, %v5153
  %v5155 = vsel %vm191, %v5029, 0.0
  %v5156 = vadd.f32 %v5154, %v5155
  %v5157 = vsel %vm191, %v5045, 0.0
  %v5158 = vadd.f32 %v5156, %v5157
  %v5159 = vsel %vm191, %v5061, 0.0
  %v5160 = vadd.f32 %v5158, %v5159
  %v5161 = vsel %vm191, %v5077, 0.0
  %v5162 = vadd.f32 %v5160, %v5161
  %v5163 = vsel %vm191, %v5093, 0.0
  %v5164 = vadd.f32 %v5162, %v5163
  %v5165 = vsel %vm191, %v4999, 0.0
  %v5166 = vsel %vm191, %v5015, 0.0
  %v5167 = vadd.f32 %v5165, %v5166
  %v5168 = vsel %vm191, %v5031, 0.0
  %v5169 = vadd.f32 %v5167, %v5168
  %v5170 = vsel %vm191, %v5047, 0.0
  %v5171 = vadd.f32 %v5169, %v5170
  %v5172 = vsel %vm191, %v5063, 0.0
  %v5173 = vadd.f32 %v5171, %v5172
  %v5174 = vsel %vm191, %v5079, 0.0
  %v5175 = vadd.f32 %v5173, %v5174
  %v5176 = vsel %vm191, %v5095, 0.0
  %v5177 = vadd.f32 %v5175, %v5176
  %v5178 = vsel %vm191, %v5001, 0.0
  %v5179 = vsel %vm191, %v5017, 0.0
  %v5180 = vadd.f32 %v5178, %v5179
  %v5181 = vsel %vm191, %v5033, 0.0
  %v5182 = vadd.f32 %v5180, %v5181
  %v5183 = vsel %vm191, %v5049, 0.0
  %v5184 = vadd.f32 %v5182, %v5183
  %v5185 = vsel %vm191, %v5065, 0.0
  %v5186 = vadd.f32 %v5184, %v5185
  %v5187 = vsel %vm191, %v5081, 0.0
  %v5188 = vadd.f32 %v5186, %v5187
  %v5189 = vsel %vm191, %v5097, 0.0
  %v5190 = vadd.f32 %v5188, %v5189
  %v5191 = vsel %vm191, %v5003, 0.0
  %v5192 = vsel %vm191, %v5019, 0.0
  %v5193 = vadd.f32 %v5191, %v5192
  %v5194 = vsel %vm191, %v5035, 0.0
  %v5195 = vadd.f32 %v5193, %v5194
  %v5196 = vsel %vm191, %v5051, 0.0
  %v5197 = vadd.f32 %v5195, %v5196
  %v5198 = vsel %vm191, %v5067, 0.0
  %v5199 = vadd.f32 %v5197, %v5198
  %v5200 = vsel %vm191, %v5083, 0.0
  %v5201 = vadd.f32 %v5199, %v5200
  %v5202 = vsel %vm191, %v5099, 0.0
  %v5203 = vadd.f32 %v5201, %v5202
  %v5204 = vrcp.pop %v5112
  %v5205 = vrcp.pop %v5125
  %v5206 = vrcp.pop %v5138
  %v5207 = vrcp.pop %v5151
  %v5208 = vrcp.pop %v5164
  %v5209 = vrcp.pop %v5177
  %v5210 = vrcp.pop %v5190
  %v5211 = vrcp.pop %v5203
  %v5212 = vmul.f32 %v4989, %v5204
  %v5213 = vmul.f32 %v4991, %v5205
  %v5214 = vmul.f32 %v4993, %v5206
  %v5215 = vmul.f32 %v4995, %v5207
  %v5216 = vmul.f32 %v4997, %v5208
  %v5217 = vmul.f32 %v4999, %v5209
  %v5218 = vmul.f32 %v5001, %v5210
  %v5219 = vmul.f32 %v5003, %v5211
  %v5220 = vmul.f32 %v5005, %v5204
  %v5221 = vmul.f32 %v5007, %v5205
  %v5222 = vmul.f32 %v5009, %v5206
  %v5223 = vmul.f32 %v5011, %v5207
  %v5224 = vmul.f32 %v5013, %v5208
  %v5225 = vmul.f32 %v5015, %v5209
  %v5226 = vmul.f32 %v5017, %v5210
  %v5227 = vmul.f32 %v5019, %v5211
  %v5228 = vmul.f32 %v5021, %v5204
  %v5229 = vmul.f32 %v5023, %v5205
  %v5230 = vmul.f32 %v5025, %v5206
  %v5231 = vmul.f32 %v5027, %v5207
  %v5232 = vmul.f32 %v5029, %v5208
  %v5233 = vmul.f32 %v5031, %v5209
  %v5234 = vmul.f32 %v5033, %v5210
  %v5235 = vmul.f32 %v5035, %v5211
  %v5236 = vmul.f32 %v5037, %v5204
  %v5237 = vmul.f32 %v5039, %v5205
  %v5238 = vmul.f32 %v5041, %v5206
  %v5239 = vmul.f32 %v5043, %v5207
  %v5240 = vmul.f32 %v5045, %v5208
  %v5241 = vmul.f32 %v5047, %v5209
  %v5242 = vmul.f32 %v5049, %v5210
  %v5243 = vmul.f32 %v5051, %v5211
  %v5244 = vmul.f32 %v5053, %v5204
  %v5245 = vmul.f32 %v5055, %v5205
  %v5246 = vmul.f32 %v5057, %v5206
  %v5247 = vmul.f32 %v5059, %v5207
  %v5248 = vmul.f32 %v5061, %v5208
  %v5249 = vmul.f32 %v5063, %v5209
  %v5250 = vmul.f32 %v5065, %v5210
  %v5251 = vmul.f32 %v5067, %v5211
  %v5252 = vmul.f32 %v5069, %v5204
  %v5253 = vmul.f32 %v5071, %v5205
  %v5254 = vmul.f32 %v5073, %v5206
  %v5255 = vmul.f32 %v5075, %v5207
  %v5256 = vmul.f32 %v5077, %v5208
  %v5257 = vmul.f32 %v5079, %v5209
  %v5258 = vmul.f32 %v5081, %v5210
  %v5259 = vmul.f32 %v5083, %v5211
  %v5260 = vmul.f32 %v5085, %v5204
  %v5261 = vmul.f32 %v5087, %v5205
  %v5262 = vmul.f32 %v5089, %v5206
  %v5263 = vmul.f32 %v5091, %v5207
  %v5264 = vmul.f32 %v5093, %v5208
  %v5265 = vmul.f32 %v5095, %v5209
  %v5266 = vmul.f32 %v5097, %v5210
  %v5267 = vmul.f32 %v5099, %v5211
  %v5268 = vmul.f32 %v5212, %v3981
  %v5269 = vmul.f32 %v5213, %v3986
  %v5270 = vmul.f32 %v5214, %v3991
  %v5271 = vmul.f32 %v5215, %v3996
  %v5272 = vmul.f32 %v5216, %v4001
  %v5273 = vmul.f32 %v5217, %v4006
  %v5274 = vmul.f32 %v5218, %v4011
  %v5275 = vmul.f32 %v5219, %v4016
  %v5276 = vmul.f32 %v5220, %v4021
  %v5277 = vmul.f32 %v5221, %v4026
  %v5278 = vmul.f32 %v5222, %v4031
  %v5279 = vmul.f32 %v5223, %v4036
  %v5280 = vmul.f32 %v5224, %v4041
  %v5281 = vmul.f32 %v5225, %v4046
  %v5282 = vmul.f32 %v5226, %v4051
  %v5283 = vmul.f32 %v5227, %v4056
  %v5284 = vmul.f32 %v5228, %v4061
  %v5285 = vmul.f32 %v5229, %v4066
  %v5286 = vmul.f32 %v5230, %v4071
  %v5287 = vmul.f32 %v5231, %v4076
  %v5288 = vmul.f32 %v5232, %v4081
  %v5289 = vmul.f32 %v5233, %v4086
  %v5290 = vmul.f32 %v5234, %v4091
  %v5291 = vmul.f32 %v5235, %v4096
  %v5292 = vmul.f32 %v5236, %v4101
  %v5293 = vmul.f32 %v5237, %v4106
  %v5294 = vmul.f32 %v5238, %v4111
  %v5295 = vmul.f32 %v5239, %v4116
  %v5296 = vmul.f32 %v5240, %v4121
  %v5297 = vmul.f32 %v5241, %v4126
  %v5298 = vmul.f32 %v5242, %v4131
  %v5299 = vmul.f32 %v5243, %v4136
  %v5300 = vmul.f32 %v5244, %v4141
  %v5301 = vmul.f32 %v5245, %v4146
  %v5302 = vmul.f32 %v5246, %v4151
  %v5303 = vmul.f32 %v5247, %v4156
  %v5304 = vmul.f32 %v5248, %v4161
  %v5305 = vmul.f32 %v5249, %v4166
  %v5306 = vmul.f32 %v5250, %v4171
  %v5307 = vmul.f32 %v5251, %v4176
  %v5308 = vmul.f32 %v5252, %v4181
  %v5309 = vmul.f32 %v5253, %v4186
  %v5310 = vmul.f32 %v5254, %v4191
  %v5311 = vmul.f32 %v5255, %v4196
  %v5312 = vmul.f32 %v5256, %v4201
  %v5313 = vmul.f32 %v5257, %v4206
  %v5314 = vmul.f32 %v5258, %v4211
  %v5315 = vmul.f32 %v5259, %v4216
  %v5316 = vmul.f32 %v5260, %v4221
  %v5317 = vmul.f32 %v5261, %v4226
  %v5318 = vmul.f32 %v5262, %v4231
  %v5319 = vmul.f32 %v5263, %v4236
  %v5320 = vmul.f32 %v5264, %v4241
  %v5321 = vmul.f32 %v5265, %v4246
  %v5322 = vmul.f32 %v5266, %v4251
  %v5323 = vmul.f32 %v5267, %v4256
  %v5324 = vsel %vm191, %v5268, 0.0
  %v5325 = vsel %vm191, %v5276, 0.0
  %v5326 = vadd.f32 %v5324, %v5325
  %v5327 = vsel %vm191, %v5284, 0.0
  %v5328 = vadd.f32 %v5326, %v5327
  %v5329 = vsel %vm191, %v5292, 0.0
  %v5330 = vadd.f32 %v5328, %v5329
  %v5331 = vsel %vm191, %v5300, 0.0
  %v5332 = vadd.f32 %v5330, %v5331
  %v5333 = vsel %vm191, %v5308, 0.0
  %v5334 = vadd.f32 %v5332, %v5333
  %v5335 = vsel %vm191, %v5316, 0.0
  %v5336 = vadd.f32 %v5334, %v5335
  %v5337 = vsel %vm191, %v5269, 0.0
  %v5338 = vsel %vm191, %v5277, 0.0
  %v5339 = vadd.f32 %v5337, %v5338
  %v5340 = vsel %vm191, %v5285, 0.0
  %v5341 = vadd.f32 %v5339, %v5340
  %v5342 = vsel %vm191, %v5293, 0.0
  %v5343 = vadd.f32 %v5341, %v5342
  %v5344 = vsel %vm191, %v5301, 0.0
  %v5345 = vadd.f32 %v5343, %v5344
  %v5346 = vsel %vm191, %v5309, 0.0
  %v5347 = vadd.f32 %v5345, %v5346
  %v5348 = vsel %vm191, %v5317, 0.0
  %v5349 = vadd.f32 %v5347, %v5348
  %v5350 = vsel %vm191, %v5270, 0.0
  %v5351 = vsel %vm191, %v5278, 0.0
  %v5352 = vadd.f32 %v5350, %v5351
  %v5353 = vsel %vm191, %v5286, 0.0
  %v5354 = vadd.f32 %v5352, %v5353
  %v5355 = vsel %vm191, %v5294, 0.0
  %v5356 = vadd.f32 %v5354, %v5355
  %v5357 = vsel %vm191, %v5302, 0.0
  %v5358 = vadd.f32 %v5356, %v5357
  %v5359 = vsel %vm191, %v5310, 0.0
  %v5360 = vadd.f32 %v5358, %v5359
  %v5361 = vsel %vm191, %v5318, 0.0
  %v5362 = vadd.f32 %v5360, %v5361
  %v5363 = vsel %vm191, %v5271, 0.0
  %v5364 = vsel %vm191, %v5279, 0.0
  %v5365 = vadd.f32 %v5363, %v5364
  %v5366 = vsel %vm191, %v5287, 0.0
  %v5367 = vadd.f32 %v5365, %v5366
  %v5368 = vsel %vm191, %v5295, 0.0
  %v5369 = vadd.f32 %v5367, %v5368
  %v5370 = vsel %vm191, %v5303, 0.0
  %v5371 = vadd.f32 %v5369, %v5370
  %v5372 = vsel %vm191, %v5311, 0.0
  %v5373 = vadd.f32 %v5371, %v5372
  %v5374 = vsel %vm191, %v5319, 0.0
  %v5375 = vadd.f32 %v5373, %v5374
  %v5376 = vsel %vm191, %v5272, 0.0
  %v5377 = vsel %vm191, %v5280, 0.0
  %v5378 = vadd.f32 %v5376, %v5377
  %v5379 = vsel %vm191, %v5288, 0.0
  %v5380 = vadd.f32 %v5378, %v5379
  %v5381 = vsel %vm191, %v5296, 0.0
  %v5382 = vadd.f32 %v5380, %v5381
  %v5383 = vsel %vm191, %v5304, 0.0
  %v5384 = vadd.f32 %v5382, %v5383
  %v5385 = vsel %vm191, %v5312, 0.0
  %v5386 = vadd.f32 %v5384, %v5385
  %v5387 = vsel %vm191, %v5320, 0.0
  %v5388 = vadd.f32 %v5386, %v5387
  %v5389 = vsel %vm191, %v5273, 0.0
  %v5390 = vsel %vm191, %v5281, 0.0
  %v5391 = vadd.f32 %v5389, %v5390
  %v5392 = vsel %vm191, %v5289, 0.0
  %v5393 = vadd.f32 %v5391, %v5392
  %v5394 = vsel %vm191, %v5297, 0.0
  %v5395 = vadd.f32 %v5393, %v5394
  %v5396 = vsel %vm191, %v5305, 0.0
  %v5397 = vadd.f32 %v5395, %v5396
  %v5398 = vsel %vm191, %v5313, 0.0
  %v5399 = vadd.f32 %v5397, %v5398
  %v5400 = vsel %vm191, %v5321, 0.0
  %v5401 = vadd.f32 %v5399, %v5400
  %v5402 = vsel %vm191, %v5274, 0.0
  %v5403 = vsel %vm191, %v5282, 0.0
  %v5404 = vadd.f32 %v5402, %v5403
  %v5405 = vsel %vm191, %v5290, 0.0
  %v5406 = vadd.f32 %v5404, %v5405
  %v5407 = vsel %vm191, %v5298, 0.0
  %v5408 = vadd.f32 %v5406, %v5407
  %v5409 = vsel %vm191, %v5306, 0.0
  %v5410 = vadd.f32 %v5408, %v5409
  %v5411 = vsel %vm191, %v5314, 0.0
  %v5412 = vadd.f32 %v5410, %v5411
  %v5413 = vsel %vm191, %v5322, 0.0
  %v5414 = vadd.f32 %v5412, %v5413
  %v5415 = vsel %vm191, %v5275, 0.0
  %v5416 = vsel %vm191, %v5283, 0.0
  %v5417 = vadd.f32 %v5415, %v5416
  %v5418 = vsel %vm191, %v5291, 0.0
  %v5419 = vadd.f32 %v5417, %v5418
  %v5420 = vsel %vm191, %v5299, 0.0
  %v5421 = vadd.f32 %v5419, %v5420
  %v5422 = vsel %vm191, %v5307, 0.0
  %v5423 = vadd.f32 %v5421, %v5422
  %v5424 = vsel %vm191, %v5315, 0.0
  %v5425 = vadd.f32 %v5423, %v5424
  %v5426 = vsel %vm191, %v5323, 0.0
  %v5427 = vadd.f32 %v5425, %v5426
  %s5428 = scalar_lea.vmem %s12, 32
  %v5429 = vld [vmem:[%s5428] sm:$0xff]
  %v5430 = vld [vmem:[%s5428 + $0x8] sm:$0xff]
  %v5431 = vld [vmem:[%s5428 + $0x10] sm:$0xff]
  %v5432 = vld [vmem:[%s5428 + $0x18] sm:$0xff]
  %s5433 = scalar_lea.vmem %s13, 1
  %v5434 = vld [vmem:[%s5433] sm:$0x1]
  %v5436 = vlaneseq
  %v5437 = vshrl.u32 %v5436, 7
  %v5438 = vsub.s32 0, %v5437
  %v5439 = vrot.slane %v5434, %v5438
  %v5442 = vsel %vm191, %v5336, 0
  %v5445 = vsel %vm191, %v5349, 0
  %v5448 = vsel %vm191, %v5362, 0
  %v5451 = vsel %vm191, %v5375, 0
  %v5454 = vsel %vm191, %v5388, 0
  %v5457 = vsel %vm191, %v5401, 0
  %v5460 = vsel %vm191, %v5414, 0
  %v5463 = vsel %vm191, %v5427, 0
  %5465 = vmatprep.subr.mxu0 0.0
  %5466 = vmatpush1.msra.mxu0 %v5429
  %5467 = vmatprep.subr.mxu0 0.0
  %5468 = vmatpush1.msra.mxu0 %v5430
  %5469 = vmatprep.subr.mxu0 0.0
  %5470 = vmatpush1.msra.mxu0 %v5431
  %5471 = vmatprep.subr.mxu0 0.0
  %5472 = vmatpush1.msra.mxu0 %v5432
  %5473 = vmatprep.subr.mxu0 0.0
  %5474 = vmatpush1.msra.mxu0 0.0
  %5475 = vmatprep.subr.mxu0 0.0
  %5476 = vmatpush1.msra.mxu0 0.0
  %5477 = vmatprep.subr.mxu0 0.0
  %5478 = vmatpush1.msra.mxu0 0.0
  %5479 = vmatprep.subr.mxu0 0.0
  %5480 = vmatpush1.msra.mxu0 0.0
  %5481 = vmatprep.subr.mxu0 0.0
  %5482 = vmatpush1.msra.mxu0 0.0
  %5483 = vmatprep.subr.mxu0 0.0
  %5484 = vmatpush1.msra.mxu0 0.0
  %5485 = vmatprep.subr.mxu0 0.0
  %5486 = vmatpush1.msra.mxu0 0.0
  %5487 = vmatprep.subr.mxu0 0.0
  %5488 = vmatpush1.msra.mxu0 0.0
  %5489 = vmatprep.subr.mxu0 0.0
  %5490 = vmatpush1.msra.mxu0 0.0
  %5491 = vmatprep.subr.mxu0 0.0
  %5492 = vmatpush1.msra.mxu0 0.0
  %5493 = vmatprep.subr.mxu0 0.0
  %5494 = vmatpush1.msra.mxu0 0.0
  %5495 = vmatprep.subr.mxu0 0.0
  %5496 = vmatpush1.msra.mxu0 0.0
  %5497 = vmatprep.subr.mxu0 0.0
  %5498 = vmatpush1.msra.mxu0 0.0
  %5499 = vmatprep.subr.mxu0 0.0
  %5500 = vmatpush1.msra.mxu0 0.0
  %5501 = vmatprep.subr.mxu0 0.0
  %5502 = vmatpush1.msra.mxu0 0.0
  %5503 = vmatprep.subr.mxu0 0.0
  %5504 = vmatpush1.msra.mxu0 0.0
  %5505 = vmatprep.subr.mxu0 0.0
  %5506 = vmatpush1.msra.mxu0 0.0
  %5507 = vmatprep.subr.mxu0 0.0
  %5508 = vmatpush1.msra.mxu0 0.0
  %5509 = vmatprep.subr.mxu0 0.0
  %5510 = vmatpush1.msra.mxu0 0.0
  %5511 = vmatprep.subr.mxu0 0.0
  %5512 = vmatpush1.msra.mxu0 0.0
  %5513 = vmatprep.subr.mxu0 0.0
  %5514 = vmatpush1.msra.mxu0 0.0
  %5515 = vmatprep.subr.mxu0 0.0
  %5516 = vmatpush1.msra.mxu0 0.0
  %5517 = vmatprep.subr.mxu0 0.0
  %5518 = vmatpush1.msra.mxu0 0.0
  %5519 = vmatprep.subr.mxu0 0.0
  %5520 = vmatpush1.msra.mxu0 0.0
  %5521 = vmatprep.subr.mxu0 0.0
  %5522 = vmatpush1.msra.mxu0 0.0
  %5523 = vmatprep.subr.mxu0 0.0
  %5524 = vmatpush1.msra.mxu0 0.0
  %5525 = vmatprep.subr.mxu0 0.0
  %5526 = vmatpush1.msra.mxu0 0.0
  %5527 = vmatprep.subr.mxu0 0.0
  %5528 = vmatpush1.msra.mxu0 0.0
  %5529 = vmatprep.mubr.f32.mxu0 0.0
  %5530 = vmatmul.mubr.f32.gmra.mrb[0].mxu0 %v5442
  %v5531 = vpop.f32.mrb[0].mxu0
  %v5532 = vadd.f32 %v5439, %v5531
  %v5533 = vpop.f32.mrb[0].mxu0
  %5534 = vmatprep.mubr.f32.mxu0 0.0
  %5535 = vmatmul.mubr.f32.gmra.mrb[0].mxu0 %v5445
  %v5536 = vpop.f32.mrb[0].mxu0
  %v5537 = vadd.f32 %v5439, %v5536
  %v5538 = vpop.f32.mrb[0].mxu0
  %5539 = vmatprep.mubr.f32.mxu0 0.0
  %5540 = vmatmul.mubr.f32.gmra.mrb[0].mxu0 %v5448
  %v5541 = vpop.f32.mrb[0].mxu0
  %v5542 = vadd.f32 %v5439, %v5541
  %v5543 = vpop.f32.mrb[0].mxu0
  %5544 = vmatprep.mubr.f32.mxu0 0.0
  %5545 = vmatmul.mubr.f32.gmra.mrb[0].mxu0 %v5451
  %v5546 = vpop.f32.mrb[0].mxu0
  %v5547 = vadd.f32 %v5439, %v5546
  %v5548 = vpop.f32.mrb[0].mxu0
  %5549 = vmatprep.mubr.f32.mxu0 0.0
  %5550 = vmatmul.mubr.f32.gmra.mrb[0].mxu0 %v5454
  %v5551 = vpop.f32.mrb[0].mxu0
  %v5552 = vadd.f32 %v5439, %v5551
  %v5553 = vpop.f32.mrb[0].mxu0
  %5554 = vmatprep.mubr.f32.mxu0 0.0
  %5555 = vmatmul.mubr.f32.gmra.mrb[0].mxu0 %v5457
  %v5556 = vpop.f32.mrb[0].mxu0
  %v5557 = vadd.f32 %v5439, %v5556
  %v5558 = vpop.f32.mrb[0].mxu0
  %5559 = vmatprep.mubr.f32.mxu0 0.0
  %5560 = vmatmul.mubr.f32.gmra.mrb[0].mxu0 %v5460
  %v5561 = vpop.f32.mrb[0].mxu0
  %v5562 = vadd.f32 %v5439, %v5561
  %v5563 = vpop.f32.mrb[0].mxu0
  %5564 = vmatprep.mubr.f32.mxu0 0.0
  %5565 = vmatmul.mubr.f32.gmra.mrb[0].mxu0 %v5463
  %v5566 = vpop.f32.mrb[0].mxu0
  %v5567 = vadd.f32 %v5439, %v5566
  %v5568 = vpop.f32.mrb[0].mxu0
  %5569 = vdwg.mxu0
  %v5570 = vadd.f32 %v3257, %v5532
  %v5571 = vadd.f32 %v3258, %v5537
  %v5572 = vadd.f32 %v3259, %v5542
  %v5573 = vadd.f32 %v3260, %v5547
  %v5574 = vadd.f32 %v3261, %v5552
  %v5575 = vadd.f32 %v3262, %v5557
  %v5576 = vadd.f32 %v3263, %v5562
  %v5577 = vadd.f32 %v3264, %v5567
  %s5578 = scalar_lea.vmem %s14, 1
  %v5579 = vld [vmem:[%s5578] sm:$0x1]
  %s5580 = scalar_lea.vmem %s15, 1
  %v5581 = vld [vmem:[%s5580] sm:$0x1]
  %v5582 = vsel %vm191, %v5570, 0.0
  %5583 = vadd.xlane.f32.xlu0 %v5582
  %v5584 = vpop.xlane.xlu0 %5583
  %v5585 = vsel %vm191, %v5571, 0.0
  %5586 = vadd.xlane.f32.xlu0 %v5585
  %v5587 = vpop.xlane.xlu0 %5586
  %v5588 = vsel %vm191, %v5572, 0.0
  %5589 = vadd.xlane.f32.xlu0 %v5588
  %v5590 = vpop.xlane.xlu0 %5589
  %v5591 = vsel %vm191, %v5573, 0.0
  %5592 = vadd.xlane.f32.xlu0 %v5591
  %v5593 = vpop.xlane.xlu0 %5592
  %v5594 = vsel %vm191, %v5574, 0.0
  %5595 = vadd.xlane.f32.xlu0 %v5594
  %v5596 = vpop.xlane.xlu0 %5595
  %v5597 = vsel %vm191, %v5575, 0.0
  %5598 = vadd.xlane.f32.xlu0 %v5597
  %v5599 = vpop.xlane.xlu0 %5598
  %v5600 = vsel %vm191, %v5576, 0.0
  %5601 = vadd.xlane.f32.xlu0 %v5600
  %v5602 = vpop.xlane.xlu0 %5601
  %v5603 = vsel %vm191, %v5577, 0.0
  %5604 = vadd.xlane.f32.xlu0 %v5603
  %v5605 = vpop.xlane.xlu0 %5604
  %v5606 = vmul.f32 %v5584, %v216
  %v5607 = vmul.f32 %v5587, %v216
  %v5608 = vmul.f32 %v5590, %v216
  %v5609 = vmul.f32 %v5593, %v216
  %v5610 = vmul.f32 %v5596, %v216
  %v5611 = vmul.f32 %v5599, %v216
  %v5612 = vmul.f32 %v5602, %v216
  %v5613 = vmul.f32 %v5605, %v216
  %v5614 = vsub.f32 %v5570, %v5606
  %v5615 = vsub.f32 %v5571, %v5607
  %v5616 = vsub.f32 %v5572, %v5608
  %v5617 = vsub.f32 %v5573, %v5609
  %v5618 = vsub.f32 %v5574, %v5610
  %v5619 = vsub.f32 %v5575, %v5611
  %v5620 = vsub.f32 %v5576, %v5612
  %v5621 = vsub.f32 %v5577, %v5613
  %v5622 = vmul.f32 %v5614, %v5614
  %v5623 = vmul.f32 %v5615, %v5615
  %v5624 = vmul.f32 %v5616, %v5616
  %v5625 = vmul.f32 %v5617, %v5617
  %v5626 = vmul.f32 %v5618, %v5618
  %v5627 = vmul.f32 %v5619, %v5619
  %v5628 = vmul.f32 %v5620, %v5620
  %v5629 = vmul.f32 %v5621, %v5621
  %v5630 = vsel %vm191, %v5622, 0.0
  %5631 = vadd.xlane.f32.xlu0 %v5630
  %v5632 = vpop.xlane.xlu0 %5631
  %v5633 = vsel %vm191, %v5623, 0.0
  %5634 = vadd.xlane.f32.xlu0 %v5633
  %v5635 = vpop.xlane.xlu0 %5634
  %v5636 = vsel %vm191, %v5624, 0.0
  %5637 = vadd.xlane.f32.xlu0 %v5636
  %v5638 = vpop.xlane.xlu0 %5637
  %v5639 = vsel %vm191, %v5625, 0.0
  %5640 = vadd.xlane.f32.xlu0 %v5639
  %v5641 = vpop.xlane.xlu0 %5640
  %v5642 = vsel %vm191, %v5626, 0.0
  %5643 = vadd.xlane.f32.xlu0 %v5642
  %v5644 = vpop.xlane.xlu0 %5643
  %v5645 = vsel %vm191, %v5627, 0.0
  %5646 = vadd.xlane.f32.xlu0 %v5645
  %v5647 = vpop.xlane.xlu0 %5646
  %v5648 = vsel %vm191, %v5628, 0.0
  %5649 = vadd.xlane.f32.xlu0 %v5648
  %v5650 = vpop.xlane.xlu0 %5649
  %v5651 = vsel %vm191, %v5629, 0.0
  %5652 = vadd.xlane.f32.xlu0 %v5651
  %v5653 = vpop.xlane.xlu0 %5652
  %v5654 = vmul.f32 %v5632, %v216
  %v5655 = vmul.f32 %v5635, %v216
  %v5656 = vmul.f32 %v5638, %v216
  %v5657 = vmul.f32 %v5641, %v216
  %v5658 = vmul.f32 %v5644, %v216
  %v5659 = vmul.f32 %v5647, %v216
  %v5660 = vmul.f32 %v5650, %v216
  %v5661 = vmul.f32 %v5653, %v216
  %v5662 = vadd.f32 %v5654, 1e-05
  %v5663 = vadd.f32 %v5655, 1e-05
  %v5664 = vadd.f32 %v5656, 1e-05
  %v5665 = vadd.f32 %v5657, 1e-05
  %v5666 = vadd.f32 %v5658, 1e-05
  %v5667 = vadd.f32 %v5659, 1e-05
  %v5668 = vadd.f32 %v5660, 1e-05
  %v5669 = vadd.f32 %v5661, 1e-05
  %v5670 = vrsqrt.pop %v5662
  %v5671 = vrsqrt.pop %v5663
  %v5672 = vrsqrt.pop %v5664
  %v5673 = vrsqrt.pop %v5665
  %v5674 = vrsqrt.pop %v5666
  %v5675 = vrsqrt.pop %v5667
  %v5676 = vrsqrt.pop %v5668
  %v5677 = vrsqrt.pop %v5669
  %v5678 = vmul.f32 %v5614, %v5670
  %v5679 = vmul.f32 %v5615, %v5671
  %v5680 = vmul.f32 %v5616, %v5672
  %v5681 = vmul.f32 %v5617, %v5673
  %v5682 = vmul.f32 %v5618, %v5674
  %v5683 = vmul.f32 %v5619, %v5675
  %v5684 = vmul.f32 %v5620, %v5676
  %v5685 = vmul.f32 %v5621, %v5677
  %v5687 = vlaneseq
  %v5688 = vshrl.u32 %v5687, 7
  %v5689 = vsub.s32 0, %v5688
  %v5690 = vrot.slane %v5579, %v5689
  %v5692 = vmul.f32 %v5678, %v5690
  %v5693 = vmul.f32 %v5679, %v5690
  %v5694 = vmul.f32 %v5680, %v5690
  %v5695 = vmul.f32 %v5681, %v5690
  %v5696 = vmul.f32 %v5682, %v5690
  %v5697 = vmul.f32 %v5683, %v5690
  %v5698 = vmul.f32 %v5684, %v5690
  %v5699 = vmul.f32 %v5685, %v5690
  %v5701 = vlaneseq
  %v5702 = vshrl.u32 %v5701, 7
  %v5703 = vsub.s32 0, %v5702
  %v5704 = vrot.slane %v5581, %v5703
  %v5706 = vadd.f32 %v5692, %v5704
  %v5707 = vadd.f32 %v5693, %v5704
  %v5708 = vadd.f32 %v5694, %v5704
  %v5709 = vadd.f32 %v5695, %v5704
  %v5710 = vadd.f32 %v5696, %v5704
  %v5711 = vadd.f32 %v5697, %v5704
  %v5712 = vadd.f32 %v5698, %v5704
  %v5713 = vadd.f32 %v5699, %v5704
  %s5714 = scalar_lea.vmem %s16, 32
  %v5715 = vld [vmem:[%s5714] sm:$0xff]
  %v5716 = vld [vmem:[%s5714 + $0x8] sm:$0xff]
  %v5717 = vld [vmem:[%s5714 + $0x10] sm:$0xff]
  %v5718 = vld [vmem:[%s5714 + $0x18] sm:$0xff]
  %s5719 = scalar_lea.vmem %s17, 1
  %v5720 = vld [vmem:[%s5719] sm:$0x1]
  %v5722 = vlaneseq
  %v5723 = vshrl.u32 %v5722, 7
  %v5724 = vsub.s32 0, %v5723
  %v5725 = vrot.slane %v5720, %v5724
  %v5728 = vsel %vm191, %v5706, 0
  %v5731 = vsel %vm191, %v5707, 0
  %v5734 = vsel %vm191, %v5708, 0
  %v5737 = vsel %vm191, %v5709, 0
  %v5740 = vsel %vm191, %v5710, 0
  %v5743 = vsel %vm191, %v5711, 0
  %v5746 = vsel %vm191, %v5712, 0
  %v5749 = vsel %vm191, %v5713, 0
  %5751 = vmatprep.subr.mxu0 0.0
  %5752 = vmatpush1.msra.mxu0 %v5715
  %5753 = vmatprep.subr.mxu0 0.0
  %5754 = vmatpush1.msra.mxu0 %v5716
  %5755 = vmatprep.subr.mxu0 0.0
  %5756 = vmatpush1.msra.mxu0 %v5717
  %5757 = vmatprep.subr.mxu0 0.0
  %5758 = vmatpush1.msra.mxu0 %v5718
  %5759 = vmatprep.subr.mxu0 0.0
  %5760 = vmatpush1.msra.mxu0 0.0
  %5761 = vmatprep.subr.mxu0 0.0
  %5762 = vmatpush1.msra.mxu0 0.0
  %5763 = vmatprep.subr.mxu0 0.0
  %5764 = vmatpush1.msra.mxu0 0.0
  %5765 = vmatprep.subr.mxu0 0.0
  %5766 = vmatpush1.msra.mxu0 0.0
  %5767 = vmatprep.subr.mxu0 0.0
  %5768 = vmatpush1.msra.mxu0 0.0
  %5769 = vmatprep.subr.mxu0 0.0
  %5770 = vmatpush1.msra.mxu0 0.0
  %5771 = vmatprep.subr.mxu0 0.0
  %5772 = vmatpush1.msra.mxu0 0.0
  %5773 = vmatprep.subr.mxu0 0.0
  %5774 = vmatpush1.msra.mxu0 0.0
  %5775 = vmatprep.subr.mxu0 0.0
  %5776 = vmatpush1.msra.mxu0 0.0
  %5777 = vmatprep.subr.mxu0 0.0
  %5778 = vmatpush1.msra.mxu0 0.0
  %5779 = vmatprep.subr.mxu0 0.0
  %5780 = vmatpush1.msra.mxu0 0.0
  %5781 = vmatprep.subr.mxu0 0.0
  %5782 = vmatpush1.msra.mxu0 0.0
  %5783 = vmatprep.subr.mxu0 0.0
  %5784 = vmatpush1.msra.mxu0 0.0
  %5785 = vmatprep.subr.mxu0 0.0
  %5786 = vmatpush1.msra.mxu0 0.0
  %5787 = vmatprep.subr.mxu0 0.0
  %5788 = vmatpush1.msra.mxu0 0.0
  %5789 = vmatprep.subr.mxu0 0.0
  %5790 = vmatpush1.msra.mxu0 0.0
  %5791 = vmatprep.subr.mxu0 0.0
  %5792 = vmatpush1.msra.mxu0 0.0
  %5793 = vmatprep.subr.mxu0 0.0
  %5794 = vmatpush1.msra.mxu0 0.0
  %5795 = vmatprep.subr.mxu0 0.0
  %5796 = vmatpush1.msra.mxu0 0.0
  %5797 = vmatprep.subr.mxu0 0.0
  %5798 = vmatpush1.msra.mxu0 0.0
  %5799 = vmatprep.subr.mxu0 0.0
  %5800 = vmatpush1.msra.mxu0 0.0
  %5801 = vmatprep.subr.mxu0 0.0
  %5802 = vmatpush1.msra.mxu0 0.0
  %5803 = vmatprep.subr.mxu0 0.0
  %5804 = vmatpush1.msra.mxu0 0.0
  %5805 = vmatprep.subr.mxu0 0.0
  %5806 = vmatpush1.msra.mxu0 0.0
  %5807 = vmatprep.subr.mxu0 0.0
  %5808 = vmatpush1.msra.mxu0 0.0
  %5809 = vmatprep.subr.mxu0 0.0
  %5810 = vmatpush1.msra.mxu0 0.0
  %5811 = vmatprep.subr.mxu0 0.0
  %5812 = vmatpush1.msra.mxu0 0.0
  %5813 = vmatprep.subr.mxu0 0.0
  %5814 = vmatpush1.msra.mxu0 0.0
  %5815 = vmatprep.mubr.f32.mxu0 0.0
  %5816 = vmatmul.mubr.f32.gmra.mrb[0].mxu0 %v5728
  %v5817 = vpop.f32.mrb[0].mxu0
  %v5818 = vadd.f32 %v5725, %v5817
  %v5819 = vpop.f32.mrb[0].mxu0
  %5820 = vmatprep.mubr.f32.mxu0 0.0
  %5821 = vmatmul.mubr.f32.gmra.mrb[0].mxu0 %v5731
  %v5822 = vpop.f32.mrb[0].mxu0
  %v5823 = vadd.f32 %v5725, %v5822
  %v5824 = vpop.f32.mrb[0].mxu0
  %5825 = vmatprep.mubr.f32.mxu0 0.0
  %5826 = vmatmul.mubr.f32.gmra.mrb[0].mxu0 %v5734
  %v5827 = vpop.f32.mrb[0].mxu0
  %v5828 = vadd.f32 %v5725, %v5827
  %v5829 = vpop.f32.mrb[0].mxu0
  %5830 = vmatprep.mubr.f32.mxu0 0.0
  %5831 = vmatmul.mubr.f32.gmra.mrb[0].mxu0 %v5737
  %v5832 = vpop.f32.mrb[0].mxu0
  %v5833 = vadd.f32 %v5725, %v5832
  %v5834 = vpop.f32.mrb[0].mxu0
  %5835 = vmatprep.mubr.f32.mxu0 0.0
  %5836 = vmatmul.mubr.f32.gmra.mrb[0].mxu0 %v5740
  %v5837 = vpop.f32.mrb[0].mxu0
  %v5838 = vadd.f32 %v5725, %v5837
  %v5839 = vpop.f32.mrb[0].mxu0
  %5840 = vmatprep.mubr.f32.mxu0 0.0
  %5841 = vmatmul.mubr.f32.gmra.mrb[0].mxu0 %v5743
  %v5842 = vpop.f32.mrb[0].mxu0
  %v5843 = vadd.f32 %v5725, %v5842
  %v5844 = vpop.f32.mrb[0].mxu0
  %5845 = vmatprep.mubr.f32.mxu0 0.0
  %5846 = vmatmul.mubr.f32.gmra.mrb[0].mxu0 %v5746
  %v5847 = vpop.f32.mrb[0].mxu0
  %v5848 = vadd.f32 %v5725, %v5847
  %v5849 = vpop.f32.mrb[0].mxu0
  %5850 = vmatprep.mubr.f32.mxu0 0.0
  %5851 = vmatmul.mubr.f32.gmra.mrb[0].mxu0 %v5749
  %v5852 = vpop.f32.mrb[0].mxu0
  %v5853 = vadd.f32 %v5725, %v5852
  %v5854 = vpop.f32.mrb[0].mxu0
  %5855 = vdwg.mxu0
  %v5856 = vmax.f32 %v5818, 0.0
  %v5857 = vmax.f32 %v5823, 0.0
  %v5858 = vmax.f32 %v5828, 0.0
  %v5859 = vmax.f32 %v5833, 0.0
  %v5860 = vmax.f32 %v5838, 0.0
  %v5861 = vmax.f32 %v5843, 0.0
  %v5862 = vmax.f32 %v5848, 0.0
  %v5863 = vmax.f32 %v5853, 0.0
  %s5864 = scalar_lea.vmem %s18, 64
  %v5865 = vld [vmem:[%s5864] sm:$0xff]
  %v5866 = vld [vmem:[%s5864 + $0x8] sm:$0xff]
  %v5867 = vld [vmem:[%s5864 + $0x10] sm:$0xff]
  %v5868 = vld [vmem:[%s5864 + $0x18] sm:$0xff]
  %v5869 = vld [vmem:[%s5864 + $0x20] sm:$0xff]
  %v5870 = vld [vmem:[%s5864 + $0x28] sm:$0xff]
  %v5871 = vld [vmem:[%s5864 + $0x30] sm:$0xff]
  %v5872 = vld [vmem:[%s5864 + $0x38] sm:$0xff]
  %s5873 = scalar_lea.vmem %s19, 1
  %v5874 = vld [vmem:[%s5873] sm:$0x1]
  %v5876 = vlaneseq
  %v5877 = vshrl.u32 %v5876, 7
  %v5878 = vsub.s32 0, %v5877
  %v5879 = vrot.slane %v5874, %v5878
  %v5882 = vsel %vm3127, %v5856, 0
  %v5885 = vsel %vm3127, %v5857, 0
  %v5888 = vsel %vm3127, %v5858, 0
  %v5891 = vsel %vm3127, %v5859, 0
  %v5894 = vsel %vm3127, %v5860, 0
  %v5897 = vsel %vm3127, %v5861, 0
  %v5900 = vsel %vm3127, %v5862, 0
  %v5903 = vsel %vm3127, %v5863, 0
  %5905 = vmatprep.subr.mxu0 0.0
  %5906 = vmatpush1.msra.mxu0 %v5865
  %5907 = vmatprep.subr.mxu0 0.0
  %5908 = vmatpush1.msra.mxu0 %v5866
  %5909 = vmatprep.subr.mxu0 0.0
  %5910 = vmatpush1.msra.mxu0 %v5867
  %5911 = vmatprep.subr.mxu0 0.0
  %5912 = vmatpush1.msra.mxu0 %v5868
  %5913 = vmatprep.subr.mxu0 0.0
  %5914 = vmatpush1.msra.mxu0 %v5869
  %5915 = vmatprep.subr.mxu0 0.0
  %5916 = vmatpush1.msra.mxu0 %v5870
  %5917 = vmatprep.subr.mxu0 0.0
  %5918 = vmatpush1.msra.mxu0 %v5871
  %5919 = vmatprep.subr.mxu0 0.0
  %5920 = vmatpush1.msra.mxu0 %v5872
  %5921 = vmatprep.subr.mxu0 0.0
  %5922 = vmatpush1.msra.mxu0 0.0
  %5923 = vmatprep.subr.mxu0 0.0
  %5924 = vmatpush1.msra.mxu0 0.0
  %5925 = vmatprep.subr.mxu0 0.0
  %5926 = vmatpush1.msra.mxu0 0.0
  %5927 = vmatprep.subr.mxu0 0.0
  %5928 = vmatpush1.msra.mxu0 0.0
  %5929 = vmatprep.subr.mxu0 0.0
  %5930 = vmatpush1.msra.mxu0 0.0
  %5931 = vmatprep.subr.mxu0 0.0
  %5932 = vmatpush1.msra.mxu0 0.0
  %5933 = vmatprep.subr.mxu0 0.0
  %5934 = vmatpush1.msra.mxu0 0.0
  %5935 = vmatprep.subr.mxu0 0.0
  %5936 = vmatpush1.msra.mxu0 0.0
  %5937 = vmatprep.subr.mxu0 0.0
  %5938 = vmatpush1.msra.mxu0 0.0
  %5939 = vmatprep.subr.mxu0 0.0
  %5940 = vmatpush1.msra.mxu0 0.0
  %5941 = vmatprep.subr.mxu0 0.0
  %5942 = vmatpush1.msra.mxu0 0.0
  %5943 = vmatprep.subr.mxu0 0.0
  %5944 = vmatpush1.msra.mxu0 0.0
  %5945 = vmatprep.subr.mxu0 0.0
  %5946 = vmatpush1.msra.mxu0 0.0
  %5947 = vmatprep.subr.mxu0 0.0
  %5948 = vmatpush1.msra.mxu0 0.0
  %5949 = vmatprep.subr.mxu0 0.0
  %5950 = vmatpush1.msra.mxu0 0.0
  %5951 = vmatprep.subr.mxu0 0.0
  %5952 = vmatpush1.msra.mxu0 0.0
  %5953 = vmatprep.subr.mxu0 0.0
  %5954 = vmatpush1.msra.mxu0 0.0
  %5955 = vmatprep.subr.mxu0 0.0
  %5956 = vmatpush1.msra.mxu0 0.0
  %5957 = vmatprep.subr.mxu0 0.0
  %5958 = vmatpush1.msra.mxu0 0.0
  %5959 = vmatprep.subr.mxu0 0.0
  %5960 = vmatpush1.msra.mxu0 0.0
  %5961 = vmatprep.subr.mxu0 0.0
  %5962 = vmatpush1.msra.mxu0 0.0
  %5963 = vmatprep.subr.mxu0 0.0
  %5964 = vmatpush1.msra.mxu0 0.0
  %5965 = vmatprep.subr.mxu0 0.0
  %5966 = vmatpush1.msra.mxu0 0.0
  %5967 = vmatprep.subr.mxu0 0.0
  %5968 = vmatpush1.msra.mxu0 0.0
  %5969 = vmatprep.mubr.f32.mxu0 0.0
  %5970 = vmatmul.mubr.f32.gmra.mrb[0].mxu0 %v5882
  %v5971 = vpop.f32.mrb[0].mxu0
  %v5972 = vadd.f32 %v5879, %v5971
  %v5973 = vpop.f32.mrb[0].mxu0
  %5974 = vmatprep.mubr.f32.mxu0 0.0
  %5975 = vmatmul.mubr.f32.gmra.mrb[0].mxu0 %v5885
  %v5976 = vpop.f32.mrb[0].mxu0
  %v5977 = vadd.f32 %v5879, %v5976
  %v5978 = vpop.f32.mrb[0].mxu0
  %5979 = vmatprep.mubr.f32.mxu0 0.0
  %5980 = vmatmul.mubr.f32.gmra.mrb[0].mxu0 %v5888
  %v5981 = vpop.f32.mrb[0].mxu0
  %v5982 = vadd.f32 %v5879, %v5981
  %v5983 = vpop.f32.mrb[0].mxu0
  %5984 = vmatprep.mubr.f32.mxu0 0.0
  %5985 = vmatmul.mubr.f32.gmra.mrb[0].mxu0 %v5891
  %v5986 = vpop.f32.mrb[0].mxu0
  %v5987 = vadd.f32 %v5879, %v5986
  %v5988 = vpop.f32.mrb[0].mxu0
  %5989 = vmatprep.mubr.f32.mxu0 0.0
  %5990 = vmatmul.mubr.f32.gmra.mrb[0].mxu0 %v5894
  %v5991 = vpop.f32.mrb[0].mxu0
  %v5992 = vadd.f32 %v5879, %v5991
  %v5993 = vpop.f32.mrb[0].mxu0
  %5994 = vmatprep.mubr.f32.mxu0 0.0
  %5995 = vmatmul.mubr.f32.gmra.mrb[0].mxu0 %v5897
  %v5996 = vpop.f32.mrb[0].mxu0
  %v5997 = vadd.f32 %v5879, %v5996
  %v5998 = vpop.f32.mrb[0].mxu0
  %5999 = vmatprep.mubr.f32.mxu0 0.0
  %6000 = vmatmul.mubr.f32.gmra.mrb[0].mxu0 %v5900
  %v6001 = vpop.f32.mrb[0].mxu0
  %v6002 = vadd.f32 %v5879, %v6001
  %v6003 = vpop.f32.mrb[0].mxu0
  %6004 = vmatprep.mubr.f32.mxu0 0.0
  %6005 = vmatmul.mubr.f32.gmra.mrb[0].mxu0 %v5903
  %v6006 = vpop.f32.mrb[0].mxu0
  %v6007 = vadd.f32 %v5879, %v6006
  %v6008 = vpop.f32.mrb[0].mxu0
  %6009 = vdwg.mxu0
  %v6010 = vadd.f32 %v5570, %v5972
  %v6011 = vadd.f32 %v5571, %v5977
  %v6012 = vadd.f32 %v5572, %v5982
  %v6013 = vadd.f32 %v5573, %v5987
  %v6014 = vadd.f32 %v5574, %v5992
  %v6015 = vadd.f32 %v5575, %v5997
  %v6016 = vadd.f32 %v5576, %v6002
  %v6017 = vadd.f32 %v5577, %v6007
  %6018 = vst.msk [vmem:[%s20] sm:$0xff] %vm191, %v6010
  %6019 = vst.msk [vmem:[%s20 + $0x8] sm:$0xff] %vm191, %v6011
  %6020 = vst.msk [vmem:[%s20 + $0x10] sm:$0xff] %vm191, %v6012
  %6021 = vst.msk [vmem:[%s20 + $0x18] sm:$0xff] %vm191, %v6013
  %6022 = vst.msk [vmem:[%s20 + $0x20] sm:$0xff] %vm191, %v6014
  %6023 = vst.msk [vmem:[%s20 + $0x28] sm:$0xff] %vm191, %v6015
  %6024 = vst.msk [vmem:[%s20 + $0x30] sm:$0xff] %vm191, %v6016
  %6025 = vst.msk [vmem:[%s20 + $0x38] sm:$0xff] %vm191, %v6017
  // Predicated region
  $region82: #{tpu_custom_call.1} parent=0 // pred_check
    _
  $region83: #{tpu_custom_call.1} parent=0 // pred_check_branch
    %6027 = sbr.rel (0) target = $region85
  $region84: #{tpu_custom_call.1} parent=0 // pred_region
    _
  $region85: #{tpu_custom_call.1} parent=0 // pred_fallthru
    _
  // Predicated region
  $region86: #{tpu_custom_call.1} parent=0 // pred_check
    _
  $region87: #{tpu_custom_call.1} parent=0 // pred_check_branch
    %6029 = sbr.rel (0) target = $region89
  $region88: #{tpu_custom_call.1} parent=0 // pred_region
    _
  $region89: #{tpu_custom_call.1} parent=0 // pred_fallthru
    _

</llo_original>
